<compile_context>
chip_gen: v6e
topology: v6e:2x2x1
jax: 0.10.0
libtpu: 0.0.40
codegen_flags: <defaults>
</compile_context>

<pallas_src>
import math
import functools

import jax
import jax.numpy as jnp
from jax import lax
from jax.experimental import pallas as pl
from jax.experimental.pallas import tpu as pltpu


def _next_pow2(n):
    return 1 << (int(n) - 1).bit_length()


def _round_up(n, m):
    return ((n + m - 1) // m) * m


def _fcnn_fused_kernel(x_ref, *refs, num_blocks, H, W, K, pad, row, mm_dtype):
    """All FCNN blocks for ONE image, fused.

    x_ref:  (1, Cin0, H*W) f32   input image, channels on sublanes.
    per block l: w_ref (K*K, Cout, Cin_l) BN-folded conv weights (mm_dtype)
                 b_ref (Cout, 1) folded bias (f32)
                 a_ref (Cout, 1) PReLU alpha (f32)
    o_ref:  (1, Cout, H*row) f32  lane-dense output slab (cols >= W are junk)
    in_pad_ref:  (Cin0, LBUF) f32 VMEM scratch: padded, row-flattened input
    act_pad_ref: (F,    LBUF) f32 VMEM scratch: padded inter-block activation
    """
    layers = [tuple(refs[3 * l:3 * l + 3]) for l in range(num_blocks)]
    o_ref = refs[3 * num_blocks]
    in_pad_ref = refs[3 * num_blocks + 1]
    act_pad_ref = refs[3 * num_blocks + 2]

    Hout, Wout = H, W                 # padding_same, stride 1
    accw = Hout * row                 # lane width of accumulator / output slab
    off = pad * row + pad             # flat offset of padded-grid (pad, pad)

    # Zero the padded scratch buffers (their borders must be exact zeros).
    in_pad_ref[...] = jnp.zeros_like(in_pad_ref)
    act_pad_ref[...] = jnp.zeros_like(act_pad_ref)

    # In-kernel zero padding: scatter the H rows of the flattened image into
    # the interior of the padded, row-flattened buffer (row stride = `row`).
    x = x_ref[0]                                          # (Cin0, H*W)
    for r in range(H):
        in_pad_ref[:, pl.ds((r + pad) * row + pad, W)] = x[:, r * W:(r + 1) * W]

    # Lanes whose column (q % row) >= Wout are wrap-around junk columns.
    lane = lax.broadcasted_iota(jnp.int32, (1, accw), 1)
    valid = (lane % row) < Wout

    src_ref = in_pad_ref
    for l, (w_ref, b_ref, a_ref) in enumerate(layers):
        xp = src_ref[...].astype(mm_dtype)                # (Cin_l, LBUF)
        cout = w_ref.shape[1]
        acc = jnp.zeros((cout, accw), jnp.float32)
        # Direct conv: K*K shifted matmuls, contraction over Cin on the MXU.
        # Each tap operand is a pure lane-slice of the flattened padded image.
        for kh in range(K):
            for kw in range(K):
                start = kh * row + kw
                slab = xp[:, start:start + accw]          # (Cin_l, accw)
                acc = acc + jnp.dot(w_ref[kh * K + kw], slab,
                                    preferred_element_type=jnp.float32)
        y = acc + b_ref[...]                              # conv bias + BN shift
        y = jnp.where(y > 0, y, a_ref[...] * y)           # PReLU (per-channel)
        # Dropout(0.4) is identity in eval mode.
        if l == num_blocks - 1:
            o_ref[0] = y.astype(o_ref.dtype)
        else:
            # Hand off to the next block: zero junk columns and store into the
            # interior of the zeroed padded activation buffer (stays in VMEM).
            y = jnp.where(valid, y, 0.0)
            act_pad_ref[:, pl.ds(off, accw)] = y
            src_ref = act_pad_ref


def fcnn_forward(x_nchw, params, *, kernel_size, padding, use_bf16=True, eps=1e-5):
    """Inference forward of FCNN. x_nchw: (N, C, H, W) f32. Returns NCHW f32."""
    N, Cin0, H, W = x_nchw.shape
    K = kernel_size
    if padding != (K - 1) // 2:
        raise NotImplementedError("fused kernel supports the padding_same path")
    num_blocks = len(params)
    F = params[-1]["w"].shape[0]
    mm_dtype = jnp.bfloat16 if use_bf16 else jnp.float32

    row = _next_pow2(W + 2 * padding)                 # padded row stride (lanes)
    accw = H * row                                    # output slab lane width
    lbuf = _round_up((H + 2 * padding) * row + K - 1, 128)

    kernel_inputs = [x_nchw.reshape(N, Cin0, H * W).astype(jnp.float32)]
    in_specs = [pl.BlockSpec((1, Cin0, H * W), lambda n: (n, 0, 0))]
    # Fold eval-mode BatchNorm into the conv weights / bias (once, wrapper-side).
    for p in params:
        w = p["w"]                                    # (Cout, Cin, K, K) OIHW
        cout, cin = w.shape[0], w.shape[1]
        scale = p["gamma"] / jnp.sqrt(p["running_var"] + eps)
        w_f = w * scale[:, None, None, None]
        w_f = jnp.transpose(w_f, (2, 3, 0, 1)).reshape(K * K, cout, cin)
        b_f = (p["b"] - p["running_mean"]) * scale + p["beta"]
        kernel_inputs += [w_f.astype(mm_dtype),
                          b_f.reshape(cout, 1).astype(jnp.float32),
                          p["alpha"].reshape(cout, 1).astype(jnp.float32)]
        in_specs += [pl.BlockSpec((K * K, cout, cin), lambda n: (0, 0, 0)),
                     pl.BlockSpec((cout, 1), lambda n: (0, 0)),
                     pl.BlockSpec((cout, 1), lambda n: (0, 0))]

    kernel = functools.partial(_fcnn_fused_kernel, num_blocks=num_blocks,
                               H=H, W=W, K=K, pad=padding, row=row,
                               mm_dtype=mm_dtype)

    out = pl.pallas_call(
        kernel,
        out_shape=jax.ShapeDtypeStruct((N, F, accw), jnp.float32),
        grid=(N,),
        in_specs=in_specs,
        out_specs=pl.BlockSpec((1, F, accw), lambda n: (n, 0, 0)),
        scratch_shapes=[pltpu.VMEM((Cin0, lbuf), jnp.float32),
                        pltpu.VMEM((F, lbuf), jnp.float32)],
        compiler_params=pltpu.CompilerParams(
            dimension_semantics=("parallel",)),
    )(*kernel_inputs)

    # Strip the wrap-around junk columns; result is NCHW.
    return out.reshape(N, F, H, row)[:, :, :, :W]


def init_fcnn_params(key, *, num_channels, num_filters, kernel_size, num_cnn_blocks):
    """Deterministic parameter init mirroring the PyTorch init_weights()."""
    params = []
    cin = num_channels
    for _ in range(num_cnn_blocks):
        key, kw_, kb_, kg_ = jax.random.split(key, 4)
        fan_in = cin * kernel_size * kernel_size
        # kaiming_normal_(a=0, mode='fan_in'): std = sqrt(2 / fan_in); OIHW.
        w = jax.random.normal(kw_, (num_filters, cin, kernel_size, kernel_size),
                              jnp.float32) * math.sqrt(2.0 / fan_in)
        bound = 1.0 / math.sqrt(fan_in)
        b = jax.random.uniform(kb_, (num_filters,), jnp.float32, -bound, bound)
        gamma = jnp.clip(jax.random.normal(kg_, (num_filters,), jnp.float32)
                         * math.sqrt(2.0 / 9.0 / 64.0), -0.025, 0.025)
        beta = jnp.zeros((num_filters,), jnp.float32)
        alpha = jnp.full((num_filters,), 0.25, jnp.float32)     # PReLU default
        params.append(dict(w=w, b=b, gamma=gamma, beta=beta, alpha=alpha,
                           running_mean=jnp.zeros((num_filters,), jnp.float32),
                           running_var=jnp.ones((num_filters,), jnp.float32)))
        cin = num_filters
    return params


def _reference_forward(x_nchw, params, *, padding, eps=1e-5):
    """Plain-JAX reference (lax.conv, NCHW) for correctness checking."""
    x = x_nchw
    for p in params:
        y = lax.conv_general_dilated(
            x, p["w"], window_strides=(1, 1),
            padding=[(padding, padding), (padding, padding)],
            dimension_numbers=("NCHW", "OIHW", "NCHW"))
        y = y + p["b"][None, :, None, None]
        scale = p["gamma"] / jnp.sqrt(p["running_var"] + eps)
        shift = p["beta"] - p["running_mean"] * scale
        y = y * scale[None, :, None, None] + shift[None, :, None, None]
        a = p["alpha"][None, :, None, None]
        x = jnp.where(y > 0, y, a * y)
    return x


if __name__ == "__main__":
    # args: num_channels=4, num_filters=32, kernel_size=3, num_cnn_blocks=2,
    #       padding_same=True (stride=1, filter_size=3) -> padding=1.
    num_channels, num_filters, kernel_size, num_cnn_blocks = 4, 32, 3, 2
    stride = 1
    padding = (kernel_size - stride) // 2

    key = jax.random.PRNGKey(0)
    key, kx = jax.random.split(key)
    x_nchw = jax.random.normal(kx, (2, num_channels, 16, 16), jnp.float32)

    params = init_fcnn_params(key, num_channels=num_channels,
                              num_filters=num_filters,
                              kernel_size=kernel_size,
                              num_cnn_blocks=num_cnn_blocks)

    fwd = jax.jit(functools.partial(fcnn_forward, kernel_size=kernel_size,
                                    padding=padding))
    out = jax.block_until_ready(fwd(x_nchw, params))

    ref = _reference_forward(x_nchw, params, padding=padding)
    assert out.shape == ref.shape, (out.shape, ref.shape)
    max_err = float(jnp.max(jnp.abs(out - ref)))
    # bf16 MXU inputs (f32 accumulation) vs f32 reference -> relaxed tolerance.
    assert max_err < 2e-3, max_err
    print("KERNEL_OK")
</pallas_src>

<mosaic_0001>
module attributes {stable_mosaic.version = 11 : i64} {
  func.func @_fcnn_fused_kernel(%arg0: i32, %arg1: memref<1x4x256xf32, #tpu.memory_space<vmem>>, %arg2: memref<9x32x4xbf16, #tpu.memory_space<vmem>>, %arg3: memref<32x1xf32, #tpu.memory_space<vmem>>, %arg4: memref<32x1xf32, #tpu.memory_space<vmem>>, %arg5: memref<9x32x32xbf16, #tpu.memory_space<vmem>>, %arg6: memref<32x1xf32, #tpu.memory_space<vmem>>, %arg7: memref<32x1xf32, #tpu.memory_space<vmem>>, %arg8: memref<1x32x512xf32, #tpu.memory_space<vmem>>, %arg9: memref<4x640xf32, #tpu.memory_space<vmem>>, %arg10: memref<32x640xf32, #tpu.memory_space<vmem>>) attributes {dimension_semantics = [#tpu.dimension_semantics<parallel>], iteration_bounds = array<i64: 2>, scalar_prefetch = 0 : i64, scratch_operands = 2 : i64, tpu.core_type = #tpu.core_type<tc>, window_params = [{transform_indices = @transform_0, window_bounds = array<i64: 1, 4, 256>}, {pipeline_mode = #tpu.pipeline_mode<synchronous>, transform_indices = @transform_1, window_bounds = array<i64: 9, 32, 4>}, {pipeline_mode = #tpu.pipeline_mode<synchronous>, transform_indices = @transform_2, window_bounds = array<i64: 32, 1>}, {pipeline_mode = #tpu.pipeline_mode<synchronous>, transform_indices = @transform_3, window_bounds = array<i64: 32, 1>}, {pipeline_mode = #tpu.pipeline_mode<synchronous>, transform_indices = @transform_4, window_bounds = array<i64: 9, 32, 32>}, {pipeline_mode = #tpu.pipeline_mode<synchronous>, transform_indices = @transform_5, window_bounds = array<i64: 32, 1>}, {pipeline_mode = #tpu.pipeline_mode<synchronous>, transform_indices = @transform_6, window_bounds = array<i64: 32, 1>}, {transform_indices = @transform_7, window_bounds = array<i64: 1, 32, 512>}]} {
    %cst = arith.constant 0.000000e+00 : f32
    %0 = vector.broadcast %cst : f32 to vector<4x640xf32>
    %c0 = arith.constant 0 : index
    %c0_0 = arith.constant 0 : index
    %1 = vector.load %arg9[%c0, %c0_0] : memref<4x640xf32, #tpu.memory_space<vmem>>, vector<4x640xf32>
    tpu.vector_store %arg9[%c0, %c0_0], %0 {strides = array<i32>} : memref<4x640xf32, #tpu.memory_space<vmem>>, vector<4x640xf32>,
    %cst_1 = arith.constant 0.000000e+00 : f32
    %2 = vector.broadcast %cst_1 : f32 to vector<32x640xf32>
    %c0_2 = arith.constant 0 : index
    %c0_3 = arith.constant 0 : index
    %3 = vector.load %arg10[%c0_2, %c0_3] : memref<32x640xf32, #tpu.memory_space<vmem>>, vector<32x640xf32>
    tpu.vector_store %arg10[%c0_2, %c0_3], %2 {strides = array<i32>} : memref<32x640xf32, #tpu.memory_space<vmem>>, vector<32x640xf32>,
    %c0_4 = arith.constant 0 : index
    %c0_5 = arith.constant 0 : index
    %c0_6 = arith.constant 0 : index
    %4 = vector.load %arg1[%c0_4, %c0_5, %c0_6] : memref<1x4x256xf32, #tpu.memory_space<vmem>>, vector<1x4x256xf32>
    %5 = vector.shape_cast %4 : vector<1x4x256xf32> to vector<4x256xf32>
    %6 = vector.extract_strided_slice %5 {offsets = [0, 0], sizes = [4, 16], strides = [1, 1]} : vector<4x256xf32> to vector<4x16xf32>
    %c0_7 = arith.constant 0 : index
    %c33 = arith.constant 33 : index
    %7 = vector.load %arg9[%c0_7, %c33] : memref<4x640xf32, #tpu.memory_space<vmem>>, vector<4x16xf32>
    tpu.vector_store %arg9[%c0_7, %c33], %6 {strides = array<i32>} : memref<4x640xf32, #tpu.memory_space<vmem>>, vector<4x16xf32>,
    %8 = vector.extract_strided_slice %5 {offsets = [0, 16], sizes = [4, 16], strides = [1, 1]} : vector<4x256xf32> to vector<4x16xf32>
    %c0_8 = arith.constant 0 : index
    %c65 = arith.constant 65 : index
    %9 = vector.load %arg9[%c0_8, %c65] : memref<4x640xf32, #tpu.memory_space<vmem>>, vector<4x16xf32>
    tpu.vector_store %arg9[%c0_8, %c65], %8 {strides = array<i32>} : memref<4x640xf32, #tpu.memory_space<vmem>>, vector<4x16xf32>,
    %10 = vector.extract_strided_slice %5 {offsets = [0, 32], sizes = [4, 16], strides = [1, 1]} : vector<4x256xf32> to vector<4x16xf32>
    %c0_9 = arith.constant 0 : index
    %c97 = arith.constant 97 : index
    %11 = vector.load %arg9[%c0_9, %c97] : memref<4x640xf32, #tpu.memory_space<vmem>>, vector<4x16xf32>
    tpu.vector_store %arg9[%c0_9, %c97], %10 {strides = array<i32>} : memref<4x640xf32, #tpu.memory_space<vmem>>, vector<4x16xf32>,
    %12 = vector.extract_strided_slice %5 {offsets = [0, 48], sizes = [4, 16], strides = [1, 1]} : vector<4x256xf32> to vector<4x16xf32>
    %c0_10 = arith.constant 0 : index
    %c129 = arith.constant 129 : index
    %13 = vector.load %arg9[%c0_10, %c129] : memref<4x640xf32, #tpu.memory_space<vmem>>, vector<4x16xf32>
    tpu.vector_store %arg9[%c0_10, %c129], %12 {strides = array<i32>} : memref<4x640xf32, #tpu.memory_space<vmem>>, vector<4x16xf32>,
    %14 = vector.extract_strided_slice %5 {offsets = [0, 64], sizes = [4, 16], strides = [1, 1]} : vector<4x256xf32> to vector<4x16xf32>
    %c0_11 = arith.constant 0 : index
    %c161 = arith.constant 161 : index
    %15 = vector.load %arg9[%c0_11, %c161] : memref<4x640xf32, #tpu.memory_space<vmem>>, vector<4x16xf32>
    tpu.vector_store %arg9[%c0_11, %c161], %14 {strides = array<i32>} : memref<4x640xf32, #tpu.memory_space<vmem>>, vector<4x16xf32>,
    %16 = vector.extract_strided_slice %5 {offsets = [0, 80], sizes = [4, 16], strides = [1, 1]} : vector<4x256xf32> to vector<4x16xf32>
    %c0_12 = arith.constant 0 : index
    %c193 = arith.constant 193 : index
    %17 = vector.load %arg9[%c0_12, %c193] : memref<4x640xf32, #tpu.memory_space<vmem>>, vector<4x16xf32>
    tpu.vector_store %arg9[%c0_12, %c193], %16 {strides = array<i32>} : memref<4x640xf32, #tpu.memory_space<vmem>>, vector<4x16xf32>,
    %18 = vector.extract_strided_slice %5 {offsets = [0, 96], sizes = [4, 16], strides = [1, 1]} : vector<4x256xf32> to vector<4x16xf32>
    %c0_13 = arith.constant 0 : index
    %c225 = arith.constant 225 : index
    %19 = vector.load %arg9[%c0_13, %c225] : memref<4x640xf32, #tpu.memory_space<vmem>>, vector<4x16xf32>
    tpu.vector_store %arg9[%c0_13, %c225], %18 {strides = array<i32>} : memref<4x640xf32, #tpu.memory_space<vmem>>, vector<4x16xf32>,
    %20 = vector.extract_strided_slice %5 {offsets = [0, 112], sizes = [4, 16], strides = [1, 1]} : vector<4x256xf32> to vector<4x16xf32>
    %c0_14 = arith.constant 0 : index
    %c257 = arith.constant 257 : index
    %21 = vector.load %arg9[%c0_14, %c257] : memref<4x640xf32, #tpu.memory_space<vmem>>, vector<4x16xf32>
    tpu.vector_store %arg9[%c0_14, %c257], %20 {strides = array<i32>} : memref<4x640xf32, #tpu.memory_space<vmem>>, vector<4x16xf32>,
    %22 = vector.extract_strided_slice %5 {offsets = [0, 128], sizes = [4, 16], strides = [1, 1]} : vector<4x256xf32> to vector<4x16xf32>
    %c0_15 = arith.constant 0 : index
    %c289 = arith.constant 289 : index
    %23 = vector.load %arg9[%c0_15, %c289] : memref<4x640xf32, #tpu.memory_space<vmem>>, vector<4x16xf32>
    tpu.vector_store %arg9[%c0_15, %c289], %22 {strides = array<i32>} : memref<4x640xf32, #tpu.memory_space<vmem>>, vector<4x16xf32>,
    %24 = vector.extract_strided_slice %5 {offsets = [0, 144], sizes = [4, 16], strides = [1, 1]} : vector<4x256xf32> to vector<4x16xf32>
    %c0_16 = arith.constant 0 : index
    %c321 = arith.constant 321 : index
    %25 = vector.load %arg9[%c0_16, %c321] : memref<4x640xf32, #tpu.memory_space<vmem>>, vector<4x16xf32>
    tpu.vector_store %arg9[%c0_16, %c321], %24 {strides = array<i32>} : memref<4x640xf32, #tpu.memory_space<vmem>>, vector<4x16xf32>,
    %26 = vector.extract_strided_slice %5 {offsets = [0, 160], sizes = [4, 16], strides = [1, 1]} : vector<4x256xf32> to vector<4x16xf32>
    %c0_17 = arith.constant 0 : index
    %c353 = arith.constant 353 : index
    %27 = vector.load %arg9[%c0_17, %c353] : memref<4x640xf32, #tpu.memory_space<vmem>>, vector<4x16xf32>
    tpu.vector_store %arg9[%c0_17, %c353], %26 {strides = array<i32>} : memref<4x640xf32, #tpu.memory_space<vmem>>, vector<4x16xf32>,
    %28 = vector.extract_strided_slice %5 {offsets = [0, 176], sizes = [4, 16], strides = [1, 1]} : vector<4x256xf32> to vector<4x16xf32>
    %c0_18 = arith.constant 0 : index
    %c385 = arith.constant 385 : index
    %29 = vector.load %arg9[%c0_18, %c385] : memref<4x640xf32, #tpu.memory_space<vmem>>, vector<4x16xf32>
    tpu.vector_store %arg9[%c0_18, %c385], %28 {strides = array<i32>} : memref<4x640xf32, #tpu.memory_space<vmem>>, vector<4x16xf32>,
    %30 = vector.extract_strided_slice %5 {offsets = [0, 192], sizes = [4, 16], strides = [1, 1]} : vector<4x256xf32> to vector<4x16xf32>
    %c0_19 = arith.constant 0 : index
    %c417 = arith.constant 417 : index
    %31 = vector.load %arg9[%c0_19, %c417] : memref<4x640xf32, #tpu.memory_space<vmem>>, vector<4x16xf32>
    tpu.vector_store %arg9[%c0_19, %c417], %30 {strides = array<i32>} : memref<4x640xf32, #tpu.memory_space<vmem>>, vector<4x16xf32>,
    %32 = vector.extract_strided_slice %5 {offsets = [0, 208], sizes = [4, 16], strides = [1, 1]} : vector<4x256xf32> to vector<4x16xf32>
    %c0_20 = arith.constant 0 : index
    %c449 = arith.constant 449 : index
    %33 = vector.load %arg9[%c0_20, %c449] : memref<4x640xf32, #tpu.memory_space<vmem>>, vector<4x16xf32>
    tpu.vector_store %arg9[%c0_20, %c449], %32 {strides = array<i32>} : memref<4x640xf32, #tpu.memory_space<vmem>>, vector<4x16xf32>,
    %34 = vector.extract_strided_slice %5 {offsets = [0, 224], sizes = [4, 16], strides = [1, 1]} : vector<4x256xf32> to vector<4x16xf32>
    %c0_21 = arith.constant 0 : index
    %c481 = arith.constant 481 : index
    %35 = vector.load %arg9[%c0_21, %c481] : memref<4x640xf32, #tpu.memory_space<vmem>>, vector<4x16xf32>
    tpu.vector_store %arg9[%c0_21, %c481], %34 {strides = array<i32>} : memref<4x640xf32, #tpu.memory_space<vmem>>, vector<4x16xf32>,
    %36 = vector.extract_strided_slice %5 {offsets = [0, 240], sizes = [4, 16], strides = [1, 1]} : vector<4x256xf32> to vector<4x16xf32>
    %c0_22 = arith.constant 0 : index
    %c513 = arith.constant 513 : index
    %37 = vector.load %arg9[%c0_22, %c513] : memref<4x640xf32, #tpu.memory_space<vmem>>, vector<4x16xf32>
    tpu.vector_store %arg9[%c0_22, %c513], %36 {strides = array<i32>} : memref<4x640xf32, #tpu.memory_space<vmem>>, vector<4x16xf32>,
    %38 = tpu.iota {dimensions = array<i32: 1>} : vector<1x512xi32>
    %c32_i32 = arith.constant 32 : i32
    %c0_i32 = arith.constant 0 : i32
    %39 = arith.cmpi eq, %c32_i32, %c0_i32 : i32
    %c1_i32 = arith.constant 1 : i32
    %40 = arith.select %39, %c1_i32, %c32_i32 : i32
    %41 = vector.broadcast %40 : i32 to vector<1x512xi32>
    %42 = arith.remsi %38, %41 : vector<1x512xi32>
    %c0_i32_23 = arith.constant 0 : i32
    %43 = vector.broadcast %c0_i32_23 : i32 to vector<1x512xi32>
    %44 = arith.cmpi ne, %42, %43 : vector<1x512xi32>
    %c0_i32_24 = arith.constant 0 : i32
    %45 = vector.broadcast %c0_i32_24 : i32 to vector<1x512xi32>
    %46 = arith.cmpi slt, %42, %45 : vector<1x512xi32>
    %c0_i32_25 = arith.constant 0 : i32
    %47 = arith.cmpi slt, %40, %c0_i32_25 : i32
    %48 = vector.broadcast %47 : i1 to vector<1x512xi1>
    %49 = vector.broadcast %48 : vector<1x512xi1> to vector<1x512xi1>
    %50 = arith.xori %46, %49 : vector<1x512xi1>
    %51 = arith.andi %50, %44 : vector<1x512xi1>
    %52 = vector.broadcast %40 : i32 to vector<1x512xi32>
    %53 = arith.addi %42, %52 : vector<1x512xi32>
    %54 = arith.select %51, %53, %42 : vector<1x512xi1>, vector<1x512xi32>
    %c16_i32 = arith.constant 16 : i32
    %55 = vector.broadcast %c16_i32 : i32 to vector<1x512xi32>
    %56 = arith.cmpi slt, %54, %55 : vector<1x512xi32>
    %c0_26 = arith.constant 0 : index
    %c0_27 = arith.constant 0 : index
    %57 = vector.load %arg9[%c0_26, %c0_27] : memref<4x640xf32, #tpu.memory_space<vmem>>, vector<4x640xf32>
    %58 = arith.truncf %57 : vector<4x640xf32> to vector<4x640xbf16>
    %cst_28 = arith.constant 0.000000e+00 : f32
    %59 = vector.broadcast %cst_28 : f32 to vector<32x512xf32>
    %60 = vector.extract_strided_slice %58 {offsets = [0, 0], sizes = [4, 512], strides = [1, 1]} : vector<4x640xbf16> to vector<4x512xbf16>
    %c0_29 = arith.constant 0 : index
    %c0_30 = arith.constant 0 : index
    %c0_31 = arith.constant 0 : index
    %61 = vector.load %arg2[%c0_29, %c0_30, %c0_31] : memref<9x32x4xbf16, #tpu.memory_space<vmem>>, vector<1x32x4xbf16>
    %62 = vector.shape_cast %61 : vector<1x32x4xbf16> to vector<32x4xbf16>
    %cst_32 = arith.constant dense<0.000000e+00> : vector<32x512xf32>
    %63 = tpu.matmul %62, %60, %cst_32 {dimension_numbers = #tpu.dot_dimension_numbers<[1], [0], [0], [1], [0, 0, 1, 1], [], []>} : vector<32x4xbf16>, vector<4x512xbf16>, vector<32x512xf32> -> vector<32x512xf32>
    %64 = arith.addf %59, %63 : vector<32x512xf32>
    %65 = vector.extract_strided_slice %58 {offsets = [0, 1], sizes = [4, 512], strides = [1, 1]} : vector<4x640xbf16> to vector<4x512xbf16>
    %c1 = arith.constant 1 : index
    %c0_33 = arith.constant 0 : index
    %c0_34 = arith.constant 0 : index
    %66 = vector.load %arg2[%c1, %c0_33, %c0_34] : memref<9x32x4xbf16, #tpu.memory_space<vmem>>, vector<1x32x4xbf16>
    %67 = vector.shape_cast %66 : vector<1x32x4xbf16> to vector<32x4xbf16>
    %cst_35 = arith.constant dense<0.000000e+00> : vector<32x512xf32>
    %68 = tpu.matmul %67, %65, %cst_35 {dimension_numbers = #tpu.dot_dimension_numbers<[1], [0], [0], [1], [0, 0, 1, 1], [], []>} : vector<32x4xbf16>, vector<4x512xbf16>, vector<32x512xf32> -> vector<32x512xf32>
    %69 = arith.addf %64, %68 : vector<32x512xf32>
    %70 = vector.extract_strided_slice %58 {offsets = [0, 2], sizes = [4, 512], strides = [1, 1]} : vector<4x640xbf16> to vector<4x512xbf16>
    %c2 = arith.constant 2 : index
    %c0_36 = arith.constant 0 : index
    %c0_37 = arith.constant 0 : index
    %71 = vector.load %arg2[%c2, %c0_36, %c0_37] : memref<9x32x4xbf16, #tpu.memory_space<vmem>>, vector<1x32x4xbf16>
    %72 = vector.shape_cast %71 : vector<1x32x4xbf16> to vector<32x4xbf16>
    %cst_38 = arith.constant dense<0.000000e+00> : vector<32x512xf32>
    %73 = tpu.matmul %72, %70, %cst_38 {dimension_numbers = #tpu.dot_dimension_numbers<[1], [0], [0], [1], [0, 0, 1, 1], [], []>} : vector<32x4xbf16>, vector<4x512xbf16>, vector<32x512xf32> -> vector<32x512xf32>
    %74 = arith.addf %69, %73 : vector<32x512xf32>
    %75 = vector.extract_strided_slice %58 {offsets = [0, 32], sizes = [4, 512], strides = [1, 1]} : vector<4x640xbf16> to vector<4x512xbf16>
    %c3 = arith.constant 3 : index
    %c0_39 = arith.constant 0 : index
    %c0_40 = arith.constant 0 : index
    %76 = vector.load %arg2[%c3, %c0_39, %c0_40] : memref<9x32x4xbf16, #tpu.memory_space<vmem>>, vector<1x32x4xbf16>
    %77 = vector.shape_cast %76 : vector<1x32x4xbf16> to vector<32x4xbf16>
    %cst_41 = arith.constant dense<0.000000e+00> : vector<32x512xf32>
    %78 = tpu.matmul %77, %75, %cst_41 {dimension_numbers = #tpu.dot_dimension_numbers<[1], [0], [0], [1], [0, 0, 1, 1], [], []>} : vector<32x4xbf16>, vector<4x512xbf16>, vector<32x512xf32> -> vector<32x512xf32>
    %79 = arith.addf %74, %78 : vector<32x512xf32>
    %80 = vector.extract_strided_slice %58 {offsets = [0, 33], sizes = [4, 512], strides = [1, 1]} : vector<4x640xbf16> to vector<4x512xbf16>
    %c4 = arith.constant 4 : index
    %c0_42 = arith.constant 0 : index
    %c0_43 = arith.constant 0 : index
    %81 = vector.load %arg2[%c4, %c0_42, %c0_43] : memref<9x32x4xbf16, #tpu.memory_space<vmem>>, vector<1x32x4xbf16>
    %82 = vector.shape_cast %81 : vector<1x32x4xbf16> to vector<32x4xbf16>
    %cst_44 = arith.constant dense<0.000000e+00> : vector<32x512xf32>
    %83 = tpu.matmul %82, %80, %cst_44 {dimension_numbers = #tpu.dot_dimension_numbers<[1], [0], [0], [1], [0, 0, 1, 1], [], []>} : vector<32x4xbf16>, vector<4x512xbf16>, vector<32x512xf32> -> vector<32x512xf32>
    %84 = arith.addf %79, %83 : vector<32x512xf32>
    %85 = vector.extract_strided_slice %58 {offsets = [0, 34], sizes = [4, 512], strides = [1, 1]} : vector<4x640xbf16> to vector<4x512xbf16>
    %c5 = arith.constant 5 : index
    %c0_45 = arith.constant 0 : index
    %c0_46 = arith.constant 0 : index
    %86 = vector.load %arg2[%c5, %c0_45, %c0_46] : memref<9x32x4xbf16, #tpu.memory_space<vmem>>, vector<1x32x4xbf16>
    %87 = vector.shape_cast %86 : vector<1x32x4xbf16> to vector<32x4xbf16>
    %cst_47 = arith.constant dense<0.000000e+00> : vector<32x512xf32>
    %88 = tpu.matmul %87, %85, %cst_47 {dimension_numbers = #tpu.dot_dimension_numbers<[1], [0], [0], [1], [0, 0, 1, 1], [], []>} : vector<32x4xbf16>, vector<4x512xbf16>, vector<32x512xf32> -> vector<32x512xf32>
    %89 = arith.addf %84, %88 : vector<32x512xf32>
    %90 = vector.extract_strided_slice %58 {offsets = [0, 64], sizes = [4, 512], strides = [1, 1]} : vector<4x640xbf16> to vector<4x512xbf16>
    %c6 = arith.constant 6 : index
    %c0_48 = arith.constant 0 : index
    %c0_49 = arith.constant 0 : index
    %91 = vector.load %arg2[%c6, %c0_48, %c0_49] : memref<9x32x4xbf16, #tpu.memory_space<vmem>>, vector<1x32x4xbf16>
    %92 = vector.shape_cast %91 : vector<1x32x4xbf16> to vector<32x4xbf16>
    %cst_50 = arith.constant dense<0.000000e+00> : vector<32x512xf32>
    %93 = tpu.matmul %92, %90, %cst_50 {dimension_numbers = #tpu.dot_dimension_numbers<[1], [0], [0], [1], [0, 0, 1, 1], [], []>} : vector<32x4xbf16>, vector<4x512xbf16>, vector<32x512xf32> -> vector<32x512xf32>
    %94 = arith.addf %89, %93 : vector<32x512xf32>
    %95 = vector.extract_strided_slice %58 {offsets = [0, 65], sizes = [4, 512], strides = [1, 1]} : vector<4x640xbf16> to vector<4x512xbf16>
    %c7 = arith.constant 7 : index
    %c0_51 = arith.constant 0 : index
    %c0_52 = arith.constant 0 : index
    %96 = vector.load %arg2[%c7, %c0_51, %c0_52] : memref<9x32x4xbf16, #tpu.memory_space<vmem>>, vector<1x32x4xbf16>
    %97 = vector.shape_cast %96 : vector<1x32x4xbf16> to vector<32x4xbf16>
    %cst_53 = arith.constant dense<0.000000e+00> : vector<32x512xf32>
    %98 = tpu.matmul %97, %95, %cst_53 {dimension_numbers = #tpu.dot_dimension_numbers<[1], [0], [0], [1], [0, 0, 1, 1], [], []>} : vector<32x4xbf16>, vector<4x512xbf16>, vector<32x512xf32> -> vector<32x512xf32>
    %99 = arith.addf %94, %98 : vector<32x512xf32>
    %100 = vector.extract_strided_slice %58 {offsets = [0, 66], sizes = [4, 512], strides = [1, 1]} : vector<4x640xbf16> to vector<4x512xbf16>
    %c8 = arith.constant 8 : index
    %c0_54 = arith.constant 0 : index
    %c0_55 = arith.constant 0 : index
    %101 = vector.load %arg2[%c8, %c0_54, %c0_55] : memref<9x32x4xbf16, #tpu.memory_space<vmem>>, vector<1x32x4xbf16>
    %102 = vector.shape_cast %101 : vector<1x32x4xbf16> to vector<32x4xbf16>
    %cst_56 = arith.constant dense<0.000000e+00> : vector<32x512xf32>
    %103 = tpu.matmul %102, %100, %cst_56 {dimension_numbers = #tpu.dot_dimension_numbers<[1], [0], [0], [1], [0, 0, 1, 1], [], []>} : vector<32x4xbf16>, vector<4x512xbf16>, vector<32x512xf32> -> vector<32x512xf32>
    %104 = arith.addf %99, %103 : vector<32x512xf32>
    %c0_57 = arith.constant 0 : index
    %c0_58 = arith.constant 0 : index
    %105 = vector.load %arg3[%c0_57, %c0_58] : memref<32x1xf32, #tpu.memory_space<vmem>>, vector<32x1xf32>
    %106 = vector.broadcast %105 : vector<32x1xf32> to vector<32x512xf32>
    %107 = arith.addf %104, %106 : vector<32x512xf32>
    %cst_59 = arith.constant 0.000000e+00 : f32
    %108 = vector.broadcast %cst_59 : f32 to vector<32x512xf32>
    %109 = arith.cmpf ogt, %107, %108 : vector<32x512xf32>
    %c0_60 = arith.constant 0 : index
    %c0_61 = arith.constant 0 : index
    %110 = vector.load %arg4[%c0_60, %c0_61] : memref<32x1xf32, #tpu.memory_space<vmem>>, vector<32x1xf32>
    %111 = vector.broadcast %110 : vector<32x1xf32> to vector<32x512xf32>
    %112 = arith.mulf %111, %107 : vector<32x512xf32>
    %113 = arith.select %109, %107, %112 : vector<32x512xi1>, vector<32x512xf32>
    %cst_62 = arith.constant 0.000000e+00 : f32
    %114 = vector.shape_cast %56 : vector<1x512xi1> to vector<1x512xi1>
    %115 = vector.broadcast %114 : vector<1x512xi1> to vector<32x512xi1>
    %116 = vector.broadcast %cst_62 : f32 to vector<32x512xf32>
    %117 = arith.select %115, %113, %116 : vector<32x512xi1>, vector<32x512xf32>
    %c0_63 = arith.constant 0 : index
    %c33_64 = arith.constant 33 : index
    %118 = vector.load %arg10[%c0_63, %c33_64] : memref<32x640xf32, #tpu.memory_space<vmem>>, vector<32x512xf32>
    tpu.vector_store %arg10[%c0_63, %c33_64], %117 {strides = array<i32>} : memref<32x640xf32, #tpu.memory_space<vmem>>, vector<32x512xf32>,
    %c0_65 = arith.constant 0 : index
    %c0_66 = arith.constant 0 : index
    %119 = vector.load %arg10[%c0_65, %c0_66] : memref<32x640xf32, #tpu.memory_space<vmem>>, vector<32x640xf32>
    %120 = arith.truncf %119 : vector<32x640xf32> to vector<32x640xbf16>
    %cst_67 = arith.constant 0.000000e+00 : f32
    %121 = vector.broadcast %cst_67 : f32 to vector<32x512xf32>
    %122 = vector.extract_strided_slice %120 {offsets = [0, 0], sizes = [32, 512], strides = [1, 1]} : vector<32x640xbf16> to vector<32x512xbf16>
    %c0_68 = arith.constant 0 : index
    %c0_69 = arith.constant 0 : index
    %c0_70 = arith.constant 0 : index
    %123 = vector.load %arg5[%c0_68, %c0_69, %c0_70] : memref<9x32x32xbf16, #tpu.memory_space<vmem>>, vector<1x32x32xbf16>
    %124 = vector.shape_cast %123 : vector<1x32x32xbf16> to vector<32x32xbf16>
    %cst_71 = arith.constant dense<0.000000e+00> : vector<32x512xf32>
    %125 = tpu.matmul %124, %122, %cst_71 {dimension_numbers = #tpu.dot_dimension_numbers<[1], [0], [0], [1], [0, 0, 1, 1], [], []>} : vector<32x32xbf16>, vector<32x512xbf16>, vector<32x512xf32> -> vector<32x512xf32>
    %126 = arith.addf %121, %125 : vector<32x512xf32>
    %127 = vector.extract_strided_slice %120 {offsets = [0, 1], sizes = [32, 512], strides = [1, 1]} : vector<32x640xbf16> to vector<32x512xbf16>
    %c1_72 = arith.constant 1 : index
    %c0_73 = arith.constant 0 : index
    %c0_74 = arith.constant 0 : index
    %128 = vector.load %arg5[%c1_72, %c0_73, %c0_74] : memref<9x32x32xbf16, #tpu.memory_space<vmem>>, vector<1x32x32xbf16>
    %129 = vector.shape_cast %128 : vector<1x32x32xbf16> to vector<32x32xbf16>
    %cst_75 = arith.constant dense<0.000000e+00> : vector<32x512xf32>
    %130 = tpu.matmul %129, %127, %cst_75 {dimension_numbers = #tpu.dot_dimension_numbers<[1], [0], [0], [1], [0, 0, 1, 1], [], []>} : vector<32x32xbf16>, vector<32x512xbf16>, vector<32x512xf32> -> vector<32x512xf32>
    %131 = arith.addf %126, %130 : vector<32x512xf32>
    %132 = vector.extract_strided_slice %120 {offsets = [0, 2], sizes = [32, 512], strides = [1, 1]} : vector<32x640xbf16> to vector<32x512xbf16>
    %c2_76 = arith.constant 2 : index
    %c0_77 = arith.constant 0 : index
    %c0_78 = arith.constant 0 : index
    %133 = vector.load %arg5[%c2_76, %c0_77, %c0_78] : memref<9x32x32xbf16, #tpu.memory_space<vmem>>, vector<1x32x32xbf16>
    %134 = vector.shape_cast %133 : vector<1x32x32xbf16> to vector<32x32xbf16>
    %cst_79 = arith.constant dense<0.000000e+00> : vector<32x512xf32>
    %135 = tpu.matmul %134, %132, %cst_79 {dimension_numbers = #tpu.dot_dimension_numbers<[1], [0], [0], [1], [0, 0, 1, 1], [], []>} : vector<32x32xbf16>, vector<32x512xbf16>, vector<32x512xf32> -> vector<32x512xf32>
    %136 = arith.addf %131, %135 : vector<32x512xf32>
    %137 = vector.extract_strided_slice %120 {offsets = [0, 32], sizes = [32, 512], strides = [1, 1]} : vector<32x640xbf16> to vector<32x512xbf16>
    %c3_80 = arith.constant 3 : index
    %c0_81 = arith.constant 0 : index
    %c0_82 = arith.constant 0 : index
    %138 = vector.load %arg5[%c3_80, %c0_81, %c0_82] : memref<9x32x32xbf16, #tpu.memory_space<vmem>>, vector<1x32x32xbf16>
    %139 = vector.shape_cast %138 : vector<1x32x32xbf16> to vector<32x32xbf16>
    %cst_83 = arith.constant dense<0.000000e+00> : vector<32x512xf32>
    %140 = tpu.matmul %139, %137, %cst_83 {dimension_numbers = #tpu.dot_dimension_numbers<[1], [0], [0], [1], [0, 0, 1, 1], [], []>} : vector<32x32xbf16>, vector<32x512xbf16>, vector<32x512xf32> -> vector<32x512xf32>
    %141 = arith.addf %136, %140 : vector<32x512xf32>
    %142 = vector.extract_strided_slice %120 {offsets = [0, 33], sizes = [32, 512], strides = [1, 1]} : vector<32x640xbf16> to vector<32x512xbf16>
    %c4_84 = arith.constant 4 : index
    %c0_85 = arith.constant 0 : index
    %c0_86 = arith.constant 0 : index
    %143 = vector.load %arg5[%c4_84, %c0_85, %c0_86] : memref<9x32x32xbf16, #tpu.memory_space<vmem>>, vector<1x32x32xbf16>
    %144 = vector.shape_cast %143 : vector<1x32x32xbf16> to vector<32x32xbf16>
    %cst_87 = arith.constant dense<0.000000e+00> : vector<32x512xf32>
    %145 = tpu.matmul %144, %142, %cst_87 {dimension_numbers = #tpu.dot_dimension_numbers<[1], [0], [0], [1], [0, 0, 1, 1], [], []>} : vector<32x32xbf16>, vector<32x512xbf16>, vector<32x512xf32> -> vector<32x512xf32>
    %146 = arith.addf %141, %145 : vector<32x512xf32>
    %147 = vector.extract_strided_slice %120 {offsets = [0, 34], sizes = [32, 512], strides = [1, 1]} : vector<32x640xbf16> to vector<32x512xbf16>
    %c5_88 = arith.constant 5 : index
    %c0_89 = arith.constant 0 : index
    %c0_90 = arith.constant 0 : index
    %148 = vector.load %arg5[%c5_88, %c0_89, %c0_90] : memref<9x32x32xbf16, #tpu.memory_space<vmem>>, vector<1x32x32xbf16>
    %149 = vector.shape_cast %148 : vector<1x32x32xbf16> to vector<32x32xbf16>
    %cst_91 = arith.constant dense<0.000000e+00> : vector<32x512xf32>
    %150 = tpu.matmul %149, %147, %cst_91 {dimension_numbers = #tpu.dot_dimension_numbers<[1], [0], [0], [1], [0, 0, 1, 1], [], []>} : vector<32x32xbf16>, vector<32x512xbf16>, vector<32x512xf32> -> vector<32x512xf32>
    %151 = arith.addf %146, %150 : vector<32x512xf32>
    %152 = vector.extract_strided_slice %120 {offsets = [0, 64], sizes = [32, 512], strides = [1, 1]} : vector<32x640xbf16> to vector<32x512xbf16>
    %c6_92 = arith.constant 6 : index
    %c0_93 = arith.constant 0 : index
    %c0_94 = arith.constant 0 : index
    %153 = vector.load %arg5[%c6_92, %c0_93, %c0_94] : memref<9x32x32xbf16, #tpu.memory_space<vmem>>, vector<1x32x32xbf16>
    %154 = vector.shape_cast %153 : vector<1x32x32xbf16> to vector<32x32xbf16>
    %cst_95 = arith.constant dense<0.000000e+00> : vector<32x512xf32>
    %155 = tpu.matmul %154, %152, %cst_95 {dimension_numbers = #tpu.dot_dimension_numbers<[1], [0], [0], [1], [0, 0, 1, 1], [], []>} : vector<32x32xbf16>, vector<32x512xbf16>, vector<32x512xf32> -> vector<32x512xf32>
    %156 = arith.addf %151, %155 : vector<32x512xf32>
    %157 = vector.extract_strided_slice %120 {offsets = [0, 65], sizes = [32, 512], strides = [1, 1]} : vector<32x640xbf16> to vector<32x512xbf16>
    %c7_96 = arith.constant 7 : index
    %c0_97 = arith.constant 0 : index
    %c0_98 = arith.constant 0 : index
    %158 = vector.load %arg5[%c7_96, %c0_97, %c0_98] : memref<9x32x32xbf16, #tpu.memory_space<vmem>>, vector<1x32x32xbf16>
    %159 = vector.shape_cast %158 : vector<1x32x32xbf16> to vector<32x32xbf16>
    %cst_99 = arith.constant dense<0.000000e+00> : vector<32x512xf32>
    %160 = tpu.matmul %159, %157, %cst_99 {dimension_numbers = #tpu.dot_dimension_numbers<[1], [0], [0], [1], [0, 0, 1, 1], [], []>} : vector<32x32xbf16>, vector<32x512xbf16>, vector<32x512xf32> -> vector<32x512xf32>
    %161 = arith.addf %156, %160 : vector<32x512xf32>
    %162 = vector.extract_strided_slice %120 {offsets = [0, 66], sizes = [32, 512], strides = [1, 1]} : vector<32x640xbf16> to vector<32x512xbf16>
    %c8_100 = arith.constant 8 : index
    %c0_101 = arith.constant 0 : index
    %c0_102 = arith.constant 0 : index
    %163 = vector.load %arg5[%c8_100, %c0_101, %c0_102] : memref<9x32x32xbf16, #tpu.memory_space<vmem>>, vector<1x32x32xbf16>
    %164 = vector.shape_cast %163 : vector<1x32x32xbf16> to vector<32x32xbf16>
    %cst_103 = arith.constant dense<0.000000e+00> : vector<32x512xf32>
    %165 = tpu.matmul %164, %162, %cst_103 {dimension_numbers = #tpu.dot_dimension_numbers<[1], [0], [0], [1], [0, 0, 1, 1], [], []>} : vector<32x32xbf16>, vector<32x512xbf16>, vector<32x512xf32> -> vector<32x512xf32>
    %166 = arith.addf %161, %165 : vector<32x512xf32>
    %c0_104 = arith.constant 0 : index
    %c0_105 = arith.constant 0 : index
    %167 = vector.load %arg6[%c0_104, %c0_105] : memref<32x1xf32, #tpu.memory_space<vmem>>, vector<32x1xf32>
    %168 = vector.broadcast %167 : vector<32x1xf32> to vector<32x512xf32>
    %169 = arith.addf %166, %168 : vector<32x512xf32>
    %cst_106 = arith.constant 0.000000e+00 : f32
    %170 = vector.broadcast %cst_106 : f32 to vector<32x512xf32>
    %171 = arith.cmpf ogt, %169, %170 : vector<32x512xf32>
    %c0_107 = arith.constant 0 : index
    %c0_108 = arith.constant 0 : index
    %172 = vector.load %arg7[%c0_107, %c0_108] : memref<32x1xf32, #tpu.memory_space<vmem>>, vector<32x1xf32>
    %173 = vector.broadcast %172 : vector<32x1xf32> to vector<32x512xf32>
    %174 = arith.mulf %173, %169 : vector<32x512xf32>
    %175 = arith.select %171, %169, %174 : vector<32x512xi1>, vector<32x512xf32>
    %c0_109 = arith.constant 0 : index
    %c0_110 = arith.constant 0 : index
    %c0_111 = arith.constant 0 : index
    %176 = vector.load %arg8[%c0_109, %c0_110, %c0_111] : memref<1x32x512xf32, #tpu.memory_space<vmem>>, vector<1x32x512xf32>
    %177 = vector.shape_cast %176 : vector<1x32x512xf32> to vector<32x512xf32>
    %178 = vector.shape_cast %175 : vector<32x512xf32> to vector<1x32x512xf32>
    tpu.vector_store %arg8[%c0_109, %c0_110, %c0_111], %178 {strides = array<i32>} : memref<1x32x512xf32, #tpu.memory_space<vmem>>, vector<1x32x512xf32>,
    return
  }
  func.func @transform_0(%arg0: i32) -> (i32, i32, i32) {
    %c0_i32 = arith.constant 0 : i32
    %c0_i32_0 = arith.constant 0 : i32
    %c0_i32_1 = arith.constant 0 : i32
    return %arg0, %c0_i32, %c0_i32_0 : i32, i32, i32
  }
  func.func @transform_1(%arg0: i32) -> (i32, i32, i32) {
    %c0_i32 = arith.constant 0 : i32
    %c0_i32_0 = arith.constant 0 : i32
    %c0_i32_1 = arith.constant 0 : i32
    %c0_i32_2 = arith.constant 0 : i32
    return %c0_i32, %c0_i32_0, %c0_i32_1 : i32, i32, i32
  }
  func.func @transform_2(%arg0: i32) -> (i32, i32) {
    %c0_i32 = arith.constant 0 : i32
    %c0_i32_0 = arith.constant 0 : i32
    %c0_i32_1 = arith.constant 0 : i32
    return %c0_i32, %c0_i32_0 : i32, i32
  }
  func.func @transform_3(%arg0: i32) -> (i32, i32) {
    %c0_i32 = arith.constant 0 : i32
    %c0_i32_0 = arith.constant 0 : i32
    %c0_i32_1 = arith.constant 0 : i32
    return %c0_i32, %c0_i32_0 : i32, i32
  }
  func.func @transform_4(%arg0: i32) -> (i32, i32, i32) {
    %c0_i32 = arith.constant 0 : i32
    %c0_i32_0 = arith.constant 0 : i32
    %c0_i32_1 = arith.constant 0 : i32
    %c0_i32_2 = arith.constant 0 : i32
    return %c0_i32, %c0_i32_0, %c0_i32_1 : i32, i32, i32
  }
  func.func @transform_5(%arg0: i32) -> (i32, i32) {
    %c0_i32 = arith.constant 0 : i32
    %c0_i32_0 = arith.constant 0 : i32
    %c0_i32_1 = arith.constant 0 : i32
    return %c0_i32, %c0_i32_0 : i32, i32
  }
  func.func @transform_6(%arg0: i32) -> (i32, i32) {
    %c0_i32 = arith.constant 0 : i32
    %c0_i32_0 = arith.constant 0 : i32
    %c0_i32_1 = arith.constant 0 : i32
    return %c0_i32, %c0_i32_0 : i32, i32
  }
  func.func @transform_7(%arg0: i32) -> (i32, i32, i32) {
    %c0_i32 = arith.constant 0 : i32
    %c0_i32_0 = arith.constant 0 : i32
    %c0_i32_1 = arith.constant 0 : i32
    return %arg0, %c0_i32, %c0_i32_0 : i32, i32, i32
  }
}

</mosaic_0001>

<llo_original>
// kernel: fcnn_forward.1
$region0: #{fcnn_forward.1}
  #allocation0 [shape = 'u32[]', space=smem, size = 0x4, offset = 0x4, fixed_abs, tag = 'smem constant byte address 0x4 - core index']
  #allocation1 [shape = 'u32[144,128]{1,0:T(1,128)}', space=vmem, size = 0x12000, scoped, tag = 'internal scratch']
  #allocation2 [shape = 'f32[4,640]{1,0:T(4,128)}', space=vmem, size = 0x2800, scoped, tag = 'scratch operand']
  #allocation3 [shape = 'f32[32,640]{1,0:T(8,128)}', space=vmem, size = 0x14000, scoped, tag = 'scratch operand']
  %s0 = inlined_call_operand.vmem [shape: f32[2,4,256], index: 0, kind: input, shape index: {}]
  %s1 = inlined_call_operand.vmem [shape: bf16[9,32,4], index: 1, kind: input, shape index: {}]
  %s2 = inlined_call_operand.vmem [shape: f32[32,1], index: 2, kind: input, shape index: {}]
  %s3 = inlined_call_operand.vmem [shape: f32[32,1], index: 3, kind: input, shape index: {}]
  %s4 = inlined_call_operand.vmem [shape: bf16[9,32,32], index: 4, kind: input, shape index: {}]
  %s5 = inlined_call_operand.vmem [shape: f32[32,1], index: 5, kind: input, shape index: {}]
  %s6 = inlined_call_operand.vmem [shape: f32[32,1], index: 6, kind: input, shape index: {}]
  %s7 = inlined_call_operand.vmem [shape: f32[2,32,512], index: 7, kind: output, shape index: {}]
  %s8 = sld [smem:[#allocation0]]
  $region61: #{fcnn_forward.1} parent=0
    _
  %s10 = ssub.s32 1, %s8
  %s11 = scalar_select 0, %s10, %s8
  loop: start=0, step=1, limit=4
  $region2: #{fcnn_forward.1} parent=0 // loop_pre_header
    _
  $region3: #{fcnn_forward.1} parent=0 // loop_header
    %s13 = sphi 0, %s17
    %p14 = scmp.ge.s32.totalorder %s13, 4
    %s23 = sphi 0, %s25
    %s26 = sphi 0, %s23
    %s27 = sphi 0, %s26
    %s43 = sphi 0, %s27
    %s47 = sphi 0, %s47
    %s49 = sphi 0, %s47
    %s50 = sphi 0, %s49
    %s64 = sphi 0, %s50
    %s68 = sphi 0, %s68
    %s70 = sphi 0, %s68
    %s71 = sphi 0, %s70
    %s85 = sphi 0, %s71
    %s89 = sphi 0, %s89
    %s91 = sphi 0, %s89
    %s92 = sphi 0, %s91
    %s106 = sphi 0, %s92
    %s110 = sphi 0, %s110
    %s112 = sphi 0, %s110
    %s113 = sphi 0, %s112
    %s127 = sphi 0, %s113
    %s131 = sphi 0, %s131
    %s133 = sphi 0, %s131
    %s134 = sphi 0, %s133
    %s148 = sphi 0, %s134
    %s152 = sphi 0, %s152
    %s154 = sphi 0, %s152
    %s155 = sphi 0, %s154
    %s169 = sphi 0, %s155
    %s175 = sphi 0, %s177
    %s178 = sphi 0, %s175
    %s179 = sphi 0, %s178
    %s195 = sphi 0, %s179
  $region4: #{fcnn_forward.1} parent=0 // loop_header_branch
    %16 = sbr.rel (%p14) target = $region8
  $region5: #{fcnn_forward.1} parent=0 // loop_body
    %s18 = ssub.s32 %s13, 1
    %s19 = ssub.s32 %s13, 2
    %s20 = sadd.s32 %s13, 1
    %s21 = ssub.s32 %s13, %s20
    %p22 = scmp.eq.s32.totalorder %s21, 0
    %s24 = sadd.s32 %s23, 1
    %s25 = scalar_select %p22, %s23, %s24
    %p28 = pneg %p22
    %p29 = scmp.eq.s32.totalorder %s13, 1
    %p30 = por %p28, %p29
    %p31 = scmp.ne.s32.totalorder %s23, %s26
    %p32 = scmp.eq.s32.totalorder %s13, 0
    %p33 = por %p31, %p32
    %p34 = scmp.ne.s32.totalorder %s23, %s26
    %p35 = scmp.eq.s32.totalorder %s18, 1
    %p36 = por %p34, %p35
    %p37 = scmp.ne.s32.totalorder %s26, %s27
    %p38 = scmp.eq.s32.totalorder %s18, 0
    %p39 = por %p37, %p38
    %p40 = scmp.ne.s32.totalorder %s26, %s27
    %p41 = scmp.eq.s32.totalorder %s19, 1
    %p42 = por %p40, %p41
    %p44 = scmp.ne.s32.totalorder %s27, %s43
    %p45 = scmp.eq.s32.totalorder %s19, 0
    %p46 = por %p44, %p45
    %s48 = sadd.s32 %s47, 1
    %p51 = scmp.eq.s32.totalorder %s13, 1
    %p52 = scmp.ne.s32.totalorder %s47, %s49
    %p53 = scmp.eq.s32.totalorder %s13, 0
    %p54 = por %p52, %p53
    %p55 = scmp.ne.s32.totalorder %s47, %s49
    %p56 = scmp.eq.s32.totalorder %s18, 1
    %p57 = por %p55, %p56
    %p58 = scmp.ne.s32.totalorder %s49, %s50
    %p59 = scmp.eq.s32.totalorder %s18, 0
    %p60 = por %p58, %p59
    %p61 = scmp.ne.s32.totalorder %s49, %s50
    %p62 = scmp.eq.s32.totalorder %s19, 1
    %p63 = por %p61, %p62
    %p65 = scmp.ne.s32.totalorder %s50, %s64
    %p66 = scmp.eq.s32.totalorder %s19, 0
    %p67 = por %p65, %p66
    %s69 = sadd.s32 %s68, 1
    %p72 = scmp.eq.s32.totalorder %s13, 1
    %p73 = scmp.ne.s32.totalorder %s68, %s70
    %p74 = scmp.eq.s32.totalorder %s13, 0
    %p75 = por %p73, %p74
    %p76 = scmp.ne.s32.totalorder %s68, %s70
    %p77 = scmp.eq.s32.totalorder %s18, 1
    %p78 = por %p76, %p77
    %p79 = scmp.ne.s32.totalorder %s70, %s71
    %p80 = scmp.eq.s32.totalorder %s18, 0
    %p81 = por %p79, %p80
    %p82 = scmp.ne.s32.totalorder %s70, %s71
    %p83 = scmp.eq.s32.totalorder %s19, 1
    %p84 = por %p82, %p83
    %p86 = scmp.ne.s32.totalorder %s71, %s85
    %p87 = scmp.eq.s32.totalorder %s19, 0
    %p88 = por %p86, %p87
    %s90 = sadd.s32 %s89, 1
    %p93 = scmp.eq.s32.totalorder %s13, 1
    %p94 = scmp.ne.s32.totalorder %s89, %s91
    %p95 = scmp.eq.s32.totalorder %s13, 0
    %p96 = por %p94, %p95
    %p97 = scmp.ne.s32.totalorder %s89, %s91
    %p98 = scmp.eq.s32.totalorder %s18, 1
    %p99 = por %p97, %p98
    %p100 = scmp.ne.s32.totalorder %s91, %s92
    %p101 = scmp.eq.s32.totalorder %s18, 0
    %p102 = por %p100, %p101
    %p103 = scmp.ne.s32.totalorder %s91, %s92
    %p104 = scmp.eq.s32.totalorder %s19, 1
    %p105 = por %p103, %p104
    %p107 = scmp.ne.s32.totalorder %s92, %s106
    %p108 = scmp.eq.s32.totalorder %s19, 0
    %p109 = por %p107, %p108
    %s111 = sadd.s32 %s110, 1
    %p114 = scmp.eq.s32.totalorder %s13, 1
    %p115 = scmp.ne.s32.totalorder %s110, %s112
    %p116 = scmp.eq.s32.totalorder %s13, 0
    %p117 = por %p115, %p116
    %p118 = scmp.ne.s32.totalorder %s110, %s112
    %p119 = scmp.eq.s32.totalorder %s18, 1
    %p120 = por %p118, %p119
    %p121 = scmp.ne.s32.totalorder %s112, %s113
    %p122 = scmp.eq.s32.totalorder %s18, 0
    %p123 = por %p121, %p122
    %p124 = scmp.ne.s32.totalorder %s112, %s113
    %p125 = scmp.eq.s32.totalorder %s19, 1
    %p126 = por %p124, %p125
    %p128 = scmp.ne.s32.totalorder %s113, %s127
    %p129 = scmp.eq.s32.totalorder %s19, 0
    %p130 = por %p128, %p129
    %s132 = sadd.s32 %s131, 1
    %p135 = scmp.eq.s32.totalorder %s13, 1
    %p136 = scmp.ne.s32.totalorder %s131, %s133
    %p137 = scmp.eq.s32.totalorder %s13, 0
    %p138 = por %p136, %p137
    %p139 = scmp.ne.s32.totalorder %s131, %s133
    %p140 = scmp.eq.s32.totalorder %s18, 1
    %p141 = por %p139, %p140
    %p142 = scmp.ne.s32.totalorder %s133, %s134
    %p143 = scmp.eq.s32.totalorder %s18, 0
    %p144 = por %p142, %p143
    %p145 = scmp.ne.s32.totalorder %s133, %s134
    %p146 = scmp.eq.s32.totalorder %s19, 1
    %p147 = por %p145, %p146
    %p149 = scmp.ne.s32.totalorder %s134, %s148
    %p150 = scmp.eq.s32.totalorder %s19, 0
    %p151 = por %p149, %p150
    %s153 = sadd.s32 %s152, 1
    %p156 = scmp.eq.s32.totalorder %s13, 1
    %p157 = scmp.ne.s32.totalorder %s152, %s154
    %p158 = scmp.eq.s32.totalorder %s13, 0
    %p159 = por %p157, %p158
    %p160 = scmp.ne.s32.totalorder %s152, %s154
    %p161 = scmp.eq.s32.totalorder %s18, 1
    %p162 = por %p160, %p161
    %p163 = scmp.ne.s32.totalorder %s154, %s155
    %p164 = scmp.eq.s32.totalorder %s18, 0
    %p165 = por %p163, %p164
    %p166 = scmp.ne.s32.totalorder %s154, %s155
    %p167 = scmp.eq.s32.totalorder %s19, 1
    %p168 = por %p166, %p167
    %p170 = scmp.ne.s32.totalorder %s155, %s169
    %p171 = scmp.eq.s32.totalorder %s19, 0
    %p172 = por %p170, %p171
    %s173 = ssub.s32 %s13, %s20
    %p174 = scmp.eq.s32.totalorder %s173, 0
    %s176 = sadd.s32 %s175, 1
    %s177 = scalar_select %p174, %s175, %s176
    %p180 = pneg %p174
    %p181 = scmp.eq.s32.totalorder %s13, 1
    %p182 = por %p180, %p181
    %p183 = scmp.ne.s32.totalorder %s175, %s178
    %p184 = scmp.eq.s32.totalorder %s13, 0
    %p185 = por %p183, %p184
    %p186 = scmp.ne.s32.totalorder %s175, %s178
    %p187 = scmp.eq.s32.totalorder %s18, 1
    %p188 = por %p186, %p187
    %p189 = scmp.ne.s32.totalorder %s178, %s179
    %p190 = scmp.eq.s32.totalorder %s18, 0
    %p191 = por %p189, %p190
    %p192 = scmp.ne.s32.totalorder %s178, %s179
    %p193 = scmp.eq.s32.totalorder %s19, 1
    %p194 = por %p192, %p193
    %p196 = scmp.ne.s32.totalorder %s179, %s195
    %p197 = scmp.eq.s32.totalorder %s19, 0
    %p198 = por %p196, %p197
    %p199 = scmp.le.s32.totalorder 1, %s13
    %p200 = scmp.lt.s32.totalorder %s13, 3
    %p201 = pnand %p199, %p200
    %p202 = pneg %p201
    // Predicated region
    $region9: #{fcnn_forward.1} parent=5 // pred_check
      _
    $region10: #{fcnn_forward.1} parent=5 // pred_check_branch
      %204 = sbr.rel (%p201) target = $region12
    $region11: #{fcnn_forward.1} parent=5 // pred_region
      %s205 = ssub.s32 %s13, 1
      // Predicated region
      $region13: #{fcnn_forward.1} parent=11 // pred_check
        %p206 = pneg %p60
      $region14: #{fcnn_forward.1} parent=11 // pred_check_branch
        %208 = sbr.rel (%p206) target = $region16
      $region15: #{fcnn_forward.1} parent=11 // pred_region
        _
      $region16: #{fcnn_forward.1} parent=11 // pred_fallthru
        _
      // Predicated region
      $region17: #{fcnn_forward.1} parent=11 // pred_check
        %p209 = pneg %p81
      $region18: #{fcnn_forward.1} parent=11 // pred_check_branch
        %211 = sbr.rel (%p209) target = $region20
      $region19: #{fcnn_forward.1} parent=11 // pred_region
        _
      $region20: #{fcnn_forward.1} parent=11 // pred_fallthru
        _
      // Predicated region
      $region21: #{fcnn_forward.1} parent=11 // pred_check
        %p212 = pneg %p102
      $region22: #{fcnn_forward.1} parent=11 // pred_check_branch
        %214 = sbr.rel (%p212) target = $region24
      $region23: #{fcnn_forward.1} parent=11 // pred_region
        _
      $region24: #{fcnn_forward.1} parent=11 // pred_fallthru
        _
      // Predicated region
      $region25: #{fcnn_forward.1} parent=11 // pred_check
        %p215 = pneg %p123
      $region26: #{fcnn_forward.1} parent=11 // pred_check_branch
        %217 = sbr.rel (%p215) target = $region28
      $region27: #{fcnn_forward.1} parent=11 // pred_region
        _
      $region28: #{fcnn_forward.1} parent=11 // pred_fallthru
        _
      // Predicated region
      $region29: #{fcnn_forward.1} parent=11 // pred_check
        %p218 = pneg %p144
      $region30: #{fcnn_forward.1} parent=11 // pred_check_branch
        %220 = sbr.rel (%p218) target = $region32
      $region31: #{fcnn_forward.1} parent=11 // pred_region
        _
      $region32: #{fcnn_forward.1} parent=11 // pred_fallthru
        _
      // Predicated region
      $region33: #{fcnn_forward.1} parent=11 // pred_check
        %p221 = pneg %p165
      $region34: #{fcnn_forward.1} parent=11 // pred_check_branch
        %223 = sbr.rel (%p221) target = $region36
      $region35: #{fcnn_forward.1} parent=11 // pred_region
        _
      $region36: #{fcnn_forward.1} parent=11 // pred_fallthru
        _
    $region12: #{fcnn_forward.1} parent=5 // pred_fallthru
      _
    %p224 = scmp.lt.s32.totalorder %s13, 2
    // Predicated region
    $region37: #{fcnn_forward.1} parent=5 // pred_check
      %p225 = pneg %p224
    $region38: #{fcnn_forward.1} parent=5 // pred_check_branch
      %227 = sbr.rel (%p225) target = $region40
    $region39: #{fcnn_forward.1} parent=5 // pred_region
      // Predicated region
      $region41: #{fcnn_forward.1} parent=39 // pred_check
        %p228 = pneg %p33
      $region42: #{fcnn_forward.1} parent=39 // pred_check_branch
        %230 = sbr.rel (%p228) target = $region44
      $region43: #{fcnn_forward.1} parent=39 // pred_region
        %p231 = scmp.lt.s32.totalorder %s13, 1
        %s232 = scalar_select %p231, %s13, 1
        %s233 = smul.addr %s232, 2
        %s234 = smul.addr %s233, 4
        %s235 = scalar_lea.vmem %s0, %s234
      $region44: #{fcnn_forward.1} parent=39 // pred_fallthru
        _
    $region40: #{fcnn_forward.1} parent=5 // pred_fallthru
      _
    %p236 = scmp.le.s32.totalorder 1, %s13
    %p237 = scmp.lt.s32.totalorder %s13, 3
    %p238 = pnand %p236, %p237
    %p239 = pneg %p238
    // Predicated region
    $region45: #{fcnn_forward.1} parent=5 // pred_check
      _
    $region46: #{fcnn_forward.1} parent=5 // pred_check_branch
      %241 = sbr.rel (%p238) target = $region48
    $region47: #{fcnn_forward.1} parent=5 // pred_region
      %s242 = ssub.s32 %s13, 1
      %p243 = scmp.lt.s32.totalorder %s18, 1
      %s244 = scalar_select %p243, %s18, 1
      %s245 = smul.addr %s244, 2
      %s246 = smul.addr %s245, 4
      %s247 = scalar_lea.vmem %s0, %s246
      %p248 = pneg %p39
      %p249 = pneg %p36
      %p250 = pneg %p60
      %p251 = pneg %p57
      %p252 = pneg %p81
      %p253 = pneg %p78
      %p254 = pneg %p102
      %p255 = pneg %p99
      %p256 = pneg %p123
      %p257 = pneg %p120
      %p258 = pneg %p144
      %p259 = pneg %p141
      %p260 = pneg %p165
      %p261 = pneg %p162
      %p262 = pneg %p191
      %p263 = pneg %p188
      %p264 = scmp.lt.s32.totalorder %s18, 1
      %s265 = scalar_select %p264, %s18, 1
      %s266 = smul.addr %s265, 16
      %s267 = smul.addr %s266, 8
      %s268 = scalar_lea.vmem %s7, %s267
      %p269 = scmp.lt.s32.totalorder %s18, 1
      %s270 = scalar_select %p269, %s18, 1
      %s271 = smul.addr %s270, 2
      %s272 = smul.addr %s271, 4
      %s273 = scalar_lea.vmem %s0, %s272
      %p274 = scmp.lt.s32.totalorder %s18, 1
      %s275 = scalar_select %p274, %s18, 1
      %s276 = smul.addr %s275, 16
      %s277 = smul.addr %s276, 8
      %s278 = scalar_lea.vmem %s7, %s277
      %280 = vst [vmem:[#allocation2] sm:$0xff] 0.0
      %281 = vst [vmem:[#allocation2 + $0x8] sm:$0xff] 0.0
      %282 = vst [vmem:[#allocation2 + $0x10] sm:$0xf] 0.0
      %283 = vst [vmem:[#allocation3] sm:$0xff] 0.0
      %284 = vst [vmem:[#allocation3 + $0x8] sm:$0xff] 0.0
      %285 = vst [vmem:[#allocation3 + $0x10] sm:$0xff] 0.0
      %286 = vst [vmem:[#allocation3 + $0x18] sm:$0xff] 0.0
      %287 = vst [vmem:[#allocation3 + $0x20] sm:$0xff] 0.0
      %288 = vst [vmem:[#allocation3 + $0x28] sm:$0xff] 0.0
      %289 = vst [vmem:[#allocation3 + $0x30] sm:$0xff] 0.0
      %290 = vst [vmem:[#allocation3 + $0x38] sm:$0xff] 0.0
      %291 = vst [vmem:[#allocation3 + $0x40] sm:$0xff] 0.0
      %292 = vst [vmem:[#allocation3 + $0x48] sm:$0xff] 0.0
      %293 = vst [vmem:[#allocation3 + $0x50] sm:$0xff] 0.0
      %294 = vst [vmem:[#allocation3 + $0x58] sm:$0xff] 0.0
      %295 = vst [vmem:[#allocation3 + $0x60] sm:$0xff] 0.0
      %296 = vst [vmem:[#allocation3 + $0x68] sm:$0xff] 0.0
      %297 = vst [vmem:[#allocation3 + $0x70] sm:$0xff] 0.0
      %298 = vst [vmem:[#allocation3 + $0x78] sm:$0xff] 0.0
      %299 = vst [vmem:[#allocation3 + $0x80] sm:$0xff] 0.0
      %300 = vst [vmem:[#allocation3 + $0x88] sm:$0xff] 0.0
      %301 = vst [vmem:[#allocation3 + $0x90] sm:$0xff] 0.0
      %302 = vst [vmem:[#allocation3 + $0x98] sm:$0xff] 0.0
      %v303 = vld [vmem:[%s273] sm:$0xff]
      %305 = vrot.lane.b32.xlu0 %v303, 33
      %v306 = vpop.permute.xlu0 %305
      %vm308 = vcmask 396552
      %309 = vst.msk [vmem:[#allocation2] sm:$0xf] %vm308, %v306
      %310 = vrot.lane.b32.xlu0 %v303, 49
      %v311 = vpop.permute.xlu0 %310
      %vm313 = vcmask 658952
      %314 = vst.msk [vmem:[#allocation2] sm:$0xf] %vm313, %v311
      %315 = vrot.lane.b32.xlu0 %v303, 65
      %v316 = vpop.permute.xlu0 %315
      %vm318 = vcmask 921352
      %319 = vst.msk [vmem:[#allocation2] sm:$0xf] %vm318, %v316
      %320 = vrot.lane.b32.xlu0 %v303, 81
      %v321 = vpop.permute.xlu0 %320
      %vm323 = vcmask 134152
      %324 = vst.msk [vmem:[#allocation2 + $0x4] sm:$0xf] %vm323, %v321
      %325 = vrot.lane.b32.xlu0 %v303, 97
      %v326 = vpop.permute.xlu0 %325
      %328 = vst.msk [vmem:[#allocation2 + $0x4] sm:$0xf] %vm308, %v326
      %329 = vrot.lane.b32.xlu0 %v303, 113
      %v330 = vpop.permute.xlu0 %329
      %332 = vst.msk [vmem:[#allocation2 + $0x4] sm:$0xf] %vm313, %v330
      %333 = vrot.lane.b32.xlu0 %v303, 1
      %v334 = vpop.permute.xlu0 %333
      %336 = vst.msk [vmem:[#allocation2 + $0x4] sm:$0xf] %vm318, %v334
      %337 = vrot.lane.b32.xlu0 %v303, 17
      %v338 = vpop.permute.xlu0 %337
      %340 = vst.msk [vmem:[#allocation2 + $0x8] sm:$0xf] %vm323, %v338
      %v341 = vrot.slane %v306, 4
      %vm342 = vcmask 269312
      %v343 = vsel %vm342, %v306, %v341
      %345 = vst.msk [vmem:[#allocation2 + $0x8] sm:$0xf] %vm308, %v343
      %v346 = vrot.slane %v311, 4
      %vm347 = vcmask 400384
      %v348 = vsel %vm347, %v311, %v346
      %350 = vst.msk [vmem:[#allocation2 + $0x8] sm:$0xf] %vm313, %v348
      %v351 = vrot.slane %v316, 4
      %vm352 = vcmask 531456
      %v353 = vsel %vm352, %v316, %v351
      %355 = vst.msk [vmem:[#allocation2 + $0x8] sm:$0xf] %vm318, %v353
      %v356 = vrot.slane %v321, 4
      %358 = vst.msk [vmem:[#allocation2 + $0xc] sm:$0xf] %vm323, %v356
      %v359 = vrot.slane %v326, 4
      %361 = vst.msk [vmem:[#allocation2 + $0xc] sm:$0xf] %vm308, %v359
      %v362 = vrot.slane %v330, 4
      %364 = vst.msk [vmem:[#allocation2 + $0xc] sm:$0xf] %vm313, %v362
      %v365 = vrot.slane %v334, 4
      %vm366 = vcmask 7168
      %v367 = vsel %vm366, %v334, %v365
      %369 = vst.msk [vmem:[#allocation2 + $0xc] sm:$0xf] %vm318, %v367
      %v370 = vrot.slane %v338, 4
      %372 = vst.msk [vmem:[#allocation2 + $0x10] sm:$0xf] %vm323, %v370
      %v373 = vlaneseq
      %v374 = vand.u32 %v373, 127
      %v375 = vadd.s32 %v374, 128
      %v376 = vadd.s32 %v374, 256
      %v377 = vadd.s32 %v374, 384
      %vm378 = vcmp.lt.s32.totalorder %v374, 0
      %v379 = vsub.s32 0, %v374
      %v380 = vsel %vm378, %v379, %v374
      %v381 = vshrl.u32 %v380, 5
      %v382 = vand.u32 %v380, 31
      %v383 = vsub.s32 0, %v382
      %v384 = vsel %vm378, %v383, %v382
      %vm385 = vcmp.lt.s32.totalorder %v375, 0
      %v386 = vsub.s32 0, %v375
      %v387 = vsel %vm385, %v386, %v375
      %v388 = vshrl.u32 %v387, 5
      %v389 = vand.u32 %v387, 31
      %v390 = vsub.s32 0, %v389
      %v391 = vsel %vm385, %v390, %v389
      %vm392 = vcmp.lt.s32.totalorder %v376, 0
      %v393 = vsub.s32 0, %v376
      %v394 = vsel %vm392, %v393, %v376
      %v395 = vshrl.u32 %v394, 5
      %v396 = vand.u32 %v394, 31
      %v397 = vsub.s32 0, %v396
      %v398 = vsel %vm392, %v397, %v396
      %vm399 = vcmp.lt.s32.totalorder %v377, 0
      %v400 = vsub.s32 0, %v377
      %v401 = vsel %vm399, %v400, %v377
      %v402 = vshrl.u32 %v401, 5
      %v403 = vand.u32 %v401, 31
      %v404 = vsub.s32 0, %v403
      %v405 = vsel %vm399, %v404, %v403
      %vm406 = vcmp.ne.s32.totalorder %v384, 0
      %vm407 = vcmp.ne.s32.totalorder %v391, 0
      %vm408 = vcmp.ne.s32.totalorder %v398, 0
      %vm409 = vcmp.ne.s32.totalorder %v405, 0
      %vm410 = vcmp.lt.s32.totalorder %v384, 0
      %vm411 = vcmp.lt.s32.totalorder %v391, 0
      %vm412 = vcmp.lt.s32.totalorder %v398, 0
      %vm413 = vcmp.lt.s32.totalorder %v405, 0
      %vm414 = vmand %vm410, %vm406
      %vm415 = vmand %vm411, %vm407
      %vm416 = vmand %vm412, %vm408
      %vm417 = vmand %vm413, %vm409
      %v418 = vadd.s32 %v384, 32
      %v419 = vadd.s32 %v391, 32
      %v420 = vadd.s32 %v398, 32
      %v421 = vadd.s32 %v405, 32
      %v422 = vsel %vm414, %v418, %v384
      %v423 = vsel %vm415, %v419, %v391
      %v424 = vsel %vm416, %v420, %v398
      %v425 = vsel %vm417, %v421, %v405
      %vm426 = vcmp.lt.s32.totalorder %v422, 16
      %vm427 = vcmp.lt.s32.totalorder %v423, 16
      %vm428 = vcmp.lt.s32.totalorder %v424, 16
      %vm429 = vcmp.lt.s32.totalorder %v425, 16
      %v430 = vld [vmem:[#allocation2] sm:$0xff]
      %v431 = vld [vmem:[#allocation2 + $0x8] sm:$0xff]
      %v432 = vld [vmem:[#allocation2 + $0x10] sm:$0xf]
      %v435 = vcombine.high %v430, %v430
      %v436 = vcombine.high %v431, %v431
      %v439 = vpack.c.bf16 %v430, %v430
      %v440 = vpack.c.bf16 %v435, %v435
      %v441 = vpack.c.bf16 %v431, %v431
      %v442 = vpack.c.bf16 %v436, %v436
      %v443 = vpack.c.bf16 %v432, %v432
      %v444 = vld [vmem:[%s1] sm:$0xf]
      %v445 = vld [vmem:[%s1 + $0x4] sm:$0xf]
      %v446 = vld [vmem:[%s1 + $0x8] sm:$0xf]
      %v447 = vld [vmem:[%s1 + $0xc] sm:$0xf]
      %s448 = scalar_lea.vmem %s1, 16
      %v449 = vld [vmem:[%s448] sm:$0xf]
      %v450 = vld [vmem:[%s448 + $0x4] sm:$0xf]
      %v451 = vld [vmem:[%s448 + $0x8] sm:$0xf]
      %v452 = vld [vmem:[%s448 + $0xc] sm:$0xf]
      %v457 = vunpack.c.l.b16 %v449
      %v458 = vunpack.c.l.b16 %v450
      %v459 = vunpack.c.l.b16 %v451
      %v460 = vunpack.c.l.b16 %v452
      %v461 = vpack.c.b16 %v458, %v457
      %v462 = vpack.c.b16 %v460, %v459
      %468 = vrot.lane.b32.xlu0 %v439, 127
      %v469 = vpop.permute.xlu0 %468
      %470 = vrot.lane.b32.xlu0 %v440, 127
      %v471 = vpop.permute.xlu0 %470
      %472 = vrot.lane.b32.xlu0 %v441, 127
      %v473 = vpop.permute.xlu0 %472
      %474 = vrot.lane.b32.xlu0 %v442, 127
      %v475 = vpop.permute.xlu0 %474
      %476 = vrot.lane.b32.xlu0 %v443, 127
      %v477 = vpop.permute.xlu0 %476
      %vm478 = vcmask 1039360
      %v479 = vsel %vm478, %v469, %v471
      %v480 = vsel %vm478, %v471, %v473
      %v481 = vsel %vm478, %v473, %v475
      %v482 = vsel %vm478, %v475, %v477
      %vm483 = vcmask 31744
      %v485 = vsel %vm483, %v461, 0
      %v488 = vsel %vm483, %v462, 0
      %vm490 = vcmask 1041408
      %v492 = vsel %vm490, %v479, 0
      %v495 = vsel %vm490, %v480, 0
      %v498 = vsel %vm490, %v481, 0
      %v501 = vsel %vm490, %v482, 0
      %503 = vmatprep.subr.bf16.mxu0 0
      %504 = vmatpush1.bf16.msra.mxu0 0
      %505 = vmatprep.subr.bf16.mxu0 0
      %506 = vmatpush1.bf16.msra.mxu0 0
      %507 = vmatprep.subr.bf16.mxu0 0
      %508 = vmatpush1.bf16.msra.mxu0 0
      %509 = vmatprep.subr.bf16.mxu0 0
      %510 = vmatpush1.bf16.msra.mxu0 0
      %511 = vmatprep.subr.bf16.mxu0 0
      %512 = vmatpush1.bf16.msra.mxu0 0
      %513 = vmatprep.subr.bf16.mxu0 0
      %514 = vmatpush1.bf16.msra.mxu0 0
      %515 = vmatprep.subr.bf16.mxu0 0
      %516 = vmatpush1.bf16.msra.mxu0 0
      %517 = vmatprep.subr.bf16.mxu0 %v495
      %518 = vmatpush1.bf16.msra.mxu0 %v492
      %519 = vmatprep.subr.bf16.mxu0 0
      %520 = vmatpush2.bf16.msra.mxu0 0
      %521 = vmatprep.subr.bf16.mxu0 0
      %522 = vmatpush2.bf16.msra.mxu0 0
      %523 = vmatprep.subr.bf16.mxu0 0
      %524 = vmatpush2.bf16.msra.mxu0 0
      %525 = vmatprep.subr.bf16.mxu0 0
      %526 = vmatpush2.bf16.msra.mxu0 0
      %527 = vmatprep.subr.bf16.mxu0 0
      %528 = vmatpush2.bf16.msra.mxu0 0
      %529 = vmatprep.subr.bf16.mxu0 0
      %530 = vmatpush2.bf16.msra.mxu0 0
      %531 = vmatprep.subr.bf16.mxu0 0
      %532 = vmatpush2.bf16.msra.mxu0 0
      %533 = vmatprep.subr.bf16.mxu0 0
      %534 = vmatpush2.bf16.msra.mxu0 0
      %535 = vmatprep.mubr.bf16.mxu0 0
      %536 = vmatmul.mubr.bf16.gmra.mxu0 %v485
      %v537 = vpop.f32.mrf.mxu0
      %v538 = vadd.f32 0.0, %v537
      %v539 = vpop.f32.mrf.mxu0
      %v540 = vadd.f32 0.0, %v539
      %v541 = vpop.f32.mrf.mxu0
      %v542 = vadd.f32 0.0, %v541
      %v543 = vpop.f32.mrf.mxu0
      %v544 = vadd.f32 0.0, %v543
      %545 = vmatprep.mubr.bf16.mxu0 0
      %546 = vmatmul.mubr.bf16.gmra.mxu0 %v488
      %v547 = vpop.f32.mrf.mxu0
      %v548 = vadd.f32 0.0, %v547
      %v549 = vpop.f32.mrf.mxu0
      %v550 = vadd.f32 0.0, %v549
      %v551 = vpop.f32.mrf.mxu0
      %v552 = vadd.f32 0.0, %v551
      %v553 = vpop.f32.mrf.mxu0
      %v554 = vadd.f32 0.0, %v553
      %555 = vdwg.mxu0
      %556 = vmatprep.subr.bf16.mxu0 0
      %557 = vmatpush1.bf16.msra.mxu0 0
      %558 = vmatprep.subr.bf16.mxu0 0
      %559 = vmatpush1.bf16.msra.mxu0 0
      %560 = vmatprep.subr.bf16.mxu0 0
      %561 = vmatpush1.bf16.msra.mxu0 0
      %562 = vmatprep.subr.bf16.mxu0 0
      %563 = vmatpush1.bf16.msra.mxu0 0
      %564 = vmatprep.subr.bf16.mxu0 0
      %565 = vmatpush1.bf16.msra.mxu0 0
      %566 = vmatprep.subr.bf16.mxu0 0
      %567 = vmatpush1.bf16.msra.mxu0 0
      %568 = vmatprep.subr.bf16.mxu0 0
      %569 = vmatpush1.bf16.msra.mxu0 0
      %570 = vmatprep.subr.bf16.mxu0 %v501
      %571 = vmatpush1.bf16.msra.mxu0 %v498
      %572 = vmatprep.subr.bf16.mxu0 0
      %573 = vmatpush2.bf16.msra.mxu0 0
      %574 = vmatprep.subr.bf16.mxu0 0
      %575 = vmatpush2.bf16.msra.mxu0 0
      %576 = vmatprep.subr.bf16.mxu0 0
      %577 = vmatpush2.bf16.msra.mxu0 0
      %578 = vmatprep.subr.bf16.mxu0 0
      %579 = vmatpush2.bf16.msra.mxu0 0
      %580 = vmatprep.subr.bf16.mxu0 0
      %581 = vmatpush2.bf16.msra.mxu0 0
      %582 = vmatprep.subr.bf16.mxu0 0
      %583 = vmatpush2.bf16.msra.mxu0 0
      %584 = vmatprep.subr.bf16.mxu0 0
      %585 = vmatpush2.bf16.msra.mxu0 0
      %586 = vmatprep.subr.bf16.mxu0 0
      %587 = vmatpush2.bf16.msra.mxu0 0
      %588 = vmatprep.mubr.bf16.mxu0 0
      %589 = vmatmul.mubr.bf16.gmra.mxu0 %v485
      %v590 = vpop.f32.mrf.mxu0
      %v591 = vadd.f32 0.0, %v590
      %v592 = vpop.f32.mrf.mxu0
      %v593 = vadd.f32 0.0, %v592
      %v594 = vpop.f32.mrf.mxu0
      %v595 = vadd.f32 0.0, %v594
      %v596 = vpop.f32.mrf.mxu0
      %v597 = vadd.f32 0.0, %v596
      %598 = vmatprep.mubr.bf16.mxu0 0
      %599 = vmatmul.mubr.bf16.gmra.mxu0 %v488
      %v600 = vpop.f32.mrf.mxu0
      %v601 = vadd.f32 0.0, %v600
      %v602 = vpop.f32.mrf.mxu0
      %v603 = vadd.f32 0.0, %v602
      %v604 = vpop.f32.mrf.mxu0
      %v605 = vadd.f32 0.0, %v604
      %v606 = vpop.f32.mrf.mxu0
      %v607 = vadd.f32 0.0, %v606
      %608 = vdwg.mxu0
      %v613 = vunpack.c.l.b16 %v444
      %v614 = vunpack.c.l.b16 %v445
      %v615 = vunpack.c.l.b16 %v446
      %v616 = vunpack.c.l.b16 %v447
      %v617 = vpack.c.b16 %v614, %v613
      %v618 = vpack.c.b16 %v616, %v615
      %v620 = vsel %vm483, %v617, 0
      %v623 = vsel %vm483, %v618, 0
      %v626 = vsel %vm490, %v439, 0
      %v629 = vsel %vm490, %v440, 0
      %v632 = vsel %vm490, %v441, 0
      %v635 = vsel %vm490, %v442, 0
      %637 = vmatprep.subr.bf16.mxu0 0
      %638 = vmatpush1.bf16.msra.mxu0 0
      %639 = vmatprep.subr.bf16.mxu0 0
      %640 = vmatpush1.bf16.msra.mxu0 0
      %641 = vmatprep.subr.bf16.mxu0 0
      %642 = vmatpush1.bf16.msra.mxu0 0
      %643 = vmatprep.subr.bf16.mxu0 0
      %644 = vmatpush1.bf16.msra.mxu0 0
      %645 = vmatprep.subr.bf16.mxu0 0
      %646 = vmatpush1.bf16.msra.mxu0 0
      %647 = vmatprep.subr.bf16.mxu0 0
      %648 = vmatpush1.bf16.msra.mxu0 0
      %649 = vmatprep.subr.bf16.mxu0 0
      %650 = vmatpush1.bf16.msra.mxu0 0
      %651 = vmatprep.subr.bf16.mxu0 %v629
      %652 = vmatpush1.bf16.msra.mxu0 %v626
      %653 = vmatprep.subr.bf16.mxu0 0
      %654 = vmatpush2.bf16.msra.mxu0 0
      %655 = vmatprep.subr.bf16.mxu0 0
      %656 = vmatpush2.bf16.msra.mxu0 0
      %657 = vmatprep.subr.bf16.mxu0 0
      %658 = vmatpush2.bf16.msra.mxu0 0
      %659 = vmatprep.subr.bf16.mxu0 0
      %660 = vmatpush2.bf16.msra.mxu0 0
      %661 = vmatprep.subr.bf16.mxu0 0
      %662 = vmatpush2.bf16.msra.mxu0 0
      %663 = vmatprep.subr.bf16.mxu0 0
      %664 = vmatpush2.bf16.msra.mxu0 0
      %665 = vmatprep.subr.bf16.mxu0 0
      %666 = vmatpush2.bf16.msra.mxu0 0
      %667 = vmatprep.subr.bf16.mxu0 0
      %668 = vmatpush2.bf16.msra.mxu0 0
      %669 = vmatprep.mubr.bf16.mxu0 0
      %670 = vmatmul.mubr.bf16.gmra.mxu0 %v620
      %v671 = vpop.f32.mrf.mxu0
      %v672 = vadd.f32 %v538, %v671
      %v673 = vpop.f32.mrf.mxu0
      %v674 = vadd.f32 %v540, %v673
      %v675 = vpop.f32.mrf.mxu0
      %v676 = vadd.f32 %v542, %v675
      %v677 = vpop.f32.mrf.mxu0
      %v678 = vadd.f32 %v544, %v677
      %679 = vmatprep.mubr.bf16.mxu0 0
      %680 = vmatmul.mubr.bf16.gmra.mxu0 %v623
      %v681 = vpop.f32.mrf.mxu0
      %v682 = vadd.f32 %v548, %v681
      %v683 = vpop.f32.mrf.mxu0
      %v684 = vadd.f32 %v550, %v683
      %v685 = vpop.f32.mrf.mxu0
      %v686 = vadd.f32 %v552, %v685
      %v687 = vpop.f32.mrf.mxu0
      %v688 = vadd.f32 %v554, %v687
      %689 = vdwg.mxu0
      %690 = vmatprep.subr.bf16.mxu0 0
      %691 = vmatpush1.bf16.msra.mxu0 0
      %692 = vmatprep.subr.bf16.mxu0 0
      %693 = vmatpush1.bf16.msra.mxu0 0
      %694 = vmatprep.subr.bf16.mxu0 0
      %695 = vmatpush1.bf16.msra.mxu0 0
      %696 = vmatprep.subr.bf16.mxu0 0
      %697 = vmatpush1.bf16.msra.mxu0 0
      %698 = vmatprep.subr.bf16.mxu0 0
      %699 = vmatpush1.bf16.msra.mxu0 0
      %700 = vmatprep.subr.bf16.mxu0 0
      %701 = vmatpush1.bf16.msra.mxu0 0
      %702 = vmatprep.subr.bf16.mxu0 0
      %703 = vmatpush1.bf16.msra.mxu0 0
      %704 = vmatprep.subr.bf16.mxu0 %v635
      %705 = vmatpush1.bf16.msra.mxu0 %v632
      %706 = vmatprep.subr.bf16.mxu0 0
      %707 = vmatpush2.bf16.msra.mxu0 0
      %708 = vmatprep.subr.bf16.mxu0 0
      %709 = vmatpush2.bf16.msra.mxu0 0
      %710 = vmatprep.subr.bf16.mxu0 0
      %711 = vmatpush2.bf16.msra.mxu0 0
      %712 = vmatprep.subr.bf16.mxu0 0
      %713 = vmatpush2.bf16.msra.mxu0 0
      %714 = vmatprep.subr.bf16.mxu0 0
      %715 = vmatpush2.bf16.msra.mxu0 0
      %716 = vmatprep.subr.bf16.mxu0 0
      %717 = vmatpush2.bf16.msra.mxu0 0
      %718 = vmatprep.subr.bf16.mxu0 0
      %719 = vmatpush2.bf16.msra.mxu0 0
      %720 = vmatprep.subr.bf16.mxu0 0
      %721 = vmatpush2.bf16.msra.mxu0 0
      %722 = vmatprep.mubr.bf16.mxu0 0
      %723 = vmatmul.mubr.bf16.gmra.mxu0 %v620
      %v724 = vpop.f32.mrf.mxu0
      %v725 = vadd.f32 %v591, %v724
      %v726 = vpop.f32.mrf.mxu0
      %v727 = vadd.f32 %v593, %v726
      %v728 = vpop.f32.mrf.mxu0
      %v729 = vadd.f32 %v595, %v728
      %v730 = vpop.f32.mrf.mxu0
      %v731 = vadd.f32 %v597, %v730
      %732 = vmatprep.mubr.bf16.mxu0 0
      %733 = vmatmul.mubr.bf16.gmra.mxu0 %v623
      %v734 = vpop.f32.mrf.mxu0
      %v735 = vadd.f32 %v601, %v734
      %v736 = vpop.f32.mrf.mxu0
      %v737 = vadd.f32 %v603, %v736
      %v738 = vpop.f32.mrf.mxu0
      %v739 = vadd.f32 %v605, %v738
      %v740 = vpop.f32.mrf.mxu0
      %v741 = vadd.f32 %v607, %v740
      %742 = vdwg.mxu0
      %s743 = scalar_lea.vmem %s1, 32
      %v744 = vld [vmem:[%s743] sm:$0xf]
      %v745 = vld [vmem:[%s743 + $0x4] sm:$0xf]
      %v746 = vld [vmem:[%s743 + $0x8] sm:$0xf]
      %v747 = vld [vmem:[%s743 + $0xc] sm:$0xf]
      %v752 = vunpack.c.l.b16 %v744
      %v753 = vunpack.c.l.b16 %v745
      %v754 = vunpack.c.l.b16 %v746
      %v755 = vunpack.c.l.b16 %v747
      %v756 = vpack.c.b16 %v753, %v752
      %v757 = vpack.c.b16 %v755, %v754
      %758 = vrot.lane.b32.xlu0 %v439, 126
      %v759 = vpop.permute.xlu0 %758
      %760 = vrot.lane.b32.xlu0 %v440, 126
      %v761 = vpop.permute.xlu0 %760
      %762 = vrot.lane.b32.xlu0 %v441, 126
      %v763 = vpop.permute.xlu0 %762
      %764 = vrot.lane.b32.xlu0 %v442, 126
      %v765 = vpop.permute.xlu0 %764
      %766 = vrot.lane.b32.xlu0 %v443, 126
      %v767 = vpop.permute.xlu0 %766
      %vm768 = vcmask 1031168
      %v769 = vsel %vm768, %v759, %v761
      %v770 = vsel %vm768, %v761, %v763
      %v771 = vsel %vm768, %v763, %v765
      %v772 = vsel %vm768, %v765, %v767
      %v774 = vsel %vm483, %v756, 0
      %v777 = vsel %vm483, %v757, 0
      %v780 = vsel %vm490, %v769, 0
      %v783 = vsel %vm490, %v770, 0
      %v786 = vsel %vm490, %v771, 0
      %v789 = vsel %vm490, %v772, 0
      %791 = vmatprep.subr.bf16.mxu0 0
      %792 = vmatpush1.bf16.msra.mxu0 0
      %793 = vmatprep.subr.bf16.mxu0 0
      %794 = vmatpush1.bf16.msra.mxu0 0
      %795 = vmatprep.subr.bf16.mxu0 0
      %796 = vmatpush1.bf16.msra.mxu0 0
      %797 = vmatprep.subr.bf16.mxu0 0
      %798 = vmatpush1.bf16.msra.mxu0 0
      %799 = vmatprep.subr.bf16.mxu0 0
      %800 = vmatpush1.bf16.msra.mxu0 0
      %801 = vmatprep.subr.bf16.mxu0 0
      %802 = vmatpush1.bf16.msra.mxu0 0
      %803 = vmatprep.subr.bf16.mxu0 0
      %804 = vmatpush1.bf16.msra.mxu0 0
      %805 = vmatprep.subr.bf16.mxu0 %v783
      %806 = vmatpush1.bf16.msra.mxu0 %v780
      %807 = vmatprep.subr.bf16.mxu0 0
      %808 = vmatpush2.bf16.msra.mxu0 0
      %809 = vmatprep.subr.bf16.mxu0 0
      %810 = vmatpush2.bf16.msra.mxu0 0
      %811 = vmatprep.subr.bf16.mxu0 0
      %812 = vmatpush2.bf16.msra.mxu0 0
      %813 = vmatprep.subr.bf16.mxu0 0
      %814 = vmatpush2.bf16.msra.mxu0 0
      %815 = vmatprep.subr.bf16.mxu0 0
      %816 = vmatpush2.bf16.msra.mxu0 0
      %817 = vmatprep.subr.bf16.mxu0 0
      %818 = vmatpush2.bf16.msra.mxu0 0
      %819 = vmatprep.subr.bf16.mxu0 0
      %820 = vmatpush2.bf16.msra.mxu0 0
      %821 = vmatprep.subr.bf16.mxu0 0
      %822 = vmatpush2.bf16.msra.mxu0 0
      %823 = vmatprep.mubr.bf16.mxu0 0
      %824 = vmatmul.mubr.bf16.gmra.mxu0 %v774
      %v825 = vpop.f32.mrf.mxu0
      %v826 = vadd.f32 0.0, %v825
      %v827 = vpop.f32.mrf.mxu0
      %v828 = vadd.f32 0.0, %v827
      %v829 = vpop.f32.mrf.mxu0
      %v830 = vadd.f32 0.0, %v829
      %v831 = vpop.f32.mrf.mxu0
      %v832 = vadd.f32 0.0, %v831
      %833 = vmatprep.mubr.bf16.mxu0 0
      %834 = vmatmul.mubr.bf16.gmra.mxu0 %v777
      %v835 = vpop.f32.mrf.mxu0
      %v836 = vadd.f32 0.0, %v835
      %v837 = vpop.f32.mrf.mxu0
      %v838 = vadd.f32 0.0, %v837
      %v839 = vpop.f32.mrf.mxu0
      %v840 = vadd.f32 0.0, %v839
      %v841 = vpop.f32.mrf.mxu0
      %v842 = vadd.f32 0.0, %v841
      %843 = vdwg.mxu0
      %844 = vmatprep.subr.bf16.mxu0 0
      %845 = vmatpush1.bf16.msra.mxu0 0
      %846 = vmatprep.subr.bf16.mxu0 0
      %847 = vmatpush1.bf16.msra.mxu0 0
      %848 = vmatprep.subr.bf16.mxu0 0
      %849 = vmatpush1.bf16.msra.mxu0 0
      %850 = vmatprep.subr.bf16.mxu0 0
      %851 = vmatpush1.bf16.msra.mxu0 0
      %852 = vmatprep.subr.bf16.mxu0 0
      %853 = vmatpush1.bf16.msra.mxu0 0
      %854 = vmatprep.subr.bf16.mxu0 0
      %855 = vmatpush1.bf16.msra.mxu0 0
      %856 = vmatprep.subr.bf16.mxu0 0
      %857 = vmatpush1.bf16.msra.mxu0 0
      %858 = vmatprep.subr.bf16.mxu0 %v789
      %859 = vmatpush1.bf16.msra.mxu0 %v786
      %860 = vmatprep.subr.bf16.mxu0 0
      %861 = vmatpush2.bf16.msra.mxu0 0
      %862 = vmatprep.subr.bf16.mxu0 0
      %863 = vmatpush2.bf16.msra.mxu0 0
      %864 = vmatprep.subr.bf16.mxu0 0
      %865 = vmatpush2.bf16.msra.mxu0 0
      %866 = vmatprep.subr.bf16.mxu0 0
      %867 = vmatpush2.bf16.msra.mxu0 0
      %868 = vmatprep.subr.bf16.mxu0 0
      %869 = vmatpush2.bf16.msra.mxu0 0
      %870 = vmatprep.subr.bf16.mxu0 0
      %871 = vmatpush2.bf16.msra.mxu0 0
      %872 = vmatprep.subr.bf16.mxu0 0
      %873 = vmatpush2.bf16.msra.mxu0 0
      %874 = vmatprep.subr.bf16.mxu0 0
      %875 = vmatpush2.bf16.msra.mxu0 0
      %876 = vmatprep.mubr.bf16.mxu0 0
      %877 = vmatmul.mubr.bf16.gmra.mxu0 %v774
      %v878 = vpop.f32.mrf.mxu0
      %v879 = vadd.f32 0.0, %v878
      %v880 = vpop.f32.mrf.mxu0
      %v881 = vadd.f32 0.0, %v880
      %v882 = vpop.f32.mrf.mxu0
      %v883 = vadd.f32 0.0, %v882
      %v884 = vpop.f32.mrf.mxu0
      %v885 = vadd.f32 0.0, %v884
      %886 = vmatprep.mubr.bf16.mxu0 0
      %887 = vmatmul.mubr.bf16.gmra.mxu0 %v777
      %v888 = vpop.f32.mrf.mxu0
      %v889 = vadd.f32 0.0, %v888
      %v890 = vpop.f32.mrf.mxu0
      %v891 = vadd.f32 0.0, %v890
      %v892 = vpop.f32.mrf.mxu0
      %v893 = vadd.f32 0.0, %v892
      %v894 = vpop.f32.mrf.mxu0
      %v895 = vadd.f32 0.0, %v894
      %896 = vdwg.mxu0
      %v897 = vadd.f32 %v672, %v826
      %v898 = vadd.f32 %v674, %v828
      %v899 = vadd.f32 %v725, %v879
      %v900 = vadd.f32 %v727, %v881
      %v901 = vadd.f32 %v676, %v830
      %v902 = vadd.f32 %v678, %v832
      %v903 = vadd.f32 %v729, %v883
      %v904 = vadd.f32 %v731, %v885
      %v905 = vadd.f32 %v682, %v836
      %v906 = vadd.f32 %v684, %v838
      %v907 = vadd.f32 %v735, %v889
      %v908 = vadd.f32 %v737, %v891
      %v909 = vadd.f32 %v686, %v840
      %v910 = vadd.f32 %v688, %v842
      %v911 = vadd.f32 %v739, %v893
      %v912 = vadd.f32 %v741, %v895
      %s913 = scalar_lea.vmem %s1, 48
      %v914 = vld [vmem:[%s913] sm:$0xf]
      %v915 = vld [vmem:[%s913 + $0x4] sm:$0xf]
      %v916 = vld [vmem:[%s913 + $0x8] sm:$0xf]
      %v917 = vld [vmem:[%s913 + $0xc] sm:$0xf]
      %v922 = vunpack.c.l.b16 %v914
      %v923 = vunpack.c.l.b16 %v915
      %v924 = vunpack.c.l.b16 %v916
      %v925 = vunpack.c.l.b16 %v917
      %v926 = vpack.c.b16 %v923, %v922
      %v927 = vpack.c.b16 %v925, %v924
      %928 = vrot.lane.b32.xlu0 %v439, 96
      %v929 = vpop.permute.xlu0 %928
      %930 = vrot.lane.b32.xlu0 %v440, 96
      %v931 = vpop.permute.xlu0 %930
      %932 = vrot.lane.b32.xlu0 %v441, 96
      %v933 = vpop.permute.xlu0 %932
      %934 = vrot.lane.b32.xlu0 %v442, 96
      %v935 = vpop.permute.xlu0 %934
      %936 = vrot.lane.b32.xlu0 %v443, 96
      %v937 = vpop.permute.xlu0 %936
      %vm938 = vcmask 785408
      %v939 = vsel %vm938, %v929, %v931
      %v940 = vsel %vm938, %v931, %v933
      %v941 = vsel %vm938, %v933, %v935
      %v942 = vsel %vm938, %v935, %v937
      %v944 = vsel %vm483, %v926, 0
      %v947 = vsel %vm483, %v927, 0
      %v950 = vsel %vm490, %v939, 0
      %v953 = vsel %vm490, %v940, 0
      %v956 = vsel %vm490, %v941, 0
      %v959 = vsel %vm490, %v942, 0
      %961 = vmatprep.subr.bf16.mxu0 0
      %962 = vmatpush1.bf16.msra.mxu0 0
      %963 = vmatprep.subr.bf16.mxu0 0
      %964 = vmatpush1.bf16.msra.mxu0 0
      %965 = vmatprep.subr.bf16.mxu0 0
      %966 = vmatpush1.bf16.msra.mxu0 0
      %967 = vmatprep.subr.bf16.mxu0 0
      %968 = vmatpush1.bf16.msra.mxu0 0
      %969 = vmatprep.subr.bf16.mxu0 0
      %970 = vmatpush1.bf16.msra.mxu0 0
      %971 = vmatprep.subr.bf16.mxu0 0
      %972 = vmatpush1.bf16.msra.mxu0 0
      %973 = vmatprep.subr.bf16.mxu0 0
      %974 = vmatpush1.bf16.msra.mxu0 0
      %975 = vmatprep.subr.bf16.mxu0 %v953
      %976 = vmatpush1.bf16.msra.mxu0 %v950
      %977 = vmatprep.subr.bf16.mxu0 0
      %978 = vmatpush2.bf16.msra.mxu0 0
      %979 = vmatprep.subr.bf16.mxu0 0
      %980 = vmatpush2.bf16.msra.mxu0 0
      %981 = vmatprep.subr.bf16.mxu0 0
      %982 = vmatpush2.bf16.msra.mxu0 0
      %983 = vmatprep.subr.bf16.mxu0 0
      %984 = vmatpush2.bf16.msra.mxu0 0
      %985 = vmatprep.subr.bf16.mxu0 0
      %986 = vmatpush2.bf16.msra.mxu0 0
      %987 = vmatprep.subr.bf16.mxu0 0
      %988 = vmatpush2.bf16.msra.mxu0 0
      %989 = vmatprep.subr.bf16.mxu0 0
      %990 = vmatpush2.bf16.msra.mxu0 0
      %991 = vmatprep.subr.bf16.mxu0 0
      %992 = vmatpush2.bf16.msra.mxu0 0
      %993 = vmatprep.mubr.bf16.mxu0 0
      %994 = vmatmul.mubr.bf16.gmra.mxu0 %v944
      %v995 = vpop.f32.mrf.mxu0
      %v996 = vadd.f32 0.0, %v995
      %v997 = vpop.f32.mrf.mxu0
      %v998 = vadd.f32 0.0, %v997
      %v999 = vpop.f32.mrf.mxu0
      %v1000 = vadd.f32 0.0, %v999
      %v1001 = vpop.f32.mrf.mxu0
      %v1002 = vadd.f32 0.0, %v1001
      %1003 = vmatprep.mubr.bf16.mxu0 0
      %1004 = vmatmul.mubr.bf16.gmra.mxu0 %v947
      %v1005 = vpop.f32.mrf.mxu0
      %v1006 = vadd.f32 0.0, %v1005
      %v1007 = vpop.f32.mrf.mxu0
      %v1008 = vadd.f32 0.0, %v1007
      %v1009 = vpop.f32.mrf.mxu0
      %v1010 = vadd.f32 0.0, %v1009
      %v1011 = vpop.f32.mrf.mxu0
      %v1012 = vadd.f32 0.0, %v1011
      %1013 = vdwg.mxu0
      %1014 = vmatprep.subr.bf16.mxu0 0
      %1015 = vmatpush1.bf16.msra.mxu0 0
      %1016 = vmatprep.subr.bf16.mxu0 0
      %1017 = vmatpush1.bf16.msra.mxu0 0
      %1018 = vmatprep.subr.bf16.mxu0 0
      %1019 = vmatpush1.bf16.msra.mxu0 0
      %1020 = vmatprep.subr.bf16.mxu0 0
      %1021 = vmatpush1.bf16.msra.mxu0 0
      %1022 = vmatprep.subr.bf16.mxu0 0
      %1023 = vmatpush1.bf16.msra.mxu0 0
      %1024 = vmatprep.subr.bf16.mxu0 0
      %1025 = vmatpush1.bf16.msra.mxu0 0
      %1026 = vmatprep.subr.bf16.mxu0 0
      %1027 = vmatpush1.bf16.msra.mxu0 0
      %1028 = vmatprep.subr.bf16.mxu0 %v959
      %1029 = vmatpush1.bf16.msra.mxu0 %v956
      %1030 = vmatprep.subr.bf16.mxu0 0
      %1031 = vmatpush2.bf16.msra.mxu0 0
      %1032 = vmatprep.subr.bf16.mxu0 0
      %1033 = vmatpush2.bf16.msra.mxu0 0
      %1034 = vmatprep.subr.bf16.mxu0 0
      %1035 = vmatpush2.bf16.msra.mxu0 0
      %1036 = vmatprep.subr.bf16.mxu0 0
      %1037 = vmatpush2.bf16.msra.mxu0 0
      %1038 = vmatprep.subr.bf16.mxu0 0
      %1039 = vmatpush2.bf16.msra.mxu0 0
      %1040 = vmatprep.subr.bf16.mxu0 0
      %1041 = vmatpush2.bf16.msra.mxu0 0
      %1042 = vmatprep.subr.bf16.mxu0 0
      %1043 = vmatpush2.bf16.msra.mxu0 0
      %1044 = vmatprep.subr.bf16.mxu0 0
      %1045 = vmatpush2.bf16.msra.mxu0 0
      %1046 = vmatprep.mubr.bf16.mxu0 0
      %1047 = vmatmul.mubr.bf16.gmra.mxu0 %v944
      %v1048 = vpop.f32.mrf.mxu0
      %v1049 = vadd.f32 0.0, %v1048
      %v1050 = vpop.f32.mrf.mxu0
      %v1051 = vadd.f32 0.0, %v1050
      %v1052 = vpop.f32.mrf.mxu0
      %v1053 = vadd.f32 0.0, %v1052
      %v1054 = vpop.f32.mrf.mxu0
      %v1055 = vadd.f32 0.0, %v1054
      %1056 = vmatprep.mubr.bf16.mxu0 0
      %1057 = vmatmul.mubr.bf16.gmra.mxu0 %v947
      %v1058 = vpop.f32.mrf.mxu0
      %v1059 = vadd.f32 0.0, %v1058
      %v1060 = vpop.f32.mrf.mxu0
      %v1061 = vadd.f32 0.0, %v1060
      %v1062 = vpop.f32.mrf.mxu0
      %v1063 = vadd.f32 0.0, %v1062
      %v1064 = vpop.f32.mrf.mxu0
      %v1065 = vadd.f32 0.0, %v1064
      %1066 = vdwg.mxu0
      %v1067 = vadd.f32 %v897, %v996
      %v1068 = vadd.f32 %v898, %v998
      %v1069 = vadd.f32 %v899, %v1049
      %v1070 = vadd.f32 %v900, %v1051
      %v1071 = vadd.f32 %v901, %v1000
      %v1072 = vadd.f32 %v902, %v1002
      %v1073 = vadd.f32 %v903, %v1053
      %v1074 = vadd.f32 %v904, %v1055
      %v1075 = vadd.f32 %v905, %v1006
      %v1076 = vadd.f32 %v906, %v1008
      %v1077 = vadd.f32 %v907, %v1059
      %v1078 = vadd.f32 %v908, %v1061
      %v1079 = vadd.f32 %v909, %v1010
      %v1080 = vadd.f32 %v910, %v1012
      %v1081 = vadd.f32 %v911, %v1063
      %v1082 = vadd.f32 %v912, %v1065
      %s1083 = scalar_lea.vmem %s1, 64
      %v1084 = vld [vmem:[%s1083] sm:$0xf]
      %v1085 = vld [vmem:[%s1083 + $0x4] sm:$0xf]
      %v1086 = vld [vmem:[%s1083 + $0x8] sm:$0xf]
      %v1087 = vld [vmem:[%s1083 + $0xc] sm:$0xf]
      %v1092 = vunpack.c.l.b16 %v1084
      %v1093 = vunpack.c.l.b16 %v1085
      %v1094 = vunpack.c.l.b16 %v1086
      %v1095 = vunpack.c.l.b16 %v1087
      %v1096 = vpack.c.b16 %v1093, %v1092
      %v1097 = vpack.c.b16 %v1095, %v1094
      %1098 = vrot.lane.b32.xlu0 %v439, 95
      %v1099 = vpop.permute.xlu0 %1098
      %1100 = vrot.lane.b32.xlu0 %v440, 95
      %v1101 = vpop.permute.xlu0 %1100
      %1102 = vrot.lane.b32.xlu0 %v441, 95
      %v1103 = vpop.permute.xlu0 %1102
      %1104 = vrot.lane.b32.xlu0 %v442, 95
      %v1105 = vpop.permute.xlu0 %1104
      %1106 = vrot.lane.b32.xlu0 %v443, 95
      %v1107 = vpop.permute.xlu0 %1106
      %vm1108 = vcmask 777216
      %v1109 = vsel %vm1108, %v1099, %v1101
      %v1110 = vsel %vm1108, %v1101, %v1103
      %v1111 = vsel %vm1108, %v1103, %v1105
      %v1112 = vsel %vm1108, %v1105, %v1107
      %v1114 = vsel %vm483, %v1096, 0
      %v1117 = vsel %vm483, %v1097, 0
      %v1120 = vsel %vm490, %v1109, 0
      %v1123 = vsel %vm490, %v1110, 0
      %v1126 = vsel %vm490, %v1111, 0
      %v1129 = vsel %vm490, %v1112, 0
      %1131 = vmatprep.subr.bf16.mxu0 0
      %1132 = vmatpush1.bf16.msra.mxu0 0
      %1133 = vmatprep.subr.bf16.mxu0 0
      %1134 = vmatpush1.bf16.msra.mxu0 0
      %1135 = vmatprep.subr.bf16.mxu0 0
      %1136 = vmatpush1.bf16.msra.mxu0 0
      %1137 = vmatprep.subr.bf16.mxu0 0
      %1138 = vmatpush1.bf16.msra.mxu0 0
      %1139 = vmatprep.subr.bf16.mxu0 0
      %1140 = vmatpush1.bf16.msra.mxu0 0
      %1141 = vmatprep.subr.bf16.mxu0 0
      %1142 = vmatpush1.bf16.msra.mxu0 0
      %1143 = vmatprep.subr.bf16.mxu0 0
      %1144 = vmatpush1.bf16.msra.mxu0 0
      %1145 = vmatprep.subr.bf16.mxu0 %v1123
      %1146 = vmatpush1.bf16.msra.mxu0 %v1120
      %1147 = vmatprep.subr.bf16.mxu0 0
      %1148 = vmatpush2.bf16.msra.mxu0 0
      %1149 = vmatprep.subr.bf16.mxu0 0
      %1150 = vmatpush2.bf16.msra.mxu0 0
      %1151 = vmatprep.subr.bf16.mxu0 0
      %1152 = vmatpush2.bf16.msra.mxu0 0
      %1153 = vmatprep.subr.bf16.mxu0 0
      %1154 = vmatpush2.bf16.msra.mxu0 0
      %1155 = vmatprep.subr.bf16.mxu0 0
      %1156 = vmatpush2.bf16.msra.mxu0 0
      %1157 = vmatprep.subr.bf16.mxu0 0
      %1158 = vmatpush2.bf16.msra.mxu0 0
      %1159 = vmatprep.subr.bf16.mxu0 0
      %1160 = vmatpush2.bf16.msra.mxu0 0
      %1161 = vmatprep.subr.bf16.mxu0 0
      %1162 = vmatpush2.bf16.msra.mxu0 0
      %1163 = vmatprep.mubr.bf16.mxu0 0
      %1164 = vmatmul.mubr.bf16.gmra.mxu0 %v1114
      %v1165 = vpop.f32.mrf.mxu0
      %v1166 = vadd.f32 0.0, %v1165
      %v1167 = vpop.f32.mrf.mxu0
      %v1168 = vadd.f32 0.0, %v1167
      %v1169 = vpop.f32.mrf.mxu0
      %v1170 = vadd.f32 0.0, %v1169
      %v1171 = vpop.f32.mrf.mxu0
      %v1172 = vadd.f32 0.0, %v1171
      %1173 = vmatprep.mubr.bf16.mxu0 0
      %1174 = vmatmul.mubr.bf16.gmra.mxu0 %v1117
      %v1175 = vpop.f32.mrf.mxu0
      %v1176 = vadd.f32 0.0, %v1175
      %v1177 = vpop.f32.mrf.mxu0
      %v1178 = vadd.f32 0.0, %v1177
      %v1179 = vpop.f32.mrf.mxu0
      %v1180 = vadd.f32 0.0, %v1179
      %v1181 = vpop.f32.mrf.mxu0
      %v1182 = vadd.f32 0.0, %v1181
      %1183 = vdwg.mxu0
      %1184 = vmatprep.subr.bf16.mxu0 0
      %1185 = vmatpush1.bf16.msra.mxu0 0
      %1186 = vmatprep.subr.bf16.mxu0 0
      %1187 = vmatpush1.bf16.msra.mxu0 0
      %1188 = vmatprep.subr.bf16.mxu0 0
      %1189 = vmatpush1.bf16.msra.mxu0 0
      %1190 = vmatprep.subr.bf16.mxu0 0
      %1191 = vmatpush1.bf16.msra.mxu0 0
      %1192 = vmatprep.subr.bf16.mxu0 0
      %1193 = vmatpush1.bf16.msra.mxu0 0
      %1194 = vmatprep.subr.bf16.mxu0 0
      %1195 = vmatpush1.bf16.msra.mxu0 0
      %1196 = vmatprep.subr.bf16.mxu0 0
      %1197 = vmatpush1.bf16.msra.mxu0 0
      %1198 = vmatprep.subr.bf16.mxu0 %v1129
      %1199 = vmatpush1.bf16.msra.mxu0 %v1126
      %1200 = vmatprep.subr.bf16.mxu0 0
      %1201 = vmatpush2.bf16.msra.mxu0 0
      %1202 = vmatprep.subr.bf16.mxu0 0
      %1203 = vmatpush2.bf16.msra.mxu0 0
      %1204 = vmatprep.subr.bf16.mxu0 0
      %1205 = vmatpush2.bf16.msra.mxu0 0
      %1206 = vmatprep.subr.bf16.mxu0 0
      %1207 = vmatpush2.bf16.msra.mxu0 0
      %1208 = vmatprep.subr.bf16.mxu0 0
      %1209 = vmatpush2.bf16.msra.mxu0 0
      %1210 = vmatprep.subr.bf16.mxu0 0
      %1211 = vmatpush2.bf16.msra.mxu0 0
      %1212 = vmatprep.subr.bf16.mxu0 0
      %1213 = vmatpush2.bf16.msra.mxu0 0
      %1214 = vmatprep.subr.bf16.mxu0 0
      %1215 = vmatpush2.bf16.msra.mxu0 0
      %1216 = vmatprep.mubr.bf16.mxu0 0
      %1217 = vmatmul.mubr.bf16.gmra.mxu0 %v1114
      %v1218 = vpop.f32.mrf.mxu0
      %v1219 = vadd.f32 0.0, %v1218
      %v1220 = vpop.f32.mrf.mxu0
      %v1221 = vadd.f32 0.0, %v1220
      %v1222 = vpop.f32.mrf.mxu0
      %v1223 = vadd.f32 0.0, %v1222
      %v1224 = vpop.f32.mrf.mxu0
      %v1225 = vadd.f32 0.0, %v1224
      %1226 = vmatprep.mubr.bf16.mxu0 0
      %1227 = vmatmul.mubr.bf16.gmra.mxu0 %v1117
      %v1228 = vpop.f32.mrf.mxu0
      %v1229 = vadd.f32 0.0, %v1228
      %v1230 = vpop.f32.mrf.mxu0
      %v1231 = vadd.f32 0.0, %v1230
      %v1232 = vpop.f32.mrf.mxu0
      %v1233 = vadd.f32 0.0, %v1232
      %v1234 = vpop.f32.mrf.mxu0
      %v1235 = vadd.f32 0.0, %v1234
      %1236 = vdwg.mxu0
      %v1237 = vadd.f32 %v1067, %v1166
      %v1238 = vadd.f32 %v1068, %v1168
      %v1239 = vadd.f32 %v1069, %v1219
      %v1240 = vadd.f32 %v1070, %v1221
      %v1241 = vadd.f32 %v1071, %v1170
      %v1242 = vadd.f32 %v1072, %v1172
      %v1243 = vadd.f32 %v1073, %v1223
      %v1244 = vadd.f32 %v1074, %v1225
      %v1245 = vadd.f32 %v1075, %v1176
      %v1246 = vadd.f32 %v1076, %v1178
      %v1247 = vadd.f32 %v1077, %v1229
      %v1248 = vadd.f32 %v1078, %v1231
      %v1249 = vadd.f32 %v1079, %v1180
      %v1250 = vadd.f32 %v1080, %v1182
      %v1251 = vadd.f32 %v1081, %v1233
      %v1252 = vadd.f32 %v1082, %v1235
      %s1253 = scalar_lea.vmem %s1, 80
      %v1254 = vld [vmem:[%s1253] sm:$0xf]
      %v1255 = vld [vmem:[%s1253 + $0x4] sm:$0xf]
      %v1256 = vld [vmem:[%s1253 + $0x8] sm:$0xf]
      %v1257 = vld [vmem:[%s1253 + $0xc] sm:$0xf]
      %v1262 = vunpack.c.l.b16 %v1254
      %v1263 = vunpack.c.l.b16 %v1255
      %v1264 = vunpack.c.l.b16 %v1256
      %v1265 = vunpack.c.l.b16 %v1257
      %v1266 = vpack.c.b16 %v1263, %v1262
      %v1267 = vpack.c.b16 %v1265, %v1264
      %1268 = vrot.lane.b32.xlu0 %v439, 94
      %v1269 = vpop.permute.xlu0 %1268
      %1270 = vrot.lane.b32.xlu0 %v440, 94
      %v1271 = vpop.permute.xlu0 %1270
      %1272 = vrot.lane.b32.xlu0 %v441, 94
      %v1273 = vpop.permute.xlu0 %1272
      %1274 = vrot.lane.b32.xlu0 %v442, 94
      %v1275 = vpop.permute.xlu0 %1274
      %1276 = vrot.lane.b32.xlu0 %v443, 94
      %v1277 = vpop.permute.xlu0 %1276
      %vm1278 = vcmask 769024
      %v1279 = vsel %vm1278, %v1269, %v1271
      %v1280 = vsel %vm1278, %v1271, %v1273
      %v1281 = vsel %vm1278, %v1273, %v1275
      %v1282 = vsel %vm1278, %v1275, %v1277
      %v1284 = vsel %vm483, %v1266, 0
      %v1287 = vsel %vm483, %v1267, 0
      %v1290 = vsel %vm490, %v1279, 0
      %v1293 = vsel %vm490, %v1280, 0
      %v1296 = vsel %vm490, %v1281, 0
      %v1299 = vsel %vm490, %v1282, 0
      %1301 = vmatprep.subr.bf16.mxu0 0
      %1302 = vmatpush1.bf16.msra.mxu0 0
      %1303 = vmatprep.subr.bf16.mxu0 0
      %1304 = vmatpush1.bf16.msra.mxu0 0
      %1305 = vmatprep.subr.bf16.mxu0 0
      %1306 = vmatpush1.bf16.msra.mxu0 0
      %1307 = vmatprep.subr.bf16.mxu0 0
      %1308 = vmatpush1.bf16.msra.mxu0 0
      %1309 = vmatprep.subr.bf16.mxu0 0
      %1310 = vmatpush1.bf16.msra.mxu0 0
      %1311 = vmatprep.subr.bf16.mxu0 0
      %1312 = vmatpush1.bf16.msra.mxu0 0
      %1313 = vmatprep.subr.bf16.mxu0 0
      %1314 = vmatpush1.bf16.msra.mxu0 0
      %1315 = vmatprep.subr.bf16.mxu0 %v1293
      %1316 = vmatpush1.bf16.msra.mxu0 %v1290
      %1317 = vmatprep.subr.bf16.mxu0 0
      %1318 = vmatpush2.bf16.msra.mxu0 0
      %1319 = vmatprep.subr.bf16.mxu0 0
      %1320 = vmatpush2.bf16.msra.mxu0 0
      %1321 = vmatprep.subr.bf16.mxu0 0
      %1322 = vmatpush2.bf16.msra.mxu0 0
      %1323 = vmatprep.subr.bf16.mxu0 0
      %1324 = vmatpush2.bf16.msra.mxu0 0
      %1325 = vmatprep.subr.bf16.mxu0 0
      %1326 = vmatpush2.bf16.msra.mxu0 0
      %1327 = vmatprep.subr.bf16.mxu0 0
      %1328 = vmatpush2.bf16.msra.mxu0 0
      %1329 = vmatprep.subr.bf16.mxu0 0
      %1330 = vmatpush2.bf16.msra.mxu0 0
      %1331 = vmatprep.subr.bf16.mxu0 0
      %1332 = vmatpush2.bf16.msra.mxu0 0
      %1333 = vmatprep.mubr.bf16.mxu0 0
      %1334 = vmatmul.mubr.bf16.gmra.mxu0 %v1284
      %v1335 = vpop.f32.mrf.mxu0
      %v1336 = vadd.f32 0.0, %v1335
      %v1337 = vpop.f32.mrf.mxu0
      %v1338 = vadd.f32 0.0, %v1337
      %v1339 = vpop.f32.mrf.mxu0
      %v1340 = vadd.f32 0.0, %v1339
      %v1341 = vpop.f32.mrf.mxu0
      %v1342 = vadd.f32 0.0, %v1341
      %1343 = vmatprep.mubr.bf16.mxu0 0
      %1344 = vmatmul.mubr.bf16.gmra.mxu0 %v1287
      %v1345 = vpop.f32.mrf.mxu0
      %v1346 = vadd.f32 0.0, %v1345
      %v1347 = vpop.f32.mrf.mxu0
      %v1348 = vadd.f32 0.0, %v1347
      %v1349 = vpop.f32.mrf.mxu0
      %v1350 = vadd.f32 0.0, %v1349
      %v1351 = vpop.f32.mrf.mxu0
      %v1352 = vadd.f32 0.0, %v1351
      %1353 = vdwg.mxu0
      %1354 = vmatprep.subr.bf16.mxu0 0
      %1355 = vmatpush1.bf16.msra.mxu0 0
      %1356 = vmatprep.subr.bf16.mxu0 0
      %1357 = vmatpush1.bf16.msra.mxu0 0
      %1358 = vmatprep.subr.bf16.mxu0 0
      %1359 = vmatpush1.bf16.msra.mxu0 0
      %1360 = vmatprep.subr.bf16.mxu0 0
      %1361 = vmatpush1.bf16.msra.mxu0 0
      %1362 = vmatprep.subr.bf16.mxu0 0
      %1363 = vmatpush1.bf16.msra.mxu0 0
      %1364 = vmatprep.subr.bf16.mxu0 0
      %1365 = vmatpush1.bf16.msra.mxu0 0
      %1366 = vmatprep.subr.bf16.mxu0 0
      %1367 = vmatpush1.bf16.msra.mxu0 0
      %1368 = vmatprep.subr.bf16.mxu0 %v1299
      %1369 = vmatpush1.bf16.msra.mxu0 %v1296
      %1370 = vmatprep.subr.bf16.mxu0 0
      %1371 = vmatpush2.bf16.msra.mxu0 0
      %1372 = vmatprep.subr.bf16.mxu0 0
      %1373 = vmatpush2.bf16.msra.mxu0 0
      %1374 = vmatprep.subr.bf16.mxu0 0
      %1375 = vmatpush2.bf16.msra.mxu0 0
      %1376 = vmatprep.subr.bf16.mxu0 0
      %1377 = vmatpush2.bf16.msra.mxu0 0
      %1378 = vmatprep.subr.bf16.mxu0 0
      %1379 = vmatpush2.bf16.msra.mxu0 0
      %1380 = vmatprep.subr.bf16.mxu0 0
      %1381 = vmatpush2.bf16.msra.mxu0 0
      %1382 = vmatprep.subr.bf16.mxu0 0
      %1383 = vmatpush2.bf16.msra.mxu0 0
      %1384 = vmatprep.subr.bf16.mxu0 0
      %1385 = vmatpush2.bf16.msra.mxu0 0
      %1386 = vmatprep.mubr.bf16.mxu0 0
      %1387 = vmatmul.mubr.bf16.gmra.mxu0 %v1284
      %v1388 = vpop.f32.mrf.mxu0
      %v1389 = vadd.f32 0.0, %v1388
      %v1390 = vpop.f32.mrf.mxu0
      %v1391 = vadd.f32 0.0, %v1390
      %v1392 = vpop.f32.mrf.mxu0
      %v1393 = vadd.f32 0.0, %v1392
      %v1394 = vpop.f32.mrf.mxu0
      %v1395 = vadd.f32 0.0, %v1394
      %1396 = vmatprep.mubr.bf16.mxu0 0
      %1397 = vmatmul.mubr.bf16.gmra.mxu0 %v1287
      %v1398 = vpop.f32.mrf.mxu0
      %v1399 = vadd.f32 0.0, %v1398
      %v1400 = vpop.f32.mrf.mxu0
      %v1401 = vadd.f32 0.0, %v1400
      %v1402 = vpop.f32.mrf.mxu0
      %v1403 = vadd.f32 0.0, %v1402
      %v1404 = vpop.f32.mrf.mxu0
      %v1405 = vadd.f32 0.0, %v1404
      %1406 = vdwg.mxu0
      %v1407 = vadd.f32 %v1237, %v1336
      %v1408 = vadd.f32 %v1238, %v1338
      %v1409 = vadd.f32 %v1239, %v1389
      %v1410 = vadd.f32 %v1240, %v1391
      %v1411 = vadd.f32 %v1241, %v1340
      %v1412 = vadd.f32 %v1242, %v1342
      %v1413 = vadd.f32 %v1243, %v1393
      %v1414 = vadd.f32 %v1244, %v1395
      %v1415 = vadd.f32 %v1245, %v1346
      %v1416 = vadd.f32 %v1246, %v1348
      %v1417 = vadd.f32 %v1247, %v1399
      %v1418 = vadd.f32 %v1248, %v1401
      %v1419 = vadd.f32 %v1249, %v1350
      %v1420 = vadd.f32 %v1250, %v1352
      %v1421 = vadd.f32 %v1251, %v1403
      %v1422 = vadd.f32 %v1252, %v1405
      %s1423 = scalar_lea.vmem %s1, 96
      %v1424 = vld [vmem:[%s1423] sm:$0xf]
      %v1425 = vld [vmem:[%s1423 + $0x4] sm:$0xf]
      %v1426 = vld [vmem:[%s1423 + $0x8] sm:$0xf]
      %v1427 = vld [vmem:[%s1423 + $0xc] sm:$0xf]
      %v1432 = vunpack.c.l.b16 %v1424
      %v1433 = vunpack.c.l.b16 %v1425
      %v1434 = vunpack.c.l.b16 %v1426
      %v1435 = vunpack.c.l.b16 %v1427
      %v1436 = vpack.c.b16 %v1433, %v1432
      %v1437 = vpack.c.b16 %v1435, %v1434
      %1438 = vrot.lane.b32.xlu0 %v439, 64
      %v1439 = vpop.permute.xlu0 %1438
      %1440 = vrot.lane.b32.xlu0 %v440, 64
      %v1441 = vpop.permute.xlu0 %1440
      %1442 = vrot.lane.b32.xlu0 %v441, 64
      %v1443 = vpop.permute.xlu0 %1442
      %1444 = vrot.lane.b32.xlu0 %v442, 64
      %v1445 = vpop.permute.xlu0 %1444
      %1446 = vrot.lane.b32.xlu0 %v443, 64
      %v1447 = vpop.permute.xlu0 %1446
      %vm1448 = vcmask 523264
      %v1449 = vsel %vm1448, %v1439, %v1441
      %v1450 = vsel %vm1448, %v1441, %v1443
      %v1451 = vsel %vm1448, %v1443, %v1445
      %v1452 = vsel %vm1448, %v1445, %v1447
      %v1454 = vsel %vm483, %v1436, 0
      %v1457 = vsel %vm483, %v1437, 0
      %v1460 = vsel %vm490, %v1449, 0
      %v1463 = vsel %vm490, %v1450, 0
      %v1466 = vsel %vm490, %v1451, 0
      %v1469 = vsel %vm490, %v1452, 0
      %1471 = vmatprep.subr.bf16.mxu0 0
      %1472 = vmatpush1.bf16.msra.mxu0 0
      %1473 = vmatprep.subr.bf16.mxu0 0
      %1474 = vmatpush1.bf16.msra.mxu0 0
      %1475 = vmatprep.subr.bf16.mxu0 0
      %1476 = vmatpush1.bf16.msra.mxu0 0
      %1477 = vmatprep.subr.bf16.mxu0 0
      %1478 = vmatpush1.bf16.msra.mxu0 0
      %1479 = vmatprep.subr.bf16.mxu0 0
      %1480 = vmatpush1.bf16.msra.mxu0 0
      %1481 = vmatprep.subr.bf16.mxu0 0
      %1482 = vmatpush1.bf16.msra.mxu0 0
      %1483 = vmatprep.subr.bf16.mxu0 0
      %1484 = vmatpush1.bf16.msra.mxu0 0
      %1485 = vmatprep.subr.bf16.mxu0 %v1463
      %1486 = vmatpush1.bf16.msra.mxu0 %v1460
      %1487 = vmatprep.subr.bf16.mxu0 0
      %1488 = vmatpush2.bf16.msra.mxu0 0
      %1489 = vmatprep.subr.bf16.mxu0 0
      %1490 = vmatpush2.bf16.msra.mxu0 0
      %1491 = vmatprep.subr.bf16.mxu0 0
      %1492 = vmatpush2.bf16.msra.mxu0 0
      %1493 = vmatprep.subr.bf16.mxu0 0
      %1494 = vmatpush2.bf16.msra.mxu0 0
      %1495 = vmatprep.subr.bf16.mxu0 0
      %1496 = vmatpush2.bf16.msra.mxu0 0
      %1497 = vmatprep.subr.bf16.mxu0 0
      %1498 = vmatpush2.bf16.msra.mxu0 0
      %1499 = vmatprep.subr.bf16.mxu0 0
      %1500 = vmatpush2.bf16.msra.mxu0 0
      %1501 = vmatprep.subr.bf16.mxu0 0
      %1502 = vmatpush2.bf16.msra.mxu0 0
      %1503 = vmatprep.mubr.bf16.mxu0 0
      %1504 = vmatmul.mubr.bf16.gmra.mxu0 %v1454
      %v1505 = vpop.f32.mrf.mxu0
      %v1506 = vadd.f32 0.0, %v1505
      %v1507 = vpop.f32.mrf.mxu0
      %v1508 = vadd.f32 0.0, %v1507
      %v1509 = vpop.f32.mrf.mxu0
      %v1510 = vadd.f32 0.0, %v1509
      %v1511 = vpop.f32.mrf.mxu0
      %v1512 = vadd.f32 0.0, %v1511
      %1513 = vmatprep.mubr.bf16.mxu0 0
      %1514 = vmatmul.mubr.bf16.gmra.mxu0 %v1457
      %v1515 = vpop.f32.mrf.mxu0
      %v1516 = vadd.f32 0.0, %v1515
      %v1517 = vpop.f32.mrf.mxu0
      %v1518 = vadd.f32 0.0, %v1517
      %v1519 = vpop.f32.mrf.mxu0
      %v1520 = vadd.f32 0.0, %v1519
      %v1521 = vpop.f32.mrf.mxu0
      %v1522 = vadd.f32 0.0, %v1521
      %1523 = vdwg.mxu0
      %1524 = vmatprep.subr.bf16.mxu0 0
      %1525 = vmatpush1.bf16.msra.mxu0 0
      %1526 = vmatprep.subr.bf16.mxu0 0
      %1527 = vmatpush1.bf16.msra.mxu0 0
      %1528 = vmatprep.subr.bf16.mxu0 0
      %1529 = vmatpush1.bf16.msra.mxu0 0
      %1530 = vmatprep.subr.bf16.mxu0 0
      %1531 = vmatpush1.bf16.msra.mxu0 0
      %1532 = vmatprep.subr.bf16.mxu0 0
      %1533 = vmatpush1.bf16.msra.mxu0 0
      %1534 = vmatprep.subr.bf16.mxu0 0
      %1535 = vmatpush1.bf16.msra.mxu0 0
      %1536 = vmatprep.subr.bf16.mxu0 0
      %1537 = vmatpush1.bf16.msra.mxu0 0
      %1538 = vmatprep.subr.bf16.mxu0 %v1469
      %1539 = vmatpush1.bf16.msra.mxu0 %v1466
      %1540 = vmatprep.subr.bf16.mxu0 0
      %1541 = vmatpush2.bf16.msra.mxu0 0
      %1542 = vmatprep.subr.bf16.mxu0 0
      %1543 = vmatpush2.bf16.msra.mxu0 0
      %1544 = vmatprep.subr.bf16.mxu0 0
      %1545 = vmatpush2.bf16.msra.mxu0 0
      %1546 = vmatprep.subr.bf16.mxu0 0
      %1547 = vmatpush2.bf16.msra.mxu0 0
      %1548 = vmatprep.subr.bf16.mxu0 0
      %1549 = vmatpush2.bf16.msra.mxu0 0
      %1550 = vmatprep.subr.bf16.mxu0 0
      %1551 = vmatpush2.bf16.msra.mxu0 0
      %1552 = vmatprep.subr.bf16.mxu0 0
      %1553 = vmatpush2.bf16.msra.mxu0 0
      %1554 = vmatprep.subr.bf16.mxu0 0
      %1555 = vmatpush2.bf16.msra.mxu0 0
      %1556 = vmatprep.mubr.bf16.mxu0 0
      %1557 = vmatmul.mubr.bf16.gmra.mxu0 %v1454
      %v1558 = vpop.f32.mrf.mxu0
      %v1559 = vadd.f32 0.0, %v1558
      %v1560 = vpop.f32.mrf.mxu0
      %v1561 = vadd.f32 0.0, %v1560
      %v1562 = vpop.f32.mrf.mxu0
      %v1563 = vadd.f32 0.0, %v1562
      %v1564 = vpop.f32.mrf.mxu0
      %v1565 = vadd.f32 0.0, %v1564
      %1566 = vmatprep.mubr.bf16.mxu0 0
      %1567 = vmatmul.mubr.bf16.gmra.mxu0 %v1457
      %v1568 = vpop.f32.mrf.mxu0
      %v1569 = vadd.f32 0.0, %v1568
      %v1570 = vpop.f32.mrf.mxu0
      %v1571 = vadd.f32 0.0, %v1570
      %v1572 = vpop.f32.mrf.mxu0
      %v1573 = vadd.f32 0.0, %v1572
      %v1574 = vpop.f32.mrf.mxu0
      %v1575 = vadd.f32 0.0, %v1574
      %1576 = vdwg.mxu0
      %v1577 = vadd.f32 %v1407, %v1506
      %v1578 = vadd.f32 %v1408, %v1508
      %v1579 = vadd.f32 %v1409, %v1559
      %v1580 = vadd.f32 %v1410, %v1561
      %v1581 = vadd.f32 %v1411, %v1510
      %v1582 = vadd.f32 %v1412, %v1512
      %v1583 = vadd.f32 %v1413, %v1563
      %v1584 = vadd.f32 %v1414, %v1565
      %v1585 = vadd.f32 %v1415, %v1516
      %v1586 = vadd.f32 %v1416, %v1518
      %v1587 = vadd.f32 %v1417, %v1569
      %v1588 = vadd.f32 %v1418, %v1571
      %v1589 = vadd.f32 %v1419, %v1520
      %v1590 = vadd.f32 %v1420, %v1522
      %v1591 = vadd.f32 %v1421, %v1573
      %v1592 = vadd.f32 %v1422, %v1575
      %s1593 = scalar_lea.vmem %s1, 112
      %v1594 = vld [vmem:[%s1593] sm:$0xf]
      %v1595 = vld [vmem:[%s1593 + $0x4] sm:$0xf]
      %v1596 = vld [vmem:[%s1593 + $0x8] sm:$0xf]
      %v1597 = vld [vmem:[%s1593 + $0xc] sm:$0xf]
      %v1602 = vunpack.c.l.b16 %v1594
      %v1603 = vunpack.c.l.b16 %v1595
      %v1604 = vunpack.c.l.b16 %v1596
      %v1605 = vunpack.c.l.b16 %v1597
      %v1606 = vpack.c.b16 %v1603, %v1602
      %v1607 = vpack.c.b16 %v1605, %v1604
      %1608 = vrot.lane.b32.xlu0 %v439, 63
      %v1609 = vpop.permute.xlu0 %1608
      %1610 = vrot.lane.b32.xlu0 %v440, 63
      %v1611 = vpop.permute.xlu0 %1610
      %1612 = vrot.lane.b32.xlu0 %v441, 63
      %v1613 = vpop.permute.xlu0 %1612
      %1614 = vrot.lane.b32.xlu0 %v442, 63
      %v1615 = vpop.permute.xlu0 %1614
      %1616 = vrot.lane.b32.xlu0 %v443, 63
      %v1617 = vpop.permute.xlu0 %1616
      %vm1618 = vcmask 515072
      %v1619 = vsel %vm1618, %v1609, %v1611
      %v1620 = vsel %vm1618, %v1611, %v1613
      %v1621 = vsel %vm1618, %v1613, %v1615
      %v1622 = vsel %vm1618, %v1615, %v1617
      %v1624 = vsel %vm483, %v1606, 0
      %v1627 = vsel %vm483, %v1607, 0
      %v1630 = vsel %vm490, %v1619, 0
      %v1633 = vsel %vm490, %v1620, 0
      %v1636 = vsel %vm490, %v1621, 0
      %v1639 = vsel %vm490, %v1622, 0
      %1641 = vmatprep.subr.bf16.mxu0 0
      %1642 = vmatpush1.bf16.msra.mxu0 0
      %1643 = vmatprep.subr.bf16.mxu0 0
      %1644 = vmatpush1.bf16.msra.mxu0 0
      %1645 = vmatprep.subr.bf16.mxu0 0
      %1646 = vmatpush1.bf16.msra.mxu0 0
      %1647 = vmatprep.subr.bf16.mxu0 0
      %1648 = vmatpush1.bf16.msra.mxu0 0
      %1649 = vmatprep.subr.bf16.mxu0 0
      %1650 = vmatpush1.bf16.msra.mxu0 0
      %1651 = vmatprep.subr.bf16.mxu0 0
      %1652 = vmatpush1.bf16.msra.mxu0 0
      %1653 = vmatprep.subr.bf16.mxu0 0
      %1654 = vmatpush1.bf16.msra.mxu0 0
      %1655 = vmatprep.subr.bf16.mxu0 %v1633
      %1656 = vmatpush1.bf16.msra.mxu0 %v1630
      %1657 = vmatprep.subr.bf16.mxu0 0
      %1658 = vmatpush2.bf16.msra.mxu0 0
      %1659 = vmatprep.subr.bf16.mxu0 0
      %1660 = vmatpush2.bf16.msra.mxu0 0
      %1661 = vmatprep.subr.bf16.mxu0 0
      %1662 = vmatpush2.bf16.msra.mxu0 0
      %1663 = vmatprep.subr.bf16.mxu0 0
      %1664 = vmatpush2.bf16.msra.mxu0 0
      %1665 = vmatprep.subr.bf16.mxu0 0
      %1666 = vmatpush2.bf16.msra.mxu0 0
      %1667 = vmatprep.subr.bf16.mxu0 0
      %1668 = vmatpush2.bf16.msra.mxu0 0
      %1669 = vmatprep.subr.bf16.mxu0 0
      %1670 = vmatpush2.bf16.msra.mxu0 0
      %1671 = vmatprep.subr.bf16.mxu0 0
      %1672 = vmatpush2.bf16.msra.mxu0 0
      %1673 = vmatprep.mubr.bf16.mxu0 0
      %1674 = vmatmul.mubr.bf16.gmra.mxu0 %v1624
      %v1675 = vpop.f32.mrf.mxu0
      %v1676 = vadd.f32 0.0, %v1675
      %v1677 = vpop.f32.mrf.mxu0
      %v1678 = vadd.f32 0.0, %v1677
      %v1679 = vpop.f32.mrf.mxu0
      %v1680 = vadd.f32 0.0, %v1679
      %v1681 = vpop.f32.mrf.mxu0
      %v1682 = vadd.f32 0.0, %v1681
      %1683 = vmatprep.mubr.bf16.mxu0 0
      %1684 = vmatmul.mubr.bf16.gmra.mxu0 %v1627
      %v1685 = vpop.f32.mrf.mxu0
      %v1686 = vadd.f32 0.0, %v1685
      %v1687 = vpop.f32.mrf.mxu0
      %v1688 = vadd.f32 0.0, %v1687
      %v1689 = vpop.f32.mrf.mxu0
      %v1690 = vadd.f32 0.0, %v1689
      %v1691 = vpop.f32.mrf.mxu0
      %v1692 = vadd.f32 0.0, %v1691
      %1693 = vdwg.mxu0
      %1694 = vmatprep.subr.bf16.mxu0 0
      %1695 = vmatpush1.bf16.msra.mxu0 0
      %1696 = vmatprep.subr.bf16.mxu0 0
      %1697 = vmatpush1.bf16.msra.mxu0 0
      %1698 = vmatprep.subr.bf16.mxu0 0
      %1699 = vmatpush1.bf16.msra.mxu0 0
      %1700 = vmatprep.subr.bf16.mxu0 0
      %1701 = vmatpush1.bf16.msra.mxu0 0
      %1702 = vmatprep.subr.bf16.mxu0 0
      %1703 = vmatpush1.bf16.msra.mxu0 0
      %1704 = vmatprep.subr.bf16.mxu0 0
      %1705 = vmatpush1.bf16.msra.mxu0 0
      %1706 = vmatprep.subr.bf16.mxu0 0
      %1707 = vmatpush1.bf16.msra.mxu0 0
      %1708 = vmatprep.subr.bf16.mxu0 %v1639
      %1709 = vmatpush1.bf16.msra.mxu0 %v1636
      %1710 = vmatprep.subr.bf16.mxu0 0
      %1711 = vmatpush2.bf16.msra.mxu0 0
      %1712 = vmatprep.subr.bf16.mxu0 0
      %1713 = vmatpush2.bf16.msra.mxu0 0
      %1714 = vmatprep.subr.bf16.mxu0 0
      %1715 = vmatpush2.bf16.msra.mxu0 0
      %1716 = vmatprep.subr.bf16.mxu0 0
      %1717 = vmatpush2.bf16.msra.mxu0 0
      %1718 = vmatprep.subr.bf16.mxu0 0
      %1719 = vmatpush2.bf16.msra.mxu0 0
      %1720 = vmatprep.subr.bf16.mxu0 0
      %1721 = vmatpush2.bf16.msra.mxu0 0
      %1722 = vmatprep.subr.bf16.mxu0 0
      %1723 = vmatpush2.bf16.msra.mxu0 0
      %1724 = vmatprep.subr.bf16.mxu0 0
      %1725 = vmatpush2.bf16.msra.mxu0 0
      %1726 = vmatprep.mubr.bf16.mxu0 0
      %1727 = vmatmul.mubr.bf16.gmra.mxu0 %v1624
      %v1728 = vpop.f32.mrf.mxu0
      %v1729 = vadd.f32 0.0, %v1728
      %v1730 = vpop.f32.mrf.mxu0
      %v1731 = vadd.f32 0.0, %v1730
      %v1732 = vpop.f32.mrf.mxu0
      %v1733 = vadd.f32 0.0, %v1732
      %v1734 = vpop.f32.mrf.mxu0
      %v1735 = vadd.f32 0.0, %v1734
      %1736 = vmatprep.mubr.bf16.mxu0 0
      %1737 = vmatmul.mubr.bf16.gmra.mxu0 %v1627
      %v1738 = vpop.f32.mrf.mxu0
      %v1739 = vadd.f32 0.0, %v1738
      %v1740 = vpop.f32.mrf.mxu0
      %v1741 = vadd.f32 0.0, %v1740
      %v1742 = vpop.f32.mrf.mxu0
      %v1743 = vadd.f32 0.0, %v1742
      %v1744 = vpop.f32.mrf.mxu0
      %v1745 = vadd.f32 0.0, %v1744
      %1746 = vdwg.mxu0
      %v1747 = vadd.f32 %v1577, %v1676
      %v1748 = vadd.f32 %v1578, %v1678
      %v1749 = vadd.f32 %v1579, %v1729
      %v1750 = vadd.f32 %v1580, %v1731
      %v1751 = vadd.f32 %v1581, %v1680
      %v1752 = vadd.f32 %v1582, %v1682
      %v1753 = vadd.f32 %v1583, %v1733
      %v1754 = vadd.f32 %v1584, %v1735
      %v1755 = vadd.f32 %v1585, %v1686
      %v1756 = vadd.f32 %v1586, %v1688
      %v1757 = vadd.f32 %v1587, %v1739
      %v1758 = vadd.f32 %v1588, %v1741
      %v1759 = vadd.f32 %v1589, %v1690
      %v1760 = vadd.f32 %v1590, %v1692
      %v1761 = vadd.f32 %v1591, %v1743
      %v1762 = vadd.f32 %v1592, %v1745
      %s1763 = scalar_lea.vmem %s1, 128
      %v1764 = vld [vmem:[%s1763] sm:$0xf]
      %v1765 = vld [vmem:[%s1763 + $0x4] sm:$0xf]
      %v1766 = vld [vmem:[%s1763 + $0x8] sm:$0xf]
      %v1767 = vld [vmem:[%s1763 + $0xc] sm:$0xf]
      %v1772 = vunpack.c.l.b16 %v1764
      %v1773 = vunpack.c.l.b16 %v1765
      %v1774 = vunpack.c.l.b16 %v1766
      %v1775 = vunpack.c.l.b16 %v1767
      %v1776 = vpack.c.b16 %v1773, %v1772
      %v1777 = vpack.c.b16 %v1775, %v1774
      %1778 = vrot.lane.b32.xlu0 %v439, 62
      %v1779 = vpop.permute.xlu0 %1778
      %1780 = vrot.lane.b32.xlu0 %v440, 62
      %v1781 = vpop.permute.xlu0 %1780
      %1782 = vrot.lane.b32.xlu0 %v441, 62
      %v1783 = vpop.permute.xlu0 %1782
      %1784 = vrot.lane.b32.xlu0 %v442, 62
      %v1785 = vpop.permute.xlu0 %1784
      %1786 = vrot.lane.b32.xlu0 %v443, 62
      %v1787 = vpop.permute.xlu0 %1786
      %vm1788 = vcmask 506880
      %v1789 = vsel %vm1788, %v1779, %v1781
      %v1790 = vsel %vm1788, %v1781, %v1783
      %v1791 = vsel %vm1788, %v1783, %v1785
      %v1792 = vsel %vm1788, %v1785, %v1787
      %v1794 = vsel %vm483, %v1776, 0
      %v1797 = vsel %vm483, %v1777, 0
      %v1800 = vsel %vm490, %v1789, 0
      %v1803 = vsel %vm490, %v1790, 0
      %v1806 = vsel %vm490, %v1791, 0
      %v1809 = vsel %vm490, %v1792, 0
      %1811 = vmatprep.subr.bf16.mxu0 0
      %1812 = vmatpush1.bf16.msra.mxu0 0
      %1813 = vmatprep.subr.bf16.mxu0 0
      %1814 = vmatpush1.bf16.msra.mxu0 0
      %1815 = vmatprep.subr.bf16.mxu0 0
      %1816 = vmatpush1.bf16.msra.mxu0 0
      %1817 = vmatprep.subr.bf16.mxu0 0
      %1818 = vmatpush1.bf16.msra.mxu0 0
      %1819 = vmatprep.subr.bf16.mxu0 0
      %1820 = vmatpush1.bf16.msra.mxu0 0
      %1821 = vmatprep.subr.bf16.mxu0 0
      %1822 = vmatpush1.bf16.msra.mxu0 0
      %1823 = vmatprep.subr.bf16.mxu0 0
      %1824 = vmatpush1.bf16.msra.mxu0 0
      %1825 = vmatprep.subr.bf16.mxu0 %v1803
      %1826 = vmatpush1.bf16.msra.mxu0 %v1800
      %1827 = vmatprep.subr.bf16.mxu0 0
      %1828 = vmatpush2.bf16.msra.mxu0 0
      %1829 = vmatprep.subr.bf16.mxu0 0
      %1830 = vmatpush2.bf16.msra.mxu0 0
      %1831 = vmatprep.subr.bf16.mxu0 0
      %1832 = vmatpush2.bf16.msra.mxu0 0
      %1833 = vmatprep.subr.bf16.mxu0 0
      %1834 = vmatpush2.bf16.msra.mxu0 0
      %1835 = vmatprep.subr.bf16.mxu0 0
      %1836 = vmatpush2.bf16.msra.mxu0 0
      %1837 = vmatprep.subr.bf16.mxu0 0
      %1838 = vmatpush2.bf16.msra.mxu0 0
      %1839 = vmatprep.subr.bf16.mxu0 0
      %1840 = vmatpush2.bf16.msra.mxu0 0
      %1841 = vmatprep.subr.bf16.mxu0 0
      %1842 = vmatpush2.bf16.msra.mxu0 0
      %1843 = vmatprep.mubr.bf16.mxu0 0
      %1844 = vmatmul.mubr.bf16.gmra.mxu0 %v1794
      %v1845 = vpop.f32.mrf.mxu0
      %v1846 = vadd.f32 0.0, %v1845
      %v1847 = vpop.f32.mrf.mxu0
      %v1848 = vadd.f32 0.0, %v1847
      %v1849 = vpop.f32.mrf.mxu0
      %v1850 = vadd.f32 0.0, %v1849
      %v1851 = vpop.f32.mrf.mxu0
      %v1852 = vadd.f32 0.0, %v1851
      %1853 = vmatprep.mubr.bf16.mxu0 0
      %1854 = vmatmul.mubr.bf16.gmra.mxu0 %v1797
      %v1855 = vpop.f32.mrf.mxu0
      %v1856 = vadd.f32 0.0, %v1855
      %v1857 = vpop.f32.mrf.mxu0
      %v1858 = vadd.f32 0.0, %v1857
      %v1859 = vpop.f32.mrf.mxu0
      %v1860 = vadd.f32 0.0, %v1859
      %v1861 = vpop.f32.mrf.mxu0
      %v1862 = vadd.f32 0.0, %v1861
      %1863 = vdwg.mxu0
      %1864 = vmatprep.subr.bf16.mxu0 0
      %1865 = vmatpush1.bf16.msra.mxu0 0
      %1866 = vmatprep.subr.bf16.mxu0 0
      %1867 = vmatpush1.bf16.msra.mxu0 0
      %1868 = vmatprep.subr.bf16.mxu0 0
      %1869 = vmatpush1.bf16.msra.mxu0 0
      %1870 = vmatprep.subr.bf16.mxu0 0
      %1871 = vmatpush1.bf16.msra.mxu0 0
      %1872 = vmatprep.subr.bf16.mxu0 0
      %1873 = vmatpush1.bf16.msra.mxu0 0
      %1874 = vmatprep.subr.bf16.mxu0 0
      %1875 = vmatpush1.bf16.msra.mxu0 0
      %1876 = vmatprep.subr.bf16.mxu0 0
      %1877 = vmatpush1.bf16.msra.mxu0 0
      %1878 = vmatprep.subr.bf16.mxu0 %v1809
      %1879 = vmatpush1.bf16.msra.mxu0 %v1806
      %1880 = vmatprep.subr.bf16.mxu0 0
      %1881 = vmatpush2.bf16.msra.mxu0 0
      %1882 = vmatprep.subr.bf16.mxu0 0
      %1883 = vmatpush2.bf16.msra.mxu0 0
      %1884 = vmatprep.subr.bf16.mxu0 0
      %1885 = vmatpush2.bf16.msra.mxu0 0
      %1886 = vmatprep.subr.bf16.mxu0 0
      %1887 = vmatpush2.bf16.msra.mxu0 0
      %1888 = vmatprep.subr.bf16.mxu0 0
      %1889 = vmatpush2.bf16.msra.mxu0 0
      %1890 = vmatprep.subr.bf16.mxu0 0
      %1891 = vmatpush2.bf16.msra.mxu0 0
      %1892 = vmatprep.subr.bf16.mxu0 0
      %1893 = vmatpush2.bf16.msra.mxu0 0
      %1894 = vmatprep.subr.bf16.mxu0 0
      %1895 = vmatpush2.bf16.msra.mxu0 0
      %1896 = vmatprep.mubr.bf16.mxu0 0
      %1897 = vmatmul.mubr.bf16.gmra.mxu0 %v1794
      %v1898 = vpop.f32.mrf.mxu0
      %v1899 = vadd.f32 0.0, %v1898
      %v1900 = vpop.f32.mrf.mxu0
      %v1901 = vadd.f32 0.0, %v1900
      %v1902 = vpop.f32.mrf.mxu0
      %v1903 = vadd.f32 0.0, %v1902
      %v1904 = vpop.f32.mrf.mxu0
      %v1905 = vadd.f32 0.0, %v1904
      %1906 = vmatprep.mubr.bf16.mxu0 0
      %1907 = vmatmul.mubr.bf16.gmra.mxu0 %v1797
      %v1908 = vpop.f32.mrf.mxu0
      %v1909 = vadd.f32 0.0, %v1908
      %v1910 = vpop.f32.mrf.mxu0
      %v1911 = vadd.f32 0.0, %v1910
      %v1912 = vpop.f32.mrf.mxu0
      %v1913 = vadd.f32 0.0, %v1912
      %v1914 = vpop.f32.mrf.mxu0
      %v1915 = vadd.f32 0.0, %v1914
      %1916 = vdwg.mxu0
      %v1917 = vadd.f32 %v1747, %v1846
      %v1918 = vadd.f32 %v1748, %v1848
      %v1919 = vadd.f32 %v1749, %v1899
      %v1920 = vadd.f32 %v1750, %v1901
      %v1921 = vadd.f32 %v1751, %v1850
      %v1922 = vadd.f32 %v1752, %v1852
      %v1923 = vadd.f32 %v1753, %v1903
      %v1924 = vadd.f32 %v1754, %v1905
      %v1925 = vadd.f32 %v1755, %v1856
      %v1926 = vadd.f32 %v1756, %v1858
      %v1927 = vadd.f32 %v1757, %v1909
      %v1928 = vadd.f32 %v1758, %v1911
      %v1929 = vadd.f32 %v1759, %v1860
      %v1930 = vadd.f32 %v1760, %v1862
      %v1931 = vadd.f32 %v1761, %v1913
      %v1932 = vadd.f32 %v1762, %v1915
      %v1933 = vld [vmem:[%s2] sm:$0xff]
      %v1934 = vld [vmem:[%s2 + $0x8] sm:$0xff]
      %v1935 = vld [vmem:[%s2 + $0x10] sm:$0xff]
      %v1936 = vld [vmem:[%s2 + $0x18] sm:$0xff]
      %1938 = vset.pattern.permute.xlu0 0
      %1939 = vperm.xlu0 %1938, %v1933
      %v1940 = vpop.permute.xlu0 %1939
      %1943 = vset.pattern.permute.xlu0 0
      %1944 = vperm.xlu0 %1943, %v1934
      %v1945 = vpop.permute.xlu0 %1944
      %1948 = vset.pattern.permute.xlu0 0
      %1949 = vperm.xlu0 %1948, %v1935
      %v1950 = vpop.permute.xlu0 %1949
      %1953 = vset.pattern.permute.xlu0 0
      %1954 = vperm.xlu0 %1953, %v1936
      %v1955 = vpop.permute.xlu0 %1954
      %v1957 = vadd.f32 %v1917, %v1940
      %v1958 = vadd.f32 %v1918, %v1940
      %v1959 = vadd.f32 %v1919, %v1940
      %v1960 = vadd.f32 %v1920, %v1940
      %v1961 = vadd.f32 %v1921, %v1945
      %v1962 = vadd.f32 %v1922, %v1945
      %v1963 = vadd.f32 %v1923, %v1945
      %v1964 = vadd.f32 %v1924, %v1945
      %v1965 = vadd.f32 %v1925, %v1950
      %v1966 = vadd.f32 %v1926, %v1950
      %v1967 = vadd.f32 %v1927, %v1950
      %v1968 = vadd.f32 %v1928, %v1950
      %v1969 = vadd.f32 %v1929, %v1955
      %v1970 = vadd.f32 %v1930, %v1955
      %v1971 = vadd.f32 %v1931, %v1955
      %v1972 = vadd.f32 %v1932, %v1955
      %vm1973 = vcmp.gt.f32.partialorder %v1957, 0.0
      %vm1974 = vcmp.gt.f32.partialorder %v1958, 0.0
      %vm1975 = vcmp.gt.f32.partialorder %v1959, 0.0
      %vm1976 = vcmp.gt.f32.partialorder %v1960, 0.0
      %vm1977 = vcmp.gt.f32.partialorder %v1961, 0.0
      %vm1978 = vcmp.gt.f32.partialorder %v1962, 0.0
      %vm1979 = vcmp.gt.f32.partialorder %v1963, 0.0
      %vm1980 = vcmp.gt.f32.partialorder %v1964, 0.0
      %vm1981 = vcmp.gt.f32.partialorder %v1965, 0.0
      %vm1982 = vcmp.gt.f32.partialorder %v1966, 0.0
      %vm1983 = vcmp.gt.f32.partialorder %v1967, 0.0
      %vm1984 = vcmp.gt.f32.partialorder %v1968, 0.0
      %vm1985 = vcmp.gt.f32.partialorder %v1969, 0.0
      %vm1986 = vcmp.gt.f32.partialorder %v1970, 0.0
      %vm1987 = vcmp.gt.f32.partialorder %v1971, 0.0
      %vm1988 = vcmp.gt.f32.partialorder %v1972, 0.0
      %v1989 = vld [vmem:[%s3] sm:$0xff]
      %v1990 = vld [vmem:[%s3 + $0x8] sm:$0xff]
      %v1991 = vld [vmem:[%s3 + $0x10] sm:$0xff]
      %v1992 = vld [vmem:[%s3 + $0x18] sm:$0xff]
      %1994 = vset.pattern.permute.xlu0 0
      %1995 = vperm.xlu0 %1994, %v1989
      %v1996 = vpop.permute.xlu0 %1995
      %1999 = vset.pattern.permute.xlu0 0
      %2000 = vperm.xlu0 %1999, %v1990
      %v2001 = vpop.permute.xlu0 %2000
      %2004 = vset.pattern.permute.xlu0 0
      %2005 = vperm.xlu0 %2004, %v1991
      %v2006 = vpop.permute.xlu0 %2005
      %2009 = vset.pattern.permute.xlu0 0
      %2010 = vperm.xlu0 %2009, %v1992
      %v2011 = vpop.permute.xlu0 %2010
      %v2013 = vmul.f32 %v1996, %v1957
      %v2014 = vmul.f32 %v1996, %v1958
      %v2015 = vmul.f32 %v1996, %v1959
      %v2016 = vmul.f32 %v1996, %v1960
      %v2017 = vmul.f32 %v2001, %v1961
      %v2018 = vmul.f32 %v2001, %v1962
      %v2019 = vmul.f32 %v2001, %v1963
      %v2020 = vmul.f32 %v2001, %v1964
      %v2021 = vmul.f32 %v2006, %v1965
      %v2022 = vmul.f32 %v2006, %v1966
      %v2023 = vmul.f32 %v2006, %v1967
      %v2024 = vmul.f32 %v2006, %v1968
      %v2025 = vmul.f32 %v2011, %v1969
      %v2026 = vmul.f32 %v2011, %v1970
      %v2027 = vmul.f32 %v2011, %v1971
      %v2028 = vmul.f32 %v2011, %v1972
      %v2029 = vsel %vm1973, %v1957, %v2013
      %v2030 = vsel %vm1974, %v1958, %v2014
      %v2031 = vsel %vm1975, %v1959, %v2015
      %v2032 = vsel %vm1976, %v1960, %v2016
      %v2033 = vsel %vm1977, %v1961, %v2017
      %v2034 = vsel %vm1978, %v1962, %v2018
      %v2035 = vsel %vm1979, %v1963, %v2019
      %v2036 = vsel %vm1980, %v1964, %v2020
      %v2037 = vsel %vm1981, %v1965, %v2021
      %v2038 = vsel %vm1982, %v1966, %v2022
      %v2039 = vsel %vm1983, %v1967, %v2023
      %v2040 = vsel %vm1984, %v1968, %v2024
      %v2041 = vsel %vm1985, %v1969, %v2025
      %v2042 = vsel %vm1986, %v1970, %v2026
      %v2043 = vsel %vm1987, %v1971, %v2027
      %v2044 = vsel %vm1988, %v1972, %v2028
      %v2045 = vsel %vm426, 1, 0
      %v2046 = vsel %vm427, 1, 0
      %v2047 = vsel %vm428, 1, 0
      %v2048 = vsel %vm429, 1, 0
      %vm2049 = vcmp.eq.s32.totalorder %v2045, 1
      %vm2050 = vcmp.eq.s32.totalorder %v2046, 1
      %vm2051 = vcmp.eq.s32.totalorder %v2047, 1
      %vm2052 = vcmp.eq.s32.totalorder %v2048, 1
      %v2053 = vsel %vm2049, %v2029, 0.0
      %v2054 = vsel %vm2050, %v2030, 0.0
      %v2055 = vsel %vm2051, %v2031, 0.0
      %v2056 = vsel %vm2052, %v2032, 0.0
      %v2057 = vsel %vm2049, %v2033, 0.0
      %v2058 = vsel %vm2050, %v2034, 0.0
      %v2059 = vsel %vm2051, %v2035, 0.0
      %v2060 = vsel %vm2052, %v2036, 0.0
      %v2061 = vsel %vm2049, %v2037, 0.0
      %v2062 = vsel %vm2050, %v2038, 0.0
      %v2063 = vsel %vm2051, %v2039, 0.0
      %v2064 = vsel %vm2052, %v2040, 0.0
      %v2065 = vsel %vm2049, %v2041, 0.0
      %v2066 = vsel %vm2050, %v2042, 0.0
      %v2067 = vsel %vm2051, %v2043, 0.0
      %v2068 = vsel %vm2052, %v2044, 0.0
      %2085 = vrot.lane.b32.xlu0 %v2053, 33
      %v2086 = vpop.permute.xlu0 %2085
      %2087 = vrot.lane.b32.xlu0 %v2054, 33
      %v2088 = vpop.permute.xlu0 %2087
      %2089 = vrot.lane.b32.xlu0 %v2055, 33
      %v2090 = vpop.permute.xlu0 %2089
      %2091 = vrot.lane.b32.xlu0 %v2056, 33
      %v2092 = vpop.permute.xlu0 %2091
      %2093 = vrot.lane.b32.xlu0 %v2057, 33
      %v2094 = vpop.permute.xlu0 %2093
      %2095 = vrot.lane.b32.xlu0 %v2058, 33
      %v2096 = vpop.permute.xlu0 %2095
      %2097 = vrot.lane.b32.xlu0 %v2059, 33
      %v2098 = vpop.permute.xlu0 %2097
      %2099 = vrot.lane.b32.xlu0 %v2060, 33
      %v2100 = vpop.permute.xlu0 %2099
      %2101 = vrot.lane.b32.xlu0 %v2061, 33
      %v2102 = vpop.permute.xlu0 %2101
      %2103 = vrot.lane.b32.xlu0 %v2062, 33
      %v2104 = vpop.permute.xlu0 %2103
      %2105 = vrot.lane.b32.xlu0 %v2063, 33
      %v2106 = vpop.permute.xlu0 %2105
      %2107 = vrot.lane.b32.xlu0 %v2064, 33
      %v2108 = vpop.permute.xlu0 %2107
      %2109 = vrot.lane.b32.xlu0 %v2065, 33
      %v2110 = vpop.permute.xlu0 %2109
      %2111 = vrot.lane.b32.xlu0 %v2066, 33
      %v2112 = vpop.permute.xlu0 %2111
      %2113 = vrot.lane.b32.xlu0 %v2067, 33
      %v2114 = vpop.permute.xlu0 %2113
      %2115 = vrot.lane.b32.xlu0 %v2068, 33
      %v2116 = vpop.permute.xlu0 %2115
      %v2117 = vsel %vm342, %v2086, %v2088
      %v2118 = vsel %vm342, %v2088, %v2090
      %v2119 = vsel %vm342, %v2090, %v2092
      %v2120 = vsel %vm342, %v2094, %v2096
      %v2121 = vsel %vm342, %v2096, %v2098
      %v2122 = vsel %vm342, %v2098, %v2100
      %v2123 = vsel %vm342, %v2102, %v2104
      %v2124 = vsel %vm342, %v2104, %v2106
      %v2125 = vsel %vm342, %v2106, %v2108
      %v2126 = vsel %vm342, %v2110, %v2112
      %v2127 = vsel %vm342, %v2112, %v2114
      %v2128 = vsel %vm342, %v2114, %v2116
      %vm2149 = vcmask 1047816
      %2150 = vst.msk [vmem:[#allocation3] sm:$0xff] %vm2149, %v2086
      %2151 = vst [vmem:[#allocation3 + $0x8] sm:$0xff] %v2117
      %2152 = vst [vmem:[#allocation3 + $0x10] sm:$0xff] %v2118
      %2153 = vst [vmem:[#allocation3 + $0x18] sm:$0xff] %v2119
      %2154 = vst.msk [vmem:[#allocation3 + $0x20] sm:$0xff] %vm342, %v2092
      %2155 = vst.msk [vmem:[#allocation3 + $0x28] sm:$0xff] %vm2149, %v2094
      %2156 = vst [vmem:[#allocation3 + $0x30] sm:$0xff] %v2120
      %2157 = vst [vmem:[#allocation3 + $0x38] sm:$0xff] %v2121
      %2158 = vst [vmem:[#allocation3 + $0x40] sm:$0xff] %v2122
      %2159 = vst.msk [vmem:[#allocation3 + $0x48] sm:$0xff] %vm342, %v2100
      %2160 = vst.msk [vmem:[#allocation3 + $0x50] sm:$0xff] %vm2149, %v2102
      %2161 = vst [vmem:[#allocation3 + $0x58] sm:$0xff] %v2123
      %2162 = vst [vmem:[#allocation3 + $0x60] sm:$0xff] %v2124
      %2163 = vst [vmem:[#allocation3 + $0x68] sm:$0xff] %v2125
      %2164 = vst.msk [vmem:[#allocation3 + $0x70] sm:$0xff] %vm342, %v2108
      %2165 = vst.msk [vmem:[#allocation3 + $0x78] sm:$0xff] %vm2149, %v2110
      %2166 = vst [vmem:[#allocation3 + $0x80] sm:$0xff] %v2126
      %2167 = vst [vmem:[#allocation3 + $0x88] sm:$0xff] %v2127
      %2168 = vst [vmem:[#allocation3 + $0x90] sm:$0xff] %v2128
      %2169 = vst.msk [vmem:[#allocation3 + $0x98] sm:$0xff] %vm342, %v2116
      %v2170 = vld [vmem:[#allocation3] sm:$0xff]
      %v2171 = vld [vmem:[#allocation3 + $0x8] sm:$0xff]
      %v2172 = vld [vmem:[#allocation3 + $0x10] sm:$0xff]
      %v2173 = vld [vmem:[#allocation3 + $0x18] sm:$0xff]
      %v2174 = vld [vmem:[#allocation3 + $0x20] sm:$0xff]
      %v2175 = vld [vmem:[#allocation3 + $0x28] sm:$0xff]
      %v2176 = vld [vmem:[#allocation3 + $0x30] sm:$0xff]
      %v2177 = vld [vmem:[#allocation3 + $0x38] sm:$0xff]
      %v2178 = vld [vmem:[#allocation3 + $0x40] sm:$0xff]
      %v2179 = vld [vmem:[#allocation3 + $0x48] sm:$0xff]
      %v2180 = vld [vmem:[#allocation3 + $0x50] sm:$0xff]
      %v2181 = vld [vmem:[#allocation3 + $0x58] sm:$0xff]
      %v2182 = vld [vmem:[#allocation3 + $0x60] sm:$0xff]
      %v2183 = vld [vmem:[#allocation3 + $0x68] sm:$0xff]
      %v2184 = vld [vmem:[#allocation3 + $0x70] sm:$0xff]
      %v2185 = vld [vmem:[#allocation3 + $0x78] sm:$0xff]
      %v2186 = vld [vmem:[#allocation3 + $0x80] sm:$0xff]
      %v2187 = vld [vmem:[#allocation3 + $0x88] sm:$0xff]
      %v2188 = vld [vmem:[#allocation3 + $0x90] sm:$0xff]
      %v2189 = vld [vmem:[#allocation3 + $0x98] sm:$0xff]
      %v2190 = vpack.c.bf16 %v2175, %v2170
      %v2191 = vpack.c.bf16 %v2176, %v2171
      %v2192 = vpack.c.bf16 %v2177, %v2172
      %v2193 = vpack.c.bf16 %v2178, %v2173
      %v2194 = vpack.c.bf16 %v2179, %v2174
      %v2195 = vpack.c.bf16 %v2185, %v2180
      %v2196 = vpack.c.bf16 %v2186, %v2181
      %v2197 = vpack.c.bf16 %v2187, %v2182
      %v2198 = vpack.c.bf16 %v2188, %v2183
      %v2199 = vpack.c.bf16 %v2189, %v2184
      %v2200 = vld [vmem:[%s4] sm:$0xf]
      %v2201 = vld [vmem:[%s4 + $0x4] sm:$0xf]
      %v2202 = vld [vmem:[%s4 + $0x8] sm:$0xf]
      %v2203 = vld [vmem:[%s4 + $0xc] sm:$0xf]
      %s2204 = scalar_lea.vmem %s4, 16
      %v2205 = vld [vmem:[%s2204] sm:$0xf]
      %v2206 = vld [vmem:[%s2204 + $0x4] sm:$0xf]
      %v2207 = vld [vmem:[%s2204 + $0x8] sm:$0xf]
      %v2208 = vld [vmem:[%s2204 + $0xc] sm:$0xf]
      %v2213 = vunpack.c.l.b16 %v2205
      %v2214 = vunpack.c.l.b16 %v2206
      %v2215 = vunpack.c.l.b16 %v2207
      %v2216 = vunpack.c.l.b16 %v2208
      %v2217 = vpack.c.b16 %v2214, %v2213
      %v2218 = vpack.c.b16 %v2216, %v2215
      %2229 = vrot.lane.b32.xlu0 %v2190, 127
      %v2230 = vpop.permute.xlu0 %2229
      %2231 = vrot.lane.b32.xlu0 %v2191, 127
      %v2232 = vpop.permute.xlu0 %2231
      %2233 = vrot.lane.b32.xlu0 %v2192, 127
      %v2234 = vpop.permute.xlu0 %2233
      %2235 = vrot.lane.b32.xlu0 %v2193, 127
      %v2236 = vpop.permute.xlu0 %2235
      %2237 = vrot.lane.b32.xlu0 %v2194, 127
      %v2238 = vpop.permute.xlu0 %2237
      %2239 = vrot.lane.b32.xlu0 %v2195, 127
      %v2240 = vpop.permute.xlu0 %2239
      %2241 = vrot.lane.b32.xlu0 %v2196, 127
      %v2242 = vpop.permute.xlu0 %2241
      %2243 = vrot.lane.b32.xlu0 %v2197, 127
      %v2244 = vpop.permute.xlu0 %2243
      %2245 = vrot.lane.b32.xlu0 %v2198, 127
      %v2246 = vpop.permute.xlu0 %2245
      %2247 = vrot.lane.b32.xlu0 %v2199, 127
      %v2248 = vpop.permute.xlu0 %2247
      %v2249 = vsel %vm478, %v2230, %v2232
      %v2250 = vsel %vm478, %v2232, %v2234
      %v2251 = vsel %vm478, %v2234, %v2236
      %v2252 = vsel %vm478, %v2236, %v2238
      %v2253 = vsel %vm478, %v2240, %v2242
      %v2254 = vsel %vm478, %v2242, %v2244
      %v2255 = vsel %vm478, %v2244, %v2246
      %v2256 = vsel %vm478, %v2246, %v2248
      %vm2265 = vcmask 261120
      %v2267 = vsel %vm2265, %v2217, 0
      %v2270 = vsel %vm2265, %v2218, 0
      %2272 = vmatprep.subr.bf16.mxu0 0
      %2273 = vmatpush1.bf16.msra.mxu0 0
      %2274 = vmatprep.subr.bf16.mxu0 0
      %2275 = vmatpush1.bf16.msra.mxu0 0
      %2276 = vmatprep.subr.bf16.mxu0 0
      %2277 = vmatpush1.bf16.msra.mxu0 0
      %2278 = vmatprep.subr.bf16.mxu0 0
      %2279 = vmatpush1.bf16.msra.mxu0 0
      %2280 = vmatprep.subr.bf16.mxu0 0
      %2281 = vmatpush1.bf16.msra.mxu0 0
      %2282 = vmatprep.subr.bf16.mxu0 0
      %2283 = vmatpush1.bf16.msra.mxu0 0
      %2284 = vmatprep.subr.bf16.mxu0 %v2254
      %2285 = vmatpush1.bf16.msra.mxu0 %v2253
      %2286 = vmatprep.subr.bf16.mxu0 %v2250
      %2287 = vmatpush1.bf16.msra.mxu0 %v2249
      %2288 = vmatprep.subr.bf16.mxu0 0
      %2289 = vmatpush2.bf16.msra.mxu0 0
      %2290 = vmatprep.subr.bf16.mxu0 0
      %2291 = vmatpush2.bf16.msra.mxu0 0
      %2292 = vmatprep.subr.bf16.mxu0 0
      %2293 = vmatpush2.bf16.msra.mxu0 0
      %2294 = vmatprep.subr.bf16.mxu0 0
      %2295 = vmatpush2.bf16.msra.mxu0 0
      %2296 = vmatprep.subr.bf16.mxu0 0
      %2297 = vmatpush2.bf16.msra.mxu0 0
      %2298 = vmatprep.subr.bf16.mxu0 0
      %2299 = vmatpush2.bf16.msra.mxu0 0
      %2300 = vmatprep.subr.bf16.mxu0 0
      %2301 = vmatpush2.bf16.msra.mxu0 0
      %2302 = vmatprep.subr.bf16.mxu0 0
      %2303 = vmatpush2.bf16.msra.mxu0 0
      %2304 = vmatprep.mubr.bf16.mxu0 0
      %2305 = vmatmul.mubr.bf16.gmra.mxu0 %v2267
      %v2306 = vpop.f32.mrf.mxu0
      %v2307 = vadd.f32 0.0, %v2306
      %v2308 = vpop.f32.mrf.mxu0
      %v2309 = vadd.f32 0.0, %v2308
      %v2310 = vpop.f32.mrf.mxu0
      %v2311 = vadd.f32 0.0, %v2310
      %v2312 = vpop.f32.mrf.mxu0
      %v2313 = vadd.f32 0.0, %v2312
      %2314 = vmatprep.mubr.bf16.mxu0 0
      %2315 = vmatmul.mubr.bf16.gmra.mxu0 %v2270
      %v2316 = vpop.f32.mrf.mxu0
      %v2317 = vadd.f32 0.0, %v2316
      %v2318 = vpop.f32.mrf.mxu0
      %v2319 = vadd.f32 0.0, %v2318
      %v2320 = vpop.f32.mrf.mxu0
      %v2321 = vadd.f32 0.0, %v2320
      %v2322 = vpop.f32.mrf.mxu0
      %v2323 = vadd.f32 0.0, %v2322
      %2324 = vdwg.mxu0
      %2325 = vmatprep.subr.bf16.mxu0 0
      %2326 = vmatpush1.bf16.msra.mxu0 0
      %2327 = vmatprep.subr.bf16.mxu0 0
      %2328 = vmatpush1.bf16.msra.mxu0 0
      %2329 = vmatprep.subr.bf16.mxu0 0
      %2330 = vmatpush1.bf16.msra.mxu0 0
      %2331 = vmatprep.subr.bf16.mxu0 0
      %2332 = vmatpush1.bf16.msra.mxu0 0
      %2333 = vmatprep.subr.bf16.mxu0 0
      %2334 = vmatpush1.bf16.msra.mxu0 0
      %2335 = vmatprep.subr.bf16.mxu0 0
      %2336 = vmatpush1.bf16.msra.mxu0 0
      %2337 = vmatprep.subr.bf16.mxu0 %v2256
      %2338 = vmatpush1.bf16.msra.mxu0 %v2255
      %2339 = vmatprep.subr.bf16.mxu0 %v2252
      %2340 = vmatpush1.bf16.msra.mxu0 %v2251
      %2341 = vmatprep.subr.bf16.mxu0 0
      %2342 = vmatpush2.bf16.msra.mxu0 0
      %2343 = vmatprep.subr.bf16.mxu0 0
      %2344 = vmatpush2.bf16.msra.mxu0 0
      %2345 = vmatprep.subr.bf16.mxu0 0
      %2346 = vmatpush2.bf16.msra.mxu0 0
      %2347 = vmatprep.subr.bf16.mxu0 0
      %2348 = vmatpush2.bf16.msra.mxu0 0
      %2349 = vmatprep.subr.bf16.mxu0 0
      %2350 = vmatpush2.bf16.msra.mxu0 0
      %2351 = vmatprep.subr.bf16.mxu0 0
      %2352 = vmatpush2.bf16.msra.mxu0 0
      %2353 = vmatprep.subr.bf16.mxu0 0
      %2354 = vmatpush2.bf16.msra.mxu0 0
      %2355 = vmatprep.subr.bf16.mxu0 0
      %2356 = vmatpush2.bf16.msra.mxu0 0
      %2357 = vmatprep.mubr.bf16.mxu0 0
      %2358 = vmatmul.mubr.bf16.gmra.mxu0 %v2267
      %v2359 = vpop.f32.mrf.mxu0
      %v2360 = vadd.f32 0.0, %v2359
      %v2361 = vpop.f32.mrf.mxu0
      %v2362 = vadd.f32 0.0, %v2361
      %v2363 = vpop.f32.mrf.mxu0
      %v2364 = vadd.f32 0.0, %v2363
      %v2365 = vpop.f32.mrf.mxu0
      %v2366 = vadd.f32 0.0, %v2365
      %2367 = vmatprep.mubr.bf16.mxu0 0
      %2368 = vmatmul.mubr.bf16.gmra.mxu0 %v2270
      %v2369 = vpop.f32.mrf.mxu0
      %v2370 = vadd.f32 0.0, %v2369
      %v2371 = vpop.f32.mrf.mxu0
      %v2372 = vadd.f32 0.0, %v2371
      %v2373 = vpop.f32.mrf.mxu0
      %v2374 = vadd.f32 0.0, %v2373
      %v2375 = vpop.f32.mrf.mxu0
      %v2376 = vadd.f32 0.0, %v2375
      %2377 = vdwg.mxu0
      %v2382 = vunpack.c.l.b16 %v2200
      %v2383 = vunpack.c.l.b16 %v2201
      %v2384 = vunpack.c.l.b16 %v2202
      %v2385 = vunpack.c.l.b16 %v2203
      %v2386 = vpack.c.b16 %v2383, %v2382
      %v2387 = vpack.c.b16 %v2385, %v2384
      %v2389 = vsel %vm2265, %v2386, 0
      %v2392 = vsel %vm2265, %v2387, 0
      %2394 = vmatprep.subr.bf16.mxu0 0
      %2395 = vmatpush1.bf16.msra.mxu0 0
      %2396 = vmatprep.subr.bf16.mxu0 0
      %2397 = vmatpush1.bf16.msra.mxu0 0
      %2398 = vmatprep.subr.bf16.mxu0 0
      %2399 = vmatpush1.bf16.msra.mxu0 0
      %2400 = vmatprep.subr.bf16.mxu0 0
      %2401 = vmatpush1.bf16.msra.mxu0 0
      %2402 = vmatprep.subr.bf16.mxu0 0
      %2403 = vmatpush1.bf16.msra.mxu0 0
      %2404 = vmatprep.subr.bf16.mxu0 0
      %2405 = vmatpush1.bf16.msra.mxu0 0
      %2406 = vmatprep.subr.bf16.mxu0 %v2196
      %2407 = vmatpush1.bf16.msra.mxu0 %v2195
      %2408 = vmatprep.subr.bf16.mxu0 %v2191
      %2409 = vmatpush1.bf16.msra.mxu0 %v2190
      %2410 = vmatprep.subr.bf16.mxu0 0
      %2411 = vmatpush2.bf16.msra.mxu0 0
      %2412 = vmatprep.subr.bf16.mxu0 0
      %2413 = vmatpush2.bf16.msra.mxu0 0
      %2414 = vmatprep.subr.bf16.mxu0 0
      %2415 = vmatpush2.bf16.msra.mxu0 0
      %2416 = vmatprep.subr.bf16.mxu0 0
      %2417 = vmatpush2.bf16.msra.mxu0 0
      %2418 = vmatprep.subr.bf16.mxu0 0
      %2419 = vmatpush2.bf16.msra.mxu0 0
      %2420 = vmatprep.subr.bf16.mxu0 0
      %2421 = vmatpush2.bf16.msra.mxu0 0
      %2422 = vmatprep.subr.bf16.mxu0 0
      %2423 = vmatpush2.bf16.msra.mxu0 0
      %2424 = vmatprep.subr.bf16.mxu0 0
      %2425 = vmatpush2.bf16.msra.mxu0 0
      %2426 = vmatprep.mubr.bf16.mxu0 0
      %2427 = vmatmul.mubr.bf16.gmra.mxu0 %v2389
      %v2428 = vpop.f32.mrf.mxu0
      %v2429 = vadd.f32 %v2307, %v2428
      %v2430 = vpop.f32.mrf.mxu0
      %v2431 = vadd.f32 %v2309, %v2430
      %v2432 = vpop.f32.mrf.mxu0
      %v2433 = vadd.f32 %v2311, %v2432
      %v2434 = vpop.f32.mrf.mxu0
      %v2435 = vadd.f32 %v2313, %v2434
      %2436 = vmatprep.mubr.bf16.mxu0 0
      %2437 = vmatmul.mubr.bf16.gmra.mxu0 %v2392
      %v2438 = vpop.f32.mrf.mxu0
      %v2439 = vadd.f32 %v2317, %v2438
      %v2440 = vpop.f32.mrf.mxu0
      %v2441 = vadd.f32 %v2319, %v2440
      %v2442 = vpop.f32.mrf.mxu0
      %v2443 = vadd.f32 %v2321, %v2442
      %v2444 = vpop.f32.mrf.mxu0
      %v2445 = vadd.f32 %v2323, %v2444
      %2446 = vdwg.mxu0
      %2447 = vmatprep.subr.bf16.mxu0 0
      %2448 = vmatpush1.bf16.msra.mxu0 0
      %2449 = vmatprep.subr.bf16.mxu0 0
      %2450 = vmatpush1.bf16.msra.mxu0 0
      %2451 = vmatprep.subr.bf16.mxu0 0
      %2452 = vmatpush1.bf16.msra.mxu0 0
      %2453 = vmatprep.subr.bf16.mxu0 0
      %2454 = vmatpush1.bf16.msra.mxu0 0
      %2455 = vmatprep.subr.bf16.mxu0 0
      %2456 = vmatpush1.bf16.msra.mxu0 0
      %2457 = vmatprep.subr.bf16.mxu0 0
      %2458 = vmatpush1.bf16.msra.mxu0 0
      %2459 = vmatprep.subr.bf16.mxu0 %v2198
      %2460 = vmatpush1.bf16.msra.mxu0 %v2197
      %2461 = vmatprep.subr.bf16.mxu0 %v2193
      %2462 = vmatpush1.bf16.msra.mxu0 %v2192
      %2463 = vmatprep.subr.bf16.mxu0 0
      %2464 = vmatpush2.bf16.msra.mxu0 0
      %2465 = vmatprep.subr.bf16.mxu0 0
      %2466 = vmatpush2.bf16.msra.mxu0 0
      %2467 = vmatprep.subr.bf16.mxu0 0
      %2468 = vmatpush2.bf16.msra.mxu0 0
      %2469 = vmatprep.subr.bf16.mxu0 0
      %2470 = vmatpush2.bf16.msra.mxu0 0
      %2471 = vmatprep.subr.bf16.mxu0 0
      %2472 = vmatpush2.bf16.msra.mxu0 0
      %2473 = vmatprep.subr.bf16.mxu0 0
      %2474 = vmatpush2.bf16.msra.mxu0 0
      %2475 = vmatprep.subr.bf16.mxu0 0
      %2476 = vmatpush2.bf16.msra.mxu0 0
      %2477 = vmatprep.subr.bf16.mxu0 0
      %2478 = vmatpush2.bf16.msra.mxu0 0
      %2479 = vmatprep.mubr.bf16.mxu0 0
      %2480 = vmatmul.mubr.bf16.gmra.mxu0 %v2389
      %v2481 = vpop.f32.mrf.mxu0
      %v2482 = vadd.f32 %v2360, %v2481
      %v2483 = vpop.f32.mrf.mxu0
      %v2484 = vadd.f32 %v2362, %v2483
      %v2485 = vpop.f32.mrf.mxu0
      %v2486 = vadd.f32 %v2364, %v2485
      %v2487 = vpop.f32.mrf.mxu0
      %v2488 = vadd.f32 %v2366, %v2487
      %2489 = vmatprep.mubr.bf16.mxu0 0
      %2490 = vmatmul.mubr.bf16.gmra.mxu0 %v2392
      %v2491 = vpop.f32.mrf.mxu0
      %v2492 = vadd.f32 %v2370, %v2491
      %v2493 = vpop.f32.mrf.mxu0
      %v2494 = vadd.f32 %v2372, %v2493
      %v2495 = vpop.f32.mrf.mxu0
      %v2496 = vadd.f32 %v2374, %v2495
      %v2497 = vpop.f32.mrf.mxu0
      %v2498 = vadd.f32 %v2376, %v2497
      %2499 = vdwg.mxu0
      %s2500 = scalar_lea.vmem %s4, 32
      %v2501 = vld [vmem:[%s2500] sm:$0xf]
      %v2502 = vld [vmem:[%s2500 + $0x4] sm:$0xf]
      %v2503 = vld [vmem:[%s2500 + $0x8] sm:$0xf]
      %v2504 = vld [vmem:[%s2500 + $0xc] sm:$0xf]
      %v2509 = vunpack.c.l.b16 %v2501
      %v2510 = vunpack.c.l.b16 %v2502
      %v2511 = vunpack.c.l.b16 %v2503
      %v2512 = vunpack.c.l.b16 %v2504
      %v2513 = vpack.c.b16 %v2510, %v2509
      %v2514 = vpack.c.b16 %v2512, %v2511
      %2515 = vrot.lane.b32.xlu0 %v2190, 126
      %v2516 = vpop.permute.xlu0 %2515
      %2517 = vrot.lane.b32.xlu0 %v2191, 126
      %v2518 = vpop.permute.xlu0 %2517
      %2519 = vrot.lane.b32.xlu0 %v2192, 126
      %v2520 = vpop.permute.xlu0 %2519
      %2521 = vrot.lane.b32.xlu0 %v2193, 126
      %v2522 = vpop.permute.xlu0 %2521
      %2523 = vrot.lane.b32.xlu0 %v2194, 126
      %v2524 = vpop.permute.xlu0 %2523
      %2525 = vrot.lane.b32.xlu0 %v2195, 126
      %v2526 = vpop.permute.xlu0 %2525
      %2527 = vrot.lane.b32.xlu0 %v2196, 126
      %v2528 = vpop.permute.xlu0 %2527
      %2529 = vrot.lane.b32.xlu0 %v2197, 126
      %v2530 = vpop.permute.xlu0 %2529
      %2531 = vrot.lane.b32.xlu0 %v2198, 126
      %v2532 = vpop.permute.xlu0 %2531
      %2533 = vrot.lane.b32.xlu0 %v2199, 126
      %v2534 = vpop.permute.xlu0 %2533
      %v2535 = vsel %vm768, %v2516, %v2518
      %v2536 = vsel %vm768, %v2518, %v2520
      %v2537 = vsel %vm768, %v2520, %v2522
      %v2538 = vsel %vm768, %v2522, %v2524
      %v2539 = vsel %vm768, %v2526, %v2528
      %v2540 = vsel %vm768, %v2528, %v2530
      %v2541 = vsel %vm768, %v2530, %v2532
      %v2542 = vsel %vm768, %v2532, %v2534
      %v2552 = vsel %vm2265, %v2513, 0
      %v2555 = vsel %vm2265, %v2514, 0
      %2557 = vmatprep.subr.bf16.mxu0 0
      %2558 = vmatpush1.bf16.msra.mxu0 0
      %2559 = vmatprep.subr.bf16.mxu0 0
      %2560 = vmatpush1.bf16.msra.mxu0 0
      %2561 = vmatprep.subr.bf16.mxu0 0
      %2562 = vmatpush1.bf16.msra.mxu0 0
      %2563 = vmatprep.subr.bf16.mxu0 0
      %2564 = vmatpush1.bf16.msra.mxu0 0
      %2565 = vmatprep.subr.bf16.mxu0 0
      %2566 = vmatpush1.bf16.msra.mxu0 0
      %2567 = vmatprep.subr.bf16.mxu0 0
      %2568 = vmatpush1.bf16.msra.mxu0 0
      %2569 = vmatprep.subr.bf16.mxu0 %v2540
      %2570 = vmatpush1.bf16.msra.mxu0 %v2539
      %2571 = vmatprep.subr.bf16.mxu0 %v2536
      %2572 = vmatpush1.bf16.msra.mxu0 %v2535
      %2573 = vmatprep.subr.bf16.mxu0 0
      %2574 = vmatpush2.bf16.msra.mxu0 0
      %2575 = vmatprep.subr.bf16.mxu0 0
      %2576 = vmatpush2.bf16.msra.mxu0 0
      %2577 = vmatprep.subr.bf16.mxu0 0
      %2578 = vmatpush2.bf16.msra.mxu0 0
      %2579 = vmatprep.subr.bf16.mxu0 0
      %2580 = vmatpush2.bf16.msra.mxu0 0
      %2581 = vmatprep.subr.bf16.mxu0 0
      %2582 = vmatpush2.bf16.msra.mxu0 0
      %2583 = vmatprep.subr.bf16.mxu0 0
      %2584 = vmatpush2.bf16.msra.mxu0 0
      %2585 = vmatprep.subr.bf16.mxu0 0
      %2586 = vmatpush2.bf16.msra.mxu0 0
      %2587 = vmatprep.subr.bf16.mxu0 0
      %2588 = vmatpush2.bf16.msra.mxu0 0
      %2589 = vmatprep.mubr.bf16.mxu0 0
      %2590 = vmatmul.mubr.bf16.gmra.mxu0 %v2552
      %v2591 = vpop.f32.mrf.mxu0
      %v2592 = vadd.f32 0.0, %v2591
      %v2593 = vpop.f32.mrf.mxu0
      %v2594 = vadd.f32 0.0, %v2593
      %v2595 = vpop.f32.mrf.mxu0
      %v2596 = vadd.f32 0.0, %v2595
      %v2597 = vpop.f32.mrf.mxu0
      %v2598 = vadd.f32 0.0, %v2597
      %2599 = vmatprep.mubr.bf16.mxu0 0
      %2600 = vmatmul.mubr.bf16.gmra.mxu0 %v2555
      %v2601 = vpop.f32.mrf.mxu0
      %v2602 = vadd.f32 0.0, %v2601
      %v2603 = vpop.f32.mrf.mxu0
      %v2604 = vadd.f32 0.0, %v2603
      %v2605 = vpop.f32.mrf.mxu0
      %v2606 = vadd.f32 0.0, %v2605
      %v2607 = vpop.f32.mrf.mxu0
      %v2608 = vadd.f32 0.0, %v2607
      %2609 = vdwg.mxu0
      %2610 = vmatprep.subr.bf16.mxu0 0
      %2611 = vmatpush1.bf16.msra.mxu0 0
      %2612 = vmatprep.subr.bf16.mxu0 0
      %2613 = vmatpush1.bf16.msra.mxu0 0
      %2614 = vmatprep.subr.bf16.mxu0 0
      %2615 = vmatpush1.bf16.msra.mxu0 0
      %2616 = vmatprep.subr.bf16.mxu0 0
      %2617 = vmatpush1.bf16.msra.mxu0 0
      %2618 = vmatprep.subr.bf16.mxu0 0
      %2619 = vmatpush1.bf16.msra.mxu0 0
      %2620 = vmatprep.subr.bf16.mxu0 0
      %2621 = vmatpush1.bf16.msra.mxu0 0
      %2622 = vmatprep.subr.bf16.mxu0 %v2542
      %2623 = vmatpush1.bf16.msra.mxu0 %v2541
      %2624 = vmatprep.subr.bf16.mxu0 %v2538
      %2625 = vmatpush1.bf16.msra.mxu0 %v2537
      %2626 = vmatprep.subr.bf16.mxu0 0
      %2627 = vmatpush2.bf16.msra.mxu0 0
      %2628 = vmatprep.subr.bf16.mxu0 0
      %2629 = vmatpush2.bf16.msra.mxu0 0
      %2630 = vmatprep.subr.bf16.mxu0 0
      %2631 = vmatpush2.bf16.msra.mxu0 0
      %2632 = vmatprep.subr.bf16.mxu0 0
      %2633 = vmatpush2.bf16.msra.mxu0 0
      %2634 = vmatprep.subr.bf16.mxu0 0
      %2635 = vmatpush2.bf16.msra.mxu0 0
      %2636 = vmatprep.subr.bf16.mxu0 0
      %2637 = vmatpush2.bf16.msra.mxu0 0
      %2638 = vmatprep.subr.bf16.mxu0 0
      %2639 = vmatpush2.bf16.msra.mxu0 0
      %2640 = vmatprep.subr.bf16.mxu0 0
      %2641 = vmatpush2.bf16.msra.mxu0 0
      %2642 = vmatprep.mubr.bf16.mxu0 0
      %2643 = vmatmul.mubr.bf16.gmra.mxu0 %v2552
      %v2644 = vpop.f32.mrf.mxu0
      %v2645 = vadd.f32 0.0, %v2644
      %v2646 = vpop.f32.mrf.mxu0
      %v2647 = vadd.f32 0.0, %v2646
      %v2648 = vpop.f32.mrf.mxu0
      %v2649 = vadd.f32 0.0, %v2648
      %v2650 = vpop.f32.mrf.mxu0
      %v2651 = vadd.f32 0.0, %v2650
      %2652 = vmatprep.mubr.bf16.mxu0 0
      %2653 = vmatmul.mubr.bf16.gmra.mxu0 %v2555
      %v2654 = vpop.f32.mrf.mxu0
      %v2655 = vadd.f32 0.0, %v2654
      %v2656 = vpop.f32.mrf.mxu0
      %v2657 = vadd.f32 0.0, %v2656
      %v2658 = vpop.f32.mrf.mxu0
      %v2659 = vadd.f32 0.0, %v2658
      %v2660 = vpop.f32.mrf.mxu0
      %v2661 = vadd.f32 0.0, %v2660
      %2662 = vdwg.mxu0
      %v2663 = vadd.f32 %v2429, %v2592
      %v2664 = vadd.f32 %v2431, %v2594
      %v2665 = vadd.f32 %v2482, %v2645
      %v2666 = vadd.f32 %v2484, %v2647
      %v2667 = vadd.f32 %v2433, %v2596
      %v2668 = vadd.f32 %v2435, %v2598
      %v2669 = vadd.f32 %v2486, %v2649
      %v2670 = vadd.f32 %v2488, %v2651
      %v2671 = vadd.f32 %v2439, %v2602
      %v2672 = vadd.f32 %v2441, %v2604
      %v2673 = vadd.f32 %v2492, %v2655
      %v2674 = vadd.f32 %v2494, %v2657
      %v2675 = vadd.f32 %v2443, %v2606
      %v2676 = vadd.f32 %v2445, %v2608
      %v2677 = vadd.f32 %v2496, %v2659
      %v2678 = vadd.f32 %v2498, %v2661
      %s2679 = scalar_lea.vmem %s4, 48
      %v2680 = vld [vmem:[%s2679] sm:$0xf]
      %v2681 = vld [vmem:[%s2679 + $0x4] sm:$0xf]
      %v2682 = vld [vmem:[%s2679 + $0x8] sm:$0xf]
      %v2683 = vld [vmem:[%s2679 + $0xc] sm:$0xf]
      %v2688 = vunpack.c.l.b16 %v2680
      %v2689 = vunpack.c.l.b16 %v2681
      %v2690 = vunpack.c.l.b16 %v2682
      %v2691 = vunpack.c.l.b16 %v2683
      %v2692 = vpack.c.b16 %v2689, %v2688
      %v2693 = vpack.c.b16 %v2691, %v2690
      %2694 = vrot.lane.b32.xlu0 %v2190, 96
      %v2695 = vpop.permute.xlu0 %2694
      %2696 = vrot.lane.b32.xlu0 %v2191, 96
      %v2697 = vpop.permute.xlu0 %2696
      %2698 = vrot.lane.b32.xlu0 %v2192, 96
      %v2699 = vpop.permute.xlu0 %2698
      %2700 = vrot.lane.b32.xlu0 %v2193, 96
      %v2701 = vpop.permute.xlu0 %2700
      %2702 = vrot.lane.b32.xlu0 %v2194, 96
      %v2703 = vpop.permute.xlu0 %2702
      %2704 = vrot.lane.b32.xlu0 %v2195, 96
      %v2705 = vpop.permute.xlu0 %2704
      %2706 = vrot.lane.b32.xlu0 %v2196, 96
      %v2707 = vpop.permute.xlu0 %2706
      %2708 = vrot.lane.b32.xlu0 %v2197, 96
      %v2709 = vpop.permute.xlu0 %2708
      %2710 = vrot.lane.b32.xlu0 %v2198, 96
      %v2711 = vpop.permute.xlu0 %2710
      %2712 = vrot.lane.b32.xlu0 %v2199, 96
      %v2713 = vpop.permute.xlu0 %2712
      %v2714 = vsel %vm938, %v2695, %v2697
      %v2715 = vsel %vm938, %v2697, %v2699
      %v2716 = vsel %vm938, %v2699, %v2701
      %v2717 = vsel %vm938, %v2701, %v2703
      %v2718 = vsel %vm938, %v2705, %v2707
      %v2719 = vsel %vm938, %v2707, %v2709
      %v2720 = vsel %vm938, %v2709, %v2711
      %v2721 = vsel %vm938, %v2711, %v2713
      %v2731 = vsel %vm2265, %v2692, 0
      %v2734 = vsel %vm2265, %v2693, 0
      %2736 = vmatprep.subr.bf16.mxu0 0
      %2737 = vmatpush1.bf16.msra.mxu0 0
      %2738 = vmatprep.subr.bf16.mxu0 0
      %2739 = vmatpush1.bf16.msra.mxu0 0
      %2740 = vmatprep.subr.bf16.mxu0 0
      %2741 = vmatpush1.bf16.msra.mxu0 0
      %2742 = vmatprep.subr.bf16.mxu0 0
      %2743 = vmatpush1.bf16.msra.mxu0 0
      %2744 = vmatprep.subr.bf16.mxu0 0
      %2745 = vmatpush1.bf16.msra.mxu0 0
      %2746 = vmatprep.subr.bf16.mxu0 0
      %2747 = vmatpush1.bf16.msra.mxu0 0
      %2748 = vmatprep.subr.bf16.mxu0 %v2719
      %2749 = vmatpush1.bf16.msra.mxu0 %v2718
      %2750 = vmatprep.subr.bf16.mxu0 %v2715
      %2751 = vmatpush1.bf16.msra.mxu0 %v2714
      %2752 = vmatprep.subr.bf16.mxu0 0
      %2753 = vmatpush2.bf16.msra.mxu0 0
      %2754 = vmatprep.subr.bf16.mxu0 0
      %2755 = vmatpush2.bf16.msra.mxu0 0
      %2756 = vmatprep.subr.bf16.mxu0 0
      %2757 = vmatpush2.bf16.msra.mxu0 0
      %2758 = vmatprep.subr.bf16.mxu0 0
      %2759 = vmatpush2.bf16.msra.mxu0 0
      %2760 = vmatprep.subr.bf16.mxu0 0
      %2761 = vmatpush2.bf16.msra.mxu0 0
      %2762 = vmatprep.subr.bf16.mxu0 0
      %2763 = vmatpush2.bf16.msra.mxu0 0
      %2764 = vmatprep.subr.bf16.mxu0 0
      %2765 = vmatpush2.bf16.msra.mxu0 0
      %2766 = vmatprep.subr.bf16.mxu0 0
      %2767 = vmatpush2.bf16.msra.mxu0 0
      %2768 = vmatprep.mubr.bf16.mxu0 0
      %2769 = vmatmul.mubr.bf16.gmra.mxu0 %v2731
      %v2770 = vpop.f32.mrf.mxu0
      %v2771 = vadd.f32 0.0, %v2770
      %v2772 = vpop.f32.mrf.mxu0
      %v2773 = vadd.f32 0.0, %v2772
      %v2774 = vpop.f32.mrf.mxu0
      %v2775 = vadd.f32 0.0, %v2774
      %v2776 = vpop.f32.mrf.mxu0
      %v2777 = vadd.f32 0.0, %v2776
      %2778 = vmatprep.mubr.bf16.mxu0 0
      %2779 = vmatmul.mubr.bf16.gmra.mxu0 %v2734
      %v2780 = vpop.f32.mrf.mxu0
      %v2781 = vadd.f32 0.0, %v2780
      %v2782 = vpop.f32.mrf.mxu0
      %v2783 = vadd.f32 0.0, %v2782
      %v2784 = vpop.f32.mrf.mxu0
      %v2785 = vadd.f32 0.0, %v2784
      %v2786 = vpop.f32.mrf.mxu0
      %v2787 = vadd.f32 0.0, %v2786
      %2788 = vdwg.mxu0
      %2789 = vmatprep.subr.bf16.mxu0 0
      %2790 = vmatpush1.bf16.msra.mxu0 0
      %2791 = vmatprep.subr.bf16.mxu0 0
      %2792 = vmatpush1.bf16.msra.mxu0 0
      %2793 = vmatprep.subr.bf16.mxu0 0
      %2794 = vmatpush1.bf16.msra.mxu0 0
      %2795 = vmatprep.subr.bf16.mxu0 0
      %2796 = vmatpush1.bf16.msra.mxu0 0
      %2797 = vmatprep.subr.bf16.mxu0 0
      %2798 = vmatpush1.bf16.msra.mxu0 0
      %2799 = vmatprep.subr.bf16.mxu0 0
      %2800 = vmatpush1.bf16.msra.mxu0 0
      %2801 = vmatprep.subr.bf16.mxu0 %v2721
      %2802 = vmatpush1.bf16.msra.mxu0 %v2720
      %2803 = vmatprep.subr.bf16.mxu0 %v2717
      %2804 = vmatpush1.bf16.msra.mxu0 %v2716
      %2805 = vmatprep.subr.bf16.mxu0 0
      %2806 = vmatpush2.bf16.msra.mxu0 0
      %2807 = vmatprep.subr.bf16.mxu0 0
      %2808 = vmatpush2.bf16.msra.mxu0 0
      %2809 = vmatprep.subr.bf16.mxu0 0
      %2810 = vmatpush2.bf16.msra.mxu0 0
      %2811 = vmatprep.subr.bf16.mxu0 0
      %2812 = vmatpush2.bf16.msra.mxu0 0
      %2813 = vmatprep.subr.bf16.mxu0 0
      %2814 = vmatpush2.bf16.msra.mxu0 0
      %2815 = vmatprep.subr.bf16.mxu0 0
      %2816 = vmatpush2.bf16.msra.mxu0 0
      %2817 = vmatprep.subr.bf16.mxu0 0
      %2818 = vmatpush2.bf16.msra.mxu0 0
      %2819 = vmatprep.subr.bf16.mxu0 0
      %2820 = vmatpush2.bf16.msra.mxu0 0
      %2821 = vmatprep.mubr.bf16.mxu0 0
      %2822 = vmatmul.mubr.bf16.gmra.mxu0 %v2731
      %v2823 = vpop.f32.mrf.mxu0
      %v2824 = vadd.f32 0.0, %v2823
      %v2825 = vpop.f32.mrf.mxu0
      %v2826 = vadd.f32 0.0, %v2825
      %v2827 = vpop.f32.mrf.mxu0
      %v2828 = vadd.f32 0.0, %v2827
      %v2829 = vpop.f32.mrf.mxu0
      %v2830 = vadd.f32 0.0, %v2829
      %2831 = vmatprep.mubr.bf16.mxu0 0
      %2832 = vmatmul.mubr.bf16.gmra.mxu0 %v2734
      %v2833 = vpop.f32.mrf.mxu0
      %v2834 = vadd.f32 0.0, %v2833
      %v2835 = vpop.f32.mrf.mxu0
      %v2836 = vadd.f32 0.0, %v2835
      %v2837 = vpop.f32.mrf.mxu0
      %v2838 = vadd.f32 0.0, %v2837
      %v2839 = vpop.f32.mrf.mxu0
      %v2840 = vadd.f32 0.0, %v2839
      %2841 = vdwg.mxu0
      %v2842 = vadd.f32 %v2663, %v2771
      %v2843 = vadd.f32 %v2664, %v2773
      %v2844 = vadd.f32 %v2665, %v2824
      %v2845 = vadd.f32 %v2666, %v2826
      %v2846 = vadd.f32 %v2667, %v2775
      %v2847 = vadd.f32 %v2668, %v2777
      %v2848 = vadd.f32 %v2669, %v2828
      %v2849 = vadd.f32 %v2670, %v2830
      %v2850 = vadd.f32 %v2671, %v2781
      %v2851 = vadd.f32 %v2672, %v2783
      %v2852 = vadd.f32 %v2673, %v2834
      %v2853 = vadd.f32 %v2674, %v2836
      %v2854 = vadd.f32 %v2675, %v2785
      %v2855 = vadd.f32 %v2676, %v2787
      %v2856 = vadd.f32 %v2677, %v2838
      %v2857 = vadd.f32 %v2678, %v2840
      %s2858 = scalar_lea.vmem %s4, 64
      %v2859 = vld [vmem:[%s2858] sm:$0xf]
      %v2860 = vld [vmem:[%s2858 + $0x4] sm:$0xf]
      %v2861 = vld [vmem:[%s2858 + $0x8] sm:$0xf]
      %v2862 = vld [vmem:[%s2858 + $0xc] sm:$0xf]
      %v2867 = vunpack.c.l.b16 %v2859
      %v2868 = vunpack.c.l.b16 %v2860
      %v2869 = vunpack.c.l.b16 %v2861
      %v2870 = vunpack.c.l.b16 %v2862
      %v2871 = vpack.c.b16 %v2868, %v2867
      %v2872 = vpack.c.b16 %v2870, %v2869
      %2873 = vrot.lane.b32.xlu0 %v2190, 95
      %v2874 = vpop.permute.xlu0 %2873
      %2875 = vrot.lane.b32.xlu0 %v2191, 95
      %v2876 = vpop.permute.xlu0 %2875
      %2877 = vrot.lane.b32.xlu0 %v2192, 95
      %v2878 = vpop.permute.xlu0 %2877
      %2879 = vrot.lane.b32.xlu0 %v2193, 95
      %v2880 = vpop.permute.xlu0 %2879
      %2881 = vrot.lane.b32.xlu0 %v2194, 95
      %v2882 = vpop.permute.xlu0 %2881
      %2883 = vrot.lane.b32.xlu0 %v2195, 95
      %v2884 = vpop.permute.xlu0 %2883
      %2885 = vrot.lane.b32.xlu0 %v2196, 95
      %v2886 = vpop.permute.xlu0 %2885
      %2887 = vrot.lane.b32.xlu0 %v2197, 95
      %v2888 = vpop.permute.xlu0 %2887
      %2889 = vrot.lane.b32.xlu0 %v2198, 95
      %v2890 = vpop.permute.xlu0 %2889
      %2891 = vrot.lane.b32.xlu0 %v2199, 95
      %v2892 = vpop.permute.xlu0 %2891
      %v2893 = vsel %vm1108, %v2874, %v2876
      %v2894 = vsel %vm1108, %v2876, %v2878
      %v2895 = vsel %vm1108, %v2878, %v2880
      %v2896 = vsel %vm1108, %v2880, %v2882
      %v2897 = vsel %vm1108, %v2884, %v2886
      %v2898 = vsel %vm1108, %v2886, %v2888
      %v2899 = vsel %vm1108, %v2888, %v2890
      %v2900 = vsel %vm1108, %v2890, %v2892
      %v2910 = vsel %vm2265, %v2871, 0
      %v2913 = vsel %vm2265, %v2872, 0
      %2915 = vmatprep.subr.bf16.mxu0 0
      %2916 = vmatpush1.bf16.msra.mxu0 0
      %2917 = vmatprep.subr.bf16.mxu0 0
      %2918 = vmatpush1.bf16.msra.mxu0 0
      %2919 = vmatprep.subr.bf16.mxu0 0
      %2920 = vmatpush1.bf16.msra.mxu0 0
      %2921 = vmatprep.subr.bf16.mxu0 0
      %2922 = vmatpush1.bf16.msra.mxu0 0
      %2923 = vmatprep.subr.bf16.mxu0 0
      %2924 = vmatpush1.bf16.msra.mxu0 0
      %2925 = vmatprep.subr.bf16.mxu0 0
      %2926 = vmatpush1.bf16.msra.mxu0 0
      %2927 = vmatprep.subr.bf16.mxu0 %v2898
      %2928 = vmatpush1.bf16.msra.mxu0 %v2897
      %2929 = vmatprep.subr.bf16.mxu0 %v2894
      %2930 = vmatpush1.bf16.msra.mxu0 %v2893
      %2931 = vmatprep.subr.bf16.mxu0 0
      %2932 = vmatpush2.bf16.msra.mxu0 0
      %2933 = vmatprep.subr.bf16.mxu0 0
      %2934 = vmatpush2.bf16.msra.mxu0 0
      %2935 = vmatprep.subr.bf16.mxu0 0
      %2936 = vmatpush2.bf16.msra.mxu0 0
      %2937 = vmatprep.subr.bf16.mxu0 0
      %2938 = vmatpush2.bf16.msra.mxu0 0
      %2939 = vmatprep.subr.bf16.mxu0 0
      %2940 = vmatpush2.bf16.msra.mxu0 0
      %2941 = vmatprep.subr.bf16.mxu0 0
      %2942 = vmatpush2.bf16.msra.mxu0 0
      %2943 = vmatprep.subr.bf16.mxu0 0
      %2944 = vmatpush2.bf16.msra.mxu0 0
      %2945 = vmatprep.subr.bf16.mxu0 0
      %2946 = vmatpush2.bf16.msra.mxu0 0
      %2947 = vmatprep.mubr.bf16.mxu0 0
      %2948 = vmatmul.mubr.bf16.gmra.mxu0 %v2910
      %v2949 = vpop.f32.mrf.mxu0
      %v2950 = vadd.f32 0.0, %v2949
      %v2951 = vpop.f32.mrf.mxu0
      %v2952 = vadd.f32 0.0, %v2951
      %v2953 = vpop.f32.mrf.mxu0
      %v2954 = vadd.f32 0.0, %v2953
      %v2955 = vpop.f32.mrf.mxu0
      %v2956 = vadd.f32 0.0, %v2955
      %2957 = vmatprep.mubr.bf16.mxu0 0
      %2958 = vmatmul.mubr.bf16.gmra.mxu0 %v2913
      %v2959 = vpop.f32.mrf.mxu0
      %v2960 = vadd.f32 0.0, %v2959
      %v2961 = vpop.f32.mrf.mxu0
      %v2962 = vadd.f32 0.0, %v2961
      %v2963 = vpop.f32.mrf.mxu0
      %v2964 = vadd.f32 0.0, %v2963
      %v2965 = vpop.f32.mrf.mxu0
      %v2966 = vadd.f32 0.0, %v2965
      %2967 = vdwg.mxu0
      %2968 = vmatprep.subr.bf16.mxu0 0
      %2969 = vmatpush1.bf16.msra.mxu0 0
      %2970 = vmatprep.subr.bf16.mxu0 0
      %2971 = vmatpush1.bf16.msra.mxu0 0
      %2972 = vmatprep.subr.bf16.mxu0 0
      %2973 = vmatpush1.bf16.msra.mxu0 0
      %2974 = vmatprep.subr.bf16.mxu0 0
      %2975 = vmatpush1.bf16.msra.mxu0 0
      %2976 = vmatprep.subr.bf16.mxu0 0
      %2977 = vmatpush1.bf16.msra.mxu0 0
      %2978 = vmatprep.subr.bf16.mxu0 0
      %2979 = vmatpush1.bf16.msra.mxu0 0
      %2980 = vmatprep.subr.bf16.mxu0 %v2900
      %2981 = vmatpush1.bf16.msra.mxu0 %v2899
      %2982 = vmatprep.subr.bf16.mxu0 %v2896
      %2983 = vmatpush1.bf16.msra.mxu0 %v2895
      %2984 = vmatprep.subr.bf16.mxu0 0
      %2985 = vmatpush2.bf16.msra.mxu0 0
      %2986 = vmatprep.subr.bf16.mxu0 0
      %2987 = vmatpush2.bf16.msra.mxu0 0
      %2988 = vmatprep.subr.bf16.mxu0 0
      %2989 = vmatpush2.bf16.msra.mxu0 0
      %2990 = vmatprep.subr.bf16.mxu0 0
      %2991 = vmatpush2.bf16.msra.mxu0 0
      %2992 = vmatprep.subr.bf16.mxu0 0
      %2993 = vmatpush2.bf16.msra.mxu0 0
      %2994 = vmatprep.subr.bf16.mxu0 0
      %2995 = vmatpush2.bf16.msra.mxu0 0
      %2996 = vmatprep.subr.bf16.mxu0 0
      %2997 = vmatpush2.bf16.msra.mxu0 0
      %2998 = vmatprep.subr.bf16.mxu0 0
      %2999 = vmatpush2.bf16.msra.mxu0 0
      %3000 = vmatprep.mubr.bf16.mxu0 0
      %3001 = vmatmul.mubr.bf16.gmra.mxu0 %v2910
      %v3002 = vpop.f32.mrf.mxu0
      %v3003 = vadd.f32 0.0, %v3002
      %v3004 = vpop.f32.mrf.mxu0
      %v3005 = vadd.f32 0.0, %v3004
      %v3006 = vpop.f32.mrf.mxu0
      %v3007 = vadd.f32 0.0, %v3006
      %v3008 = vpop.f32.mrf.mxu0
      %v3009 = vadd.f32 0.0, %v3008
      %3010 = vmatprep.mubr.bf16.mxu0 0
      %3011 = vmatmul.mubr.bf16.gmra.mxu0 %v2913
      %v3012 = vpop.f32.mrf.mxu0
      %v3013 = vadd.f32 0.0, %v3012
      %v3014 = vpop.f32.mrf.mxu0
      %v3015 = vadd.f32 0.0, %v3014
      %v3016 = vpop.f32.mrf.mxu0
      %v3017 = vadd.f32 0.0, %v3016
      %v3018 = vpop.f32.mrf.mxu0
      %v3019 = vadd.f32 0.0, %v3018
      %3020 = vdwg.mxu0
      %v3021 = vadd.f32 %v2842, %v2950
      %v3022 = vadd.f32 %v2843, %v2952
      %v3023 = vadd.f32 %v2844, %v3003
      %v3024 = vadd.f32 %v2845, %v3005
      %v3025 = vadd.f32 %v2846, %v2954
      %v3026 = vadd.f32 %v2847, %v2956
      %v3027 = vadd.f32 %v2848, %v3007
      %v3028 = vadd.f32 %v2849, %v3009
      %v3029 = vadd.f32 %v2850, %v2960
      %v3030 = vadd.f32 %v2851, %v2962
      %v3031 = vadd.f32 %v2852, %v3013
      %v3032 = vadd.f32 %v2853, %v3015
      %v3033 = vadd.f32 %v2854, %v2964
      %v3034 = vadd.f32 %v2855, %v2966
      %v3035 = vadd.f32 %v2856, %v3017
      %v3036 = vadd.f32 %v2857, %v3019
      %s3037 = scalar_lea.vmem %s4, 80
      %v3038 = vld [vmem:[%s3037] sm:$0xf]
      %v3039 = vld [vmem:[%s3037 + $0x4] sm:$0xf]
      %v3040 = vld [vmem:[%s3037 + $0x8] sm:$0xf]
      %v3041 = vld [vmem:[%s3037 + $0xc] sm:$0xf]
      %v3046 = vunpack.c.l.b16 %v3038
      %v3047 = vunpack.c.l.b16 %v3039
      %v3048 = vunpack.c.l.b16 %v3040
      %v3049 = vunpack.c.l.b16 %v3041
      %v3050 = vpack.c.b16 %v3047, %v3046
      %v3051 = vpack.c.b16 %v3049, %v3048
      %3052 = vrot.lane.b32.xlu0 %v2190, 94
      %v3053 = vpop.permute.xlu0 %3052
      %3054 = vrot.lane.b32.xlu0 %v2191, 94
      %v3055 = vpop.permute.xlu0 %3054
      %3056 = vrot.lane.b32.xlu0 %v2192, 94
      %v3057 = vpop.permute.xlu0 %3056
      %3058 = vrot.lane.b32.xlu0 %v2193, 94
      %v3059 = vpop.permute.xlu0 %3058
      %3060 = vrot.lane.b32.xlu0 %v2194, 94
      %v3061 = vpop.permute.xlu0 %3060
      %3062 = vrot.lane.b32.xlu0 %v2195, 94
      %v3063 = vpop.permute.xlu0 %3062
      %3064 = vrot.lane.b32.xlu0 %v2196, 94
      %v3065 = vpop.permute.xlu0 %3064
      %3066 = vrot.lane.b32.xlu0 %v2197, 94
      %v3067 = vpop.permute.xlu0 %3066
      %3068 = vrot.lane.b32.xlu0 %v2198, 94
      %v3069 = vpop.permute.xlu0 %3068
      %3070 = vrot.lane.b32.xlu0 %v2199, 94
      %v3071 = vpop.permute.xlu0 %3070
      %v3072 = vsel %vm1278, %v3053, %v3055
      %v3073 = vsel %vm1278, %v3055, %v3057
      %v3074 = vsel %vm1278, %v3057, %v3059
      %v3075 = vsel %vm1278, %v3059, %v3061
      %v3076 = vsel %vm1278, %v3063, %v3065
      %v3077 = vsel %vm1278, %v3065, %v3067
      %v3078 = vsel %vm1278, %v3067, %v3069
      %v3079 = vsel %vm1278, %v3069, %v3071
      %v3089 = vsel %vm2265, %v3050, 0
      %v3092 = vsel %vm2265, %v3051, 0
      %3094 = vmatprep.subr.bf16.mxu0 0
      %3095 = vmatpush1.bf16.msra.mxu0 0
      %3096 = vmatprep.subr.bf16.mxu0 0
      %3097 = vmatpush1.bf16.msra.mxu0 0
      %3098 = vmatprep.subr.bf16.mxu0 0
      %3099 = vmatpush1.bf16.msra.mxu0 0
      %3100 = vmatprep.subr.bf16.mxu0 0
      %3101 = vmatpush1.bf16.msra.mxu0 0
      %3102 = vmatprep.subr.bf16.mxu0 0
      %3103 = vmatpush1.bf16.msra.mxu0 0
      %3104 = vmatprep.subr.bf16.mxu0 0
      %3105 = vmatpush1.bf16.msra.mxu0 0
      %3106 = vmatprep.subr.bf16.mxu0 %v3077
      %3107 = vmatpush1.bf16.msra.mxu0 %v3076
      %3108 = vmatprep.subr.bf16.mxu0 %v3073
      %3109 = vmatpush1.bf16.msra.mxu0 %v3072
      %3110 = vmatprep.subr.bf16.mxu0 0
      %3111 = vmatpush2.bf16.msra.mxu0 0
      %3112 = vmatprep.subr.bf16.mxu0 0
      %3113 = vmatpush2.bf16.msra.mxu0 0
      %3114 = vmatprep.subr.bf16.mxu0 0
      %3115 = vmatpush2.bf16.msra.mxu0 0
      %3116 = vmatprep.subr.bf16.mxu0 0
      %3117 = vmatpush2.bf16.msra.mxu0 0
      %3118 = vmatprep.subr.bf16.mxu0 0
      %3119 = vmatpush2.bf16.msra.mxu0 0
      %3120 = vmatprep.subr.bf16.mxu0 0
      %3121 = vmatpush2.bf16.msra.mxu0 0
      %3122 = vmatprep.subr.bf16.mxu0 0
      %3123 = vmatpush2.bf16.msra.mxu0 0
      %3124 = vmatprep.subr.bf16.mxu0 0
      %3125 = vmatpush2.bf16.msra.mxu0 0
      %3126 = vmatprep.mubr.bf16.mxu0 0
      %3127 = vmatmul.mubr.bf16.gmra.mxu0 %v3089
      %v3128 = vpop.f32.mrf.mxu0
      %v3129 = vadd.f32 0.0, %v3128
      %v3130 = vpop.f32.mrf.mxu0
      %v3131 = vadd.f32 0.0, %v3130
      %v3132 = vpop.f32.mrf.mxu0
      %v3133 = vadd.f32 0.0, %v3132
      %v3134 = vpop.f32.mrf.mxu0
      %v3135 = vadd.f32 0.0, %v3134
      %3136 = vmatprep.mubr.bf16.mxu0 0
      %3137 = vmatmul.mubr.bf16.gmra.mxu0 %v3092
      %v3138 = vpop.f32.mrf.mxu0
      %v3139 = vadd.f32 0.0, %v3138
      %v3140 = vpop.f32.mrf.mxu0
      %v3141 = vadd.f32 0.0, %v3140
      %v3142 = vpop.f32.mrf.mxu0
      %v3143 = vadd.f32 0.0, %v3142
      %v3144 = vpop.f32.mrf.mxu0
      %v3145 = vadd.f32 0.0, %v3144
      %3146 = vdwg.mxu0
      %3147 = vmatprep.subr.bf16.mxu0 0
      %3148 = vmatpush1.bf16.msra.mxu0 0
      %3149 = vmatprep.subr.bf16.mxu0 0
      %3150 = vmatpush1.bf16.msra.mxu0 0
      %3151 = vmatprep.subr.bf16.mxu0 0
      %3152 = vmatpush1.bf16.msra.mxu0 0
      %3153 = vmatprep.subr.bf16.mxu0 0
      %3154 = vmatpush1.bf16.msra.mxu0 0
      %3155 = vmatprep.subr.bf16.mxu0 0
      %3156 = vmatpush1.bf16.msra.mxu0 0
      %3157 = vmatprep.subr.bf16.mxu0 0
      %3158 = vmatpush1.bf16.msra.mxu0 0
      %3159 = vmatprep.subr.bf16.mxu0 %v3079
      %3160 = vmatpush1.bf16.msra.mxu0 %v3078
      %3161 = vmatprep.subr.bf16.mxu0 %v3075
      %3162 = vmatpush1.bf16.msra.mxu0 %v3074
      %3163 = vmatprep.subr.bf16.mxu0 0
      %3164 = vmatpush2.bf16.msra.mxu0 0
      %3165 = vmatprep.subr.bf16.mxu0 0
      %3166 = vmatpush2.bf16.msra.mxu0 0
      %3167 = vmatprep.subr.bf16.mxu0 0
      %3168 = vmatpush2.bf16.msra.mxu0 0
      %3169 = vmatprep.subr.bf16.mxu0 0
      %3170 = vmatpush2.bf16.msra.mxu0 0
      %3171 = vmatprep.subr.bf16.mxu0 0
      %3172 = vmatpush2.bf16.msra.mxu0 0
      %3173 = vmatprep.subr.bf16.mxu0 0
      %3174 = vmatpush2.bf16.msra.mxu0 0
      %3175 = vmatprep.subr.bf16.mxu0 0
      %3176 = vmatpush2.bf16.msra.mxu0 0
      %3177 = vmatprep.subr.bf16.mxu0 0
      %3178 = vmatpush2.bf16.msra.mxu0 0
      %3179 = vmatprep.mubr.bf16.mxu0 0
      %3180 = vmatmul.mubr.bf16.gmra.mxu0 %v3089
      %v3181 = vpop.f32.mrf.mxu0
      %v3182 = vadd.f32 0.0, %v3181
      %v3183 = vpop.f32.mrf.mxu0
      %v3184 = vadd.f32 0.0, %v3183
      %v3185 = vpop.f32.mrf.mxu0
      %v3186 = vadd.f32 0.0, %v3185
      %v3187 = vpop.f32.mrf.mxu0
      %v3188 = vadd.f32 0.0, %v3187
      %3189 = vmatprep.mubr.bf16.mxu0 0
      %3190 = vmatmul.mubr.bf16.gmra.mxu0 %v3092
      %v3191 = vpop.f32.mrf.mxu0
      %v3192 = vadd.f32 0.0, %v3191
      %v3193 = vpop.f32.mrf.mxu0
      %v3194 = vadd.f32 0.0, %v3193
      %v3195 = vpop.f32.mrf.mxu0
      %v3196 = vadd.f32 0.0, %v3195
      %v3197 = vpop.f32.mrf.mxu0
      %v3198 = vadd.f32 0.0, %v3197
      %3199 = vdwg.mxu0
      %v3200 = vadd.f32 %v3021, %v3129
      %v3201 = vadd.f32 %v3022, %v3131
      %v3202 = vadd.f32 %v3023, %v3182
      %v3203 = vadd.f32 %v3024, %v3184
      %v3204 = vadd.f32 %v3025, %v3133
      %v3205 = vadd.f32 %v3026, %v3135
      %v3206 = vadd.f32 %v3027, %v3186
      %v3207 = vadd.f32 %v3028, %v3188
      %v3208 = vadd.f32 %v3029, %v3139
      %v3209 = vadd.f32 %v3030, %v3141
      %v3210 = vadd.f32 %v3031, %v3192
      %v3211 = vadd.f32 %v3032, %v3194
      %v3212 = vadd.f32 %v3033, %v3143
      %v3213 = vadd.f32 %v3034, %v3145
      %v3214 = vadd.f32 %v3035, %v3196
      %v3215 = vadd.f32 %v3036, %v3198
      %s3216 = scalar_lea.vmem %s4, 96
      %v3217 = vld [vmem:[%s3216] sm:$0xf]
      %v3218 = vld [vmem:[%s3216 + $0x4] sm:$0xf]
      %v3219 = vld [vmem:[%s3216 + $0x8] sm:$0xf]
      %v3220 = vld [vmem:[%s3216 + $0xc] sm:$0xf]
      %v3225 = vunpack.c.l.b16 %v3217
      %v3226 = vunpack.c.l.b16 %v3218
      %v3227 = vunpack.c.l.b16 %v3219
      %v3228 = vunpack.c.l.b16 %v3220
      %v3229 = vpack.c.b16 %v3226, %v3225
      %v3230 = vpack.c.b16 %v3228, %v3227
      %3231 = vrot.lane.b32.xlu0 %v2190, 64
      %v3232 = vpop.permute.xlu0 %3231
      %3233 = vrot.lane.b32.xlu0 %v2191, 64
      %v3234 = vpop.permute.xlu0 %3233
      %3235 = vrot.lane.b32.xlu0 %v2192, 64
      %v3236 = vpop.permute.xlu0 %3235
      %3237 = vrot.lane.b32.xlu0 %v2193, 64
      %v3238 = vpop.permute.xlu0 %3237
      %3239 = vrot.lane.b32.xlu0 %v2194, 64
      %v3240 = vpop.permute.xlu0 %3239
      %3241 = vrot.lane.b32.xlu0 %v2195, 64
      %v3242 = vpop.permute.xlu0 %3241
      %3243 = vrot.lane.b32.xlu0 %v2196, 64
      %v3244 = vpop.permute.xlu0 %3243
      %3245 = vrot.lane.b32.xlu0 %v2197, 64
      %v3246 = vpop.permute.xlu0 %3245
      %3247 = vrot.lane.b32.xlu0 %v2198, 64
      %v3248 = vpop.permute.xlu0 %3247
      %3249 = vrot.lane.b32.xlu0 %v2199, 64
      %v3250 = vpop.permute.xlu0 %3249
      %v3251 = vsel %vm1448, %v3232, %v3234
      %v3252 = vsel %vm1448, %v3234, %v3236
      %v3253 = vsel %vm1448, %v3236, %v3238
      %v3254 = vsel %vm1448, %v3238, %v3240
      %v3255 = vsel %vm1448, %v3242, %v3244
      %v3256 = vsel %vm1448, %v3244, %v3246
      %v3257 = vsel %vm1448, %v3246, %v3248
      %v3258 = vsel %vm1448, %v3248, %v3250
      %v3268 = vsel %vm2265, %v3229, 0
      %v3271 = vsel %vm2265, %v3230, 0
      %3273 = vmatprep.subr.bf16.mxu0 0
      %3274 = vmatpush1.bf16.msra.mxu0 0
      %3275 = vmatprep.subr.bf16.mxu0 0
      %3276 = vmatpush1.bf16.msra.mxu0 0
      %3277 = vmatprep.subr.bf16.mxu0 0
      %3278 = vmatpush1.bf16.msra.mxu0 0
      %3279 = vmatprep.subr.bf16.mxu0 0
      %3280 = vmatpush1.bf16.msra.mxu0 0
      %3281 = vmatprep.subr.bf16.mxu0 0
      %3282 = vmatpush1.bf16.msra.mxu0 0
      %3283 = vmatprep.subr.bf16.mxu0 0
      %3284 = vmatpush1.bf16.msra.mxu0 0
      %3285 = vmatprep.subr.bf16.mxu0 %v3256
      %3286 = vmatpush1.bf16.msra.mxu0 %v3255
      %3287 = vmatprep.subr.bf16.mxu0 %v3252
      %3288 = vmatpush1.bf16.msra.mxu0 %v3251
      %3289 = vmatprep.subr.bf16.mxu0 0
      %3290 = vmatpush2.bf16.msra.mxu0 0
      %3291 = vmatprep.subr.bf16.mxu0 0
      %3292 = vmatpush2.bf16.msra.mxu0 0
      %3293 = vmatprep.subr.bf16.mxu0 0
      %3294 = vmatpush2.bf16.msra.mxu0 0
      %3295 = vmatprep.subr.bf16.mxu0 0
      %3296 = vmatpush2.bf16.msra.mxu0 0
      %3297 = vmatprep.subr.bf16.mxu0 0
      %3298 = vmatpush2.bf16.msra.mxu0 0
      %3299 = vmatprep.subr.bf16.mxu0 0
      %3300 = vmatpush2.bf16.msra.mxu0 0
      %3301 = vmatprep.subr.bf16.mxu0 0
      %3302 = vmatpush2.bf16.msra.mxu0 0
      %3303 = vmatprep.subr.bf16.mxu0 0
      %3304 = vmatpush2.bf16.msra.mxu0 0
      %3305 = vmatprep.mubr.bf16.mxu0 0
      %3306 = vmatmul.mubr.bf16.gmra.mxu0 %v3268
      %v3307 = vpop.f32.mrf.mxu0
      %v3308 = vadd.f32 0.0, %v3307
      %v3309 = vpop.f32.mrf.mxu0
      %v3310 = vadd.f32 0.0, %v3309
      %v3311 = vpop.f32.mrf.mxu0
      %v3312 = vadd.f32 0.0, %v3311
      %v3313 = vpop.f32.mrf.mxu0
      %v3314 = vadd.f32 0.0, %v3313
      %3315 = vmatprep.mubr.bf16.mxu0 0
      %3316 = vmatmul.mubr.bf16.gmra.mxu0 %v3271
      %v3317 = vpop.f32.mrf.mxu0
      %v3318 = vadd.f32 0.0, %v3317
      %v3319 = vpop.f32.mrf.mxu0
      %v3320 = vadd.f32 0.0, %v3319
      %v3321 = vpop.f32.mrf.mxu0
      %v3322 = vadd.f32 0.0, %v3321
      %v3323 = vpop.f32.mrf.mxu0
      %v3324 = vadd.f32 0.0, %v3323
      %3325 = vdwg.mxu0
      %3326 = vmatprep.subr.bf16.mxu0 0
      %3327 = vmatpush1.bf16.msra.mxu0 0
      %3328 = vmatprep.subr.bf16.mxu0 0
      %3329 = vmatpush1.bf16.msra.mxu0 0
      %3330 = vmatprep.subr.bf16.mxu0 0
      %3331 = vmatpush1.bf16.msra.mxu0 0
      %3332 = vmatprep.subr.bf16.mxu0 0
      %3333 = vmatpush1.bf16.msra.mxu0 0
      %3334 = vmatprep.subr.bf16.mxu0 0
      %3335 = vmatpush1.bf16.msra.mxu0 0
      %3336 = vmatprep.subr.bf16.mxu0 0
      %3337 = vmatpush1.bf16.msra.mxu0 0
      %3338 = vmatprep.subr.bf16.mxu0 %v3258
      %3339 = vmatpush1.bf16.msra.mxu0 %v3257
      %3340 = vmatprep.subr.bf16.mxu0 %v3254
      %3341 = vmatpush1.bf16.msra.mxu0 %v3253
      %3342 = vmatprep.subr.bf16.mxu0 0
      %3343 = vmatpush2.bf16.msra.mxu0 0
      %3344 = vmatprep.subr.bf16.mxu0 0
      %3345 = vmatpush2.bf16.msra.mxu0 0
      %3346 = vmatprep.subr.bf16.mxu0 0
      %3347 = vmatpush2.bf16.msra.mxu0 0
      %3348 = vmatprep.subr.bf16.mxu0 0
      %3349 = vmatpush2.bf16.msra.mxu0 0
      %3350 = vmatprep.subr.bf16.mxu0 0
      %3351 = vmatpush2.bf16.msra.mxu0 0
      %3352 = vmatprep.subr.bf16.mxu0 0
      %3353 = vmatpush2.bf16.msra.mxu0 0
      %3354 = vmatprep.subr.bf16.mxu0 0
      %3355 = vmatpush2.bf16.msra.mxu0 0
      %3356 = vmatprep.subr.bf16.mxu0 0
      %3357 = vmatpush2.bf16.msra.mxu0 0
      %3358 = vmatprep.mubr.bf16.mxu0 0
      %3359 = vmatmul.mubr.bf16.gmra.mxu0 %v3268
      %v3360 = vpop.f32.mrf.mxu0
      %v3361 = vadd.f32 0.0, %v3360
      %v3362 = vpop.f32.mrf.mxu0
      %v3363 = vadd.f32 0.0, %v3362
      %v3364 = vpop.f32.mrf.mxu0
      %v3365 = vadd.f32 0.0, %v3364
      %v3366 = vpop.f32.mrf.mxu0
      %v3367 = vadd.f32 0.0, %v3366
      %3368 = vmatprep.mubr.bf16.mxu0 0
      %3369 = vmatmul.mubr.bf16.gmra.mxu0 %v3271
      %v3370 = vpop.f32.mrf.mxu0
      %v3371 = vadd.f32 0.0, %v3370
      %v3372 = vpop.f32.mrf.mxu0
      %v3373 = vadd.f32 0.0, %v3372
      %v3374 = vpop.f32.mrf.mxu0
      %v3375 = vadd.f32 0.0, %v3374
      %v3376 = vpop.f32.mrf.mxu0
      %v3377 = vadd.f32 0.0, %v3376
      %3378 = vdwg.mxu0
      %v3379 = vadd.f32 %v3200, %v3308
      %v3380 = vadd.f32 %v3201, %v3310
      %v3381 = vadd.f32 %v3202, %v3361
      %v3382 = vadd.f32 %v3203, %v3363
      %v3383 = vadd.f32 %v3204, %v3312
      %v3384 = vadd.f32 %v3205, %v3314
      %v3385 = vadd.f32 %v3206, %v3365
      %v3386 = vadd.f32 %v3207, %v3367
      %v3387 = vadd.f32 %v3208, %v3318
      %v3388 = vadd.f32 %v3209, %v3320
      %v3389 = vadd.f32 %v3210, %v3371
      %v3390 = vadd.f32 %v3211, %v3373
      %v3391 = vadd.f32 %v3212, %v3322
      %v3392 = vadd.f32 %v3213, %v3324
      %v3393 = vadd.f32 %v3214, %v3375
      %v3394 = vadd.f32 %v3215, %v3377
      %s3395 = scalar_lea.vmem %s4, 112
      %v3396 = vld [vmem:[%s3395] sm:$0xf]
      %v3397 = vld [vmem:[%s3395 + $0x4] sm:$0xf]
      %v3398 = vld [vmem:[%s3395 + $0x8] sm:$0xf]
      %v3399 = vld [vmem:[%s3395 + $0xc] sm:$0xf]
      %v3404 = vunpack.c.l.b16 %v3396
      %v3405 = vunpack.c.l.b16 %v3397
      %v3406 = vunpack.c.l.b16 %v3398
      %v3407 = vunpack.c.l.b16 %v3399
      %v3408 = vpack.c.b16 %v3405, %v3404
      %v3409 = vpack.c.b16 %v3407, %v3406
      %3410 = vrot.lane.b32.xlu0 %v2190, 63
      %v3411 = vpop.permute.xlu0 %3410
      %3412 = vrot.lane.b32.xlu0 %v2191, 63
      %v3413 = vpop.permute.xlu0 %3412
      %3414 = vrot.lane.b32.xlu0 %v2192, 63
      %v3415 = vpop.permute.xlu0 %3414
      %3416 = vrot.lane.b32.xlu0 %v2193, 63
      %v3417 = vpop.permute.xlu0 %3416
      %3418 = vrot.lane.b32.xlu0 %v2194, 63
      %v3419 = vpop.permute.xlu0 %3418
      %3420 = vrot.lane.b32.xlu0 %v2195, 63
      %v3421 = vpop.permute.xlu0 %3420
      %3422 = vrot.lane.b32.xlu0 %v2196, 63
      %v3423 = vpop.permute.xlu0 %3422
      %3424 = vrot.lane.b32.xlu0 %v2197, 63
      %v3425 = vpop.permute.xlu0 %3424
      %3426 = vrot.lane.b32.xlu0 %v2198, 63
      %v3427 = vpop.permute.xlu0 %3426
      %3428 = vrot.lane.b32.xlu0 %v2199, 63
      %v3429 = vpop.permute.xlu0 %3428
      %v3430 = vsel %vm1618, %v3411, %v3413
      %v3431 = vsel %vm1618, %v3413, %v3415
      %v3432 = vsel %vm1618, %v3415, %v3417
      %v3433 = vsel %vm1618, %v3417, %v3419
      %v3434 = vsel %vm1618, %v3421, %v3423
      %v3435 = vsel %vm1618, %v3423, %v3425
      %v3436 = vsel %vm1618, %v3425, %v3427
      %v3437 = vsel %vm1618, %v3427, %v3429
      %v3447 = vsel %vm2265, %v3408, 0
      %v3450 = vsel %vm2265, %v3409, 0
      %3452 = vmatprep.subr.bf16.mxu0 0
      %3453 = vmatpush1.bf16.msra.mxu0 0
      %3454 = vmatprep.subr.bf16.mxu0 0
      %3455 = vmatpush1.bf16.msra.mxu0 0
      %3456 = vmatprep.subr.bf16.mxu0 0
      %3457 = vmatpush1.bf16.msra.mxu0 0
      %3458 = vmatprep.subr.bf16.mxu0 0
      %3459 = vmatpush1.bf16.msra.mxu0 0
      %3460 = vmatprep.subr.bf16.mxu0 0
      %3461 = vmatpush1.bf16.msra.mxu0 0
      %3462 = vmatprep.subr.bf16.mxu0 0
      %3463 = vmatpush1.bf16.msra.mxu0 0
      %3464 = vmatprep.subr.bf16.mxu0 %v3435
      %3465 = vmatpush1.bf16.msra.mxu0 %v3434
      %3466 = vmatprep.subr.bf16.mxu0 %v3431
      %3467 = vmatpush1.bf16.msra.mxu0 %v3430
      %3468 = vmatprep.subr.bf16.mxu0 0
      %3469 = vmatpush2.bf16.msra.mxu0 0
      %3470 = vmatprep.subr.bf16.mxu0 0
      %3471 = vmatpush2.bf16.msra.mxu0 0
      %3472 = vmatprep.subr.bf16.mxu0 0
      %3473 = vmatpush2.bf16.msra.mxu0 0
      %3474 = vmatprep.subr.bf16.mxu0 0
      %3475 = vmatpush2.bf16.msra.mxu0 0
      %3476 = vmatprep.subr.bf16.mxu0 0
      %3477 = vmatpush2.bf16.msra.mxu0 0
      %3478 = vmatprep.subr.bf16.mxu0 0
      %3479 = vmatpush2.bf16.msra.mxu0 0
      %3480 = vmatprep.subr.bf16.mxu0 0
      %3481 = vmatpush2.bf16.msra.mxu0 0
      %3482 = vmatprep.subr.bf16.mxu0 0
      %3483 = vmatpush2.bf16.msra.mxu0 0
      %3484 = vmatprep.mubr.bf16.mxu0 0
      %3485 = vmatmul.mubr.bf16.gmra.mxu0 %v3447
      %v3486 = vpop.f32.mrf.mxu0
      %v3487 = vadd.f32 0.0, %v3486
      %v3488 = vpop.f32.mrf.mxu0
      %v3489 = vadd.f32 0.0, %v3488
      %v3490 = vpop.f32.mrf.mxu0
      %v3491 = vadd.f32 0.0, %v3490
      %v3492 = vpop.f32.mrf.mxu0
      %v3493 = vadd.f32 0.0, %v3492
      %3494 = vmatprep.mubr.bf16.mxu0 0
      %3495 = vmatmul.mubr.bf16.gmra.mxu0 %v3450
      %v3496 = vpop.f32.mrf.mxu0
      %v3497 = vadd.f32 0.0, %v3496
      %v3498 = vpop.f32.mrf.mxu0
      %v3499 = vadd.f32 0.0, %v3498
      %v3500 = vpop.f32.mrf.mxu0
      %v3501 = vadd.f32 0.0, %v3500
      %v3502 = vpop.f32.mrf.mxu0
      %v3503 = vadd.f32 0.0, %v3502
      %3504 = vdwg.mxu0
      %3505 = vmatprep.subr.bf16.mxu0 0
      %3506 = vmatpush1.bf16.msra.mxu0 0
      %3507 = vmatprep.subr.bf16.mxu0 0
      %3508 = vmatpush1.bf16.msra.mxu0 0
      %3509 = vmatprep.subr.bf16.mxu0 0
      %3510 = vmatpush1.bf16.msra.mxu0 0
      %3511 = vmatprep.subr.bf16.mxu0 0
      %3512 = vmatpush1.bf16.msra.mxu0 0
      %3513 = vmatprep.subr.bf16.mxu0 0
      %3514 = vmatpush1.bf16.msra.mxu0 0
      %3515 = vmatprep.subr.bf16.mxu0 0
      %3516 = vmatpush1.bf16.msra.mxu0 0
      %3517 = vmatprep.subr.bf16.mxu0 %v3437
      %3518 = vmatpush1.bf16.msra.mxu0 %v3436
      %3519 = vmatprep.subr.bf16.mxu0 %v3433
      %3520 = vmatpush1.bf16.msra.mxu0 %v3432
      %3521 = vmatprep.subr.bf16.mxu0 0
      %3522 = vmatpush2.bf16.msra.mxu0 0
      %3523 = vmatprep.subr.bf16.mxu0 0
      %3524 = vmatpush2.bf16.msra.mxu0 0
      %3525 = vmatprep.subr.bf16.mxu0 0
      %3526 = vmatpush2.bf16.msra.mxu0 0
      %3527 = vmatprep.subr.bf16.mxu0 0
      %3528 = vmatpush2.bf16.msra.mxu0 0
      %3529 = vmatprep.subr.bf16.mxu0 0
      %3530 = vmatpush2.bf16.msra.mxu0 0
      %3531 = vmatprep.subr.bf16.mxu0 0
      %3532 = vmatpush2.bf16.msra.mxu0 0
      %3533 = vmatprep.subr.bf16.mxu0 0
      %3534 = vmatpush2.bf16.msra.mxu0 0
      %3535 = vmatprep.subr.bf16.mxu0 0
      %3536 = vmatpush2.bf16.msra.mxu0 0
      %3537 = vmatprep.mubr.bf16.mxu0 0
      %3538 = vmatmul.mubr.bf16.gmra.mxu0 %v3447
      %v3539 = vpop.f32.mrf.mxu0
      %v3540 = vadd.f32 0.0, %v3539
      %v3541 = vpop.f32.mrf.mxu0
      %v3542 = vadd.f32 0.0, %v3541
      %v3543 = vpop.f32.mrf.mxu0
      %v3544 = vadd.f32 0.0, %v3543
      %v3545 = vpop.f32.mrf.mxu0
      %v3546 = vadd.f32 0.0, %v3545
      %3547 = vmatprep.mubr.bf16.mxu0 0
      %3548 = vmatmul.mubr.bf16.gmra.mxu0 %v3450
      %v3549 = vpop.f32.mrf.mxu0
      %v3550 = vadd.f32 0.0, %v3549
      %v3551 = vpop.f32.mrf.mxu0
      %v3552 = vadd.f32 0.0, %v3551
      %v3553 = vpop.f32.mrf.mxu0
      %v3554 = vadd.f32 0.0, %v3553
      %v3555 = vpop.f32.mrf.mxu0
      %v3556 = vadd.f32 0.0, %v3555
      %3557 = vdwg.mxu0
      %v3558 = vadd.f32 %v3379, %v3487
      %v3559 = vadd.f32 %v3380, %v3489
      %v3560 = vadd.f32 %v3381, %v3540
      %v3561 = vadd.f32 %v3382, %v3542
      %v3562 = vadd.f32 %v3383, %v3491
      %v3563 = vadd.f32 %v3384, %v3493
      %v3564 = vadd.f32 %v3385, %v3544
      %v3565 = vadd.f32 %v3386, %v3546
      %v3566 = vadd.f32 %v3387, %v3497
      %v3567 = vadd.f32 %v3388, %v3499
      %v3568 = vadd.f32 %v3389, %v3550
      %v3569 = vadd.f32 %v3390, %v3552
      %v3570 = vadd.f32 %v3391, %v3501
      %v3571 = vadd.f32 %v3392, %v3503
      %v3572 = vadd.f32 %v3393, %v3554
      %v3573 = vadd.f32 %v3394, %v3556
      %s3574 = scalar_lea.vmem %s4, 128
      %v3575 = vld [vmem:[%s3574] sm:$0xf]
      %v3576 = vld [vmem:[%s3574 + $0x4] sm:$0xf]
      %v3577 = vld [vmem:[%s3574 + $0x8] sm:$0xf]
      %v3578 = vld [vmem:[%s3574 + $0xc] sm:$0xf]
      %v3583 = vunpack.c.l.b16 %v3575
      %v3584 = vunpack.c.l.b16 %v3576
      %v3585 = vunpack.c.l.b16 %v3577
      %v3586 = vunpack.c.l.b16 %v3578
      %v3587 = vpack.c.b16 %v3584, %v3583
      %v3588 = vpack.c.b16 %v3586, %v3585
      %3589 = vrot.lane.b32.xlu0 %v2190, 62
      %v3590 = vpop.permute.xlu0 %3589
      %3591 = vrot.lane.b32.xlu0 %v2191, 62
      %v3592 = vpop.permute.xlu0 %3591
      %3593 = vrot.lane.b32.xlu0 %v2192, 62
      %v3594 = vpop.permute.xlu0 %3593
      %3595 = vrot.lane.b32.xlu0 %v2193, 62
      %v3596 = vpop.permute.xlu0 %3595
      %3597 = vrot.lane.b32.xlu0 %v2194, 62
      %v3598 = vpop.permute.xlu0 %3597
      %3599 = vrot.lane.b32.xlu0 %v2195, 62
      %v3600 = vpop.permute.xlu0 %3599
      %3601 = vrot.lane.b32.xlu0 %v2196, 62
      %v3602 = vpop.permute.xlu0 %3601
      %3603 = vrot.lane.b32.xlu0 %v2197, 62
      %v3604 = vpop.permute.xlu0 %3603
      %3605 = vrot.lane.b32.xlu0 %v2198, 62
      %v3606 = vpop.permute.xlu0 %3605
      %3607 = vrot.lane.b32.xlu0 %v2199, 62
      %v3608 = vpop.permute.xlu0 %3607
      %v3609 = vsel %vm1788, %v3590, %v3592
      %v3610 = vsel %vm1788, %v3592, %v3594
      %v3611 = vsel %vm1788, %v3594, %v3596
      %v3612 = vsel %vm1788, %v3596, %v3598
      %v3613 = vsel %vm1788, %v3600, %v3602
      %v3614 = vsel %vm1788, %v3602, %v3604
      %v3615 = vsel %vm1788, %v3604, %v3606
      %v3616 = vsel %vm1788, %v3606, %v3608
      %v3626 = vsel %vm2265, %v3587, 0
      %v3629 = vsel %vm2265, %v3588, 0
      %3631 = vmatprep.subr.bf16.mxu0 0
      %3632 = vmatpush1.bf16.msra.mxu0 0
      %3633 = vmatprep.subr.bf16.mxu0 0
      %3634 = vmatpush1.bf16.msra.mxu0 0
      %3635 = vmatprep.subr.bf16.mxu0 0
      %3636 = vmatpush1.bf16.msra.mxu0 0
      %3637 = vmatprep.subr.bf16.mxu0 0
      %3638 = vmatpush1.bf16.msra.mxu0 0
      %3639 = vmatprep.subr.bf16.mxu0 0
      %3640 = vmatpush1.bf16.msra.mxu0 0
      %3641 = vmatprep.subr.bf16.mxu0 0
      %3642 = vmatpush1.bf16.msra.mxu0 0
      %3643 = vmatprep.subr.bf16.mxu0 %v3614
      %3644 = vmatpush1.bf16.msra.mxu0 %v3613
      %3645 = vmatprep.subr.bf16.mxu0 %v3610
      %3646 = vmatpush1.bf16.msra.mxu0 %v3609
      %3647 = vmatprep.subr.bf16.mxu0 0
      %3648 = vmatpush2.bf16.msra.mxu0 0
      %3649 = vmatprep.subr.bf16.mxu0 0
      %3650 = vmatpush2.bf16.msra.mxu0 0
      %3651 = vmatprep.subr.bf16.mxu0 0
      %3652 = vmatpush2.bf16.msra.mxu0 0
      %3653 = vmatprep.subr.bf16.mxu0 0
      %3654 = vmatpush2.bf16.msra.mxu0 0
      %3655 = vmatprep.subr.bf16.mxu0 0
      %3656 = vmatpush2.bf16.msra.mxu0 0
      %3657 = vmatprep.subr.bf16.mxu0 0
      %3658 = vmatpush2.bf16.msra.mxu0 0
      %3659 = vmatprep.subr.bf16.mxu0 0
      %3660 = vmatpush2.bf16.msra.mxu0 0
      %3661 = vmatprep.subr.bf16.mxu0 0
      %3662 = vmatpush2.bf16.msra.mxu0 0
      %3663 = vmatprep.mubr.bf16.mxu0 0
      %3664 = vmatmul.mubr.bf16.gmra.mxu0 %v3626
      %v3665 = vpop.f32.mrf.mxu0
      %v3666 = vadd.f32 0.0, %v3665
      %v3667 = vpop.f32.mrf.mxu0
      %v3668 = vadd.f32 0.0, %v3667
      %v3669 = vpop.f32.mrf.mxu0
      %v3670 = vadd.f32 0.0, %v3669
      %v3671 = vpop.f32.mrf.mxu0
      %v3672 = vadd.f32 0.0, %v3671
      %3673 = vmatprep.mubr.bf16.mxu0 0
      %3674 = vmatmul.mubr.bf16.gmra.mxu0 %v3629
      %v3675 = vpop.f32.mrf.mxu0
      %v3676 = vadd.f32 0.0, %v3675
      %v3677 = vpop.f32.mrf.mxu0
      %v3678 = vadd.f32 0.0, %v3677
      %v3679 = vpop.f32.mrf.mxu0
      %v3680 = vadd.f32 0.0, %v3679
      %v3681 = vpop.f32.mrf.mxu0
      %v3682 = vadd.f32 0.0, %v3681
      %3683 = vdwg.mxu0
      %3684 = vmatprep.subr.bf16.mxu0 0
      %3685 = vmatpush1.bf16.msra.mxu0 0
      %3686 = vmatprep.subr.bf16.mxu0 0
      %3687 = vmatpush1.bf16.msra.mxu0 0
      %3688 = vmatprep.subr.bf16.mxu0 0
      %3689 = vmatpush1.bf16.msra.mxu0 0
      %3690 = vmatprep.subr.bf16.mxu0 0
      %3691 = vmatpush1.bf16.msra.mxu0 0
      %3692 = vmatprep.subr.bf16.mxu0 0
      %3693 = vmatpush1.bf16.msra.mxu0 0
      %3694 = vmatprep.subr.bf16.mxu0 0
      %3695 = vmatpush1.bf16.msra.mxu0 0
      %3696 = vmatprep.subr.bf16.mxu0 %v3616
      %3697 = vmatpush1.bf16.msra.mxu0 %v3615
      %3698 = vmatprep.subr.bf16.mxu0 %v3612
      %3699 = vmatpush1.bf16.msra.mxu0 %v3611
      %3700 = vmatprep.subr.bf16.mxu0 0
      %3701 = vmatpush2.bf16.msra.mxu0 0
      %3702 = vmatprep.subr.bf16.mxu0 0
      %3703 = vmatpush2.bf16.msra.mxu0 0
      %3704 = vmatprep.subr.bf16.mxu0 0
      %3705 = vmatpush2.bf16.msra.mxu0 0
      %3706 = vmatprep.subr.bf16.mxu0 0
      %3707 = vmatpush2.bf16.msra.mxu0 0
      %3708 = vmatprep.subr.bf16.mxu0 0
      %3709 = vmatpush2.bf16.msra.mxu0 0
      %3710 = vmatprep.subr.bf16.mxu0 0
      %3711 = vmatpush2.bf16.msra.mxu0 0
      %3712 = vmatprep.subr.bf16.mxu0 0
      %3713 = vmatpush2.bf16.msra.mxu0 0
      %3714 = vmatprep.subr.bf16.mxu0 0
      %3715 = vmatpush2.bf16.msra.mxu0 0
      %3716 = vmatprep.mubr.bf16.mxu0 0
      %3717 = vmatmul.mubr.bf16.gmra.mxu0 %v3626
      %v3718 = vpop.f32.mrf.mxu0
      %v3719 = vadd.f32 0.0, %v3718
      %v3720 = vpop.f32.mrf.mxu0
      %v3721 = vadd.f32 0.0, %v3720
      %v3722 = vpop.f32.mrf.mxu0
      %v3723 = vadd.f32 0.0, %v3722
      %v3724 = vpop.f32.mrf.mxu0
      %v3725 = vadd.f32 0.0, %v3724
      %3726 = vmatprep.mubr.bf16.mxu0 0
      %3727 = vmatmul.mubr.bf16.gmra.mxu0 %v3629
      %v3728 = vpop.f32.mrf.mxu0
      %v3729 = vadd.f32 0.0, %v3728
      %v3730 = vpop.f32.mrf.mxu0
      %v3731 = vadd.f32 0.0, %v3730
      %v3732 = vpop.f32.mrf.mxu0
      %v3733 = vadd.f32 0.0, %v3732
      %v3734 = vpop.f32.mrf.mxu0
      %v3735 = vadd.f32 0.0, %v3734
      %3736 = vdwg.mxu0
      %v3737 = vadd.f32 %v3558, %v3666
      %v3738 = vadd.f32 %v3559, %v3668
      %v3739 = vadd.f32 %v3560, %v3719
      %v3740 = vadd.f32 %v3561, %v3721
      %v3741 = vadd.f32 %v3562, %v3670
      %v3742 = vadd.f32 %v3563, %v3672
      %v3743 = vadd.f32 %v3564, %v3723
      %v3744 = vadd.f32 %v3565, %v3725
      %v3745 = vadd.f32 %v3566, %v3676
      %v3746 = vadd.f32 %v3567, %v3678
      %v3747 = vadd.f32 %v3568, %v3729
      %v3748 = vadd.f32 %v3569, %v3731
      %v3749 = vadd.f32 %v3570, %v3680
      %v3750 = vadd.f32 %v3571, %v3682
      %v3751 = vadd.f32 %v3572, %v3733
      %v3752 = vadd.f32 %v3573, %v3735
      %v3753 = vld [vmem:[%s5] sm:$0xff]
      %v3754 = vld [vmem:[%s5 + $0x8] sm:$0xff]
      %v3755 = vld [vmem:[%s5 + $0x10] sm:$0xff]
      %v3756 = vld [vmem:[%s5 + $0x18] sm:$0xff]
      %3758 = vset.pattern.permute.xlu0 0
      %3759 = vperm.xlu0 %3758, %v3753
      %v3760 = vpop.permute.xlu0 %3759
      %3763 = vset.pattern.permute.xlu0 0
      %3764 = vperm.xlu0 %3763, %v3754
      %v3765 = vpop.permute.xlu0 %3764
      %3768 = vset.pattern.permute.xlu0 0
      %3769 = vperm.xlu0 %3768, %v3755
      %v3770 = vpop.permute.xlu0 %3769
      %3773 = vset.pattern.permute.xlu0 0
      %3774 = vperm.xlu0 %3773, %v3756
      %v3775 = vpop.permute.xlu0 %3774
      %v3777 = vadd.f32 %v3737, %v3760
      %v3778 = vadd.f32 %v3738, %v3760
      %v3779 = vadd.f32 %v3739, %v3760
      %v3780 = vadd.f32 %v3740, %v3760
      %v3781 = vadd.f32 %v3741, %v3765
      %v3782 = vadd.f32 %v3742, %v3765
      %v3783 = vadd.f32 %v3743, %v3765
      %v3784 = vadd.f32 %v3744, %v3765
      %v3785 = vadd.f32 %v3745, %v3770
      %v3786 = vadd.f32 %v3746, %v3770
      %v3787 = vadd.f32 %v3747, %v3770
      %v3788 = vadd.f32 %v3748, %v3770
      %v3789 = vadd.f32 %v3749, %v3775
      %v3790 = vadd.f32 %v3750, %v3775
      %v3791 = vadd.f32 %v3751, %v3775
      %v3792 = vadd.f32 %v3752, %v3775
      %vm3793 = vcmp.gt.f32.partialorder %v3777, 0.0
      %vm3794 = vcmp.gt.f32.partialorder %v3778, 0.0
      %vm3795 = vcmp.gt.f32.partialorder %v3779, 0.0
      %vm3796 = vcmp.gt.f32.partialorder %v3780, 0.0
      %vm3797 = vcmp.gt.f32.partialorder %v3781, 0.0
      %vm3798 = vcmp.gt.f32.partialorder %v3782, 0.0
      %vm3799 = vcmp.gt.f32.partialorder %v3783, 0.0
      %vm3800 = vcmp.gt.f32.partialorder %v3784, 0.0
      %vm3801 = vcmp.gt.f32.partialorder %v3785, 0.0
      %vm3802 = vcmp.gt.f32.partialorder %v3786, 0.0
      %vm3803 = vcmp.gt.f32.partialorder %v3787, 0.0
      %vm3804 = vcmp.gt.f32.partialorder %v3788, 0.0
      %vm3805 = vcmp.gt.f32.partialorder %v3789, 0.0
      %vm3806 = vcmp.gt.f32.partialorder %v3790, 0.0
      %vm3807 = vcmp.gt.f32.partialorder %v3791, 0.0
      %vm3808 = vcmp.gt.f32.partialorder %v3792, 0.0
      %v3809 = vld [vmem:[%s6] sm:$0xff]
      %v3810 = vld [vmem:[%s6 + $0x8] sm:$0xff]
      %v3811 = vld [vmem:[%s6 + $0x10] sm:$0xff]
      %v3812 = vld [vmem:[%s6 + $0x18] sm:$0xff]
      %3814 = vset.pattern.permute.xlu0 0
      %3815 = vperm.xlu0 %3814, %v3809
      %v3816 = vpop.permute.xlu0 %3815
      %3819 = vset.pattern.permute.xlu0 0
      %3820 = vperm.xlu0 %3819, %v3810
      %v3821 = vpop.permute.xlu0 %3820
      %3824 = vset.pattern.permute.xlu0 0
      %3825 = vperm.xlu0 %3824, %v3811
      %v3826 = vpop.permute.xlu0 %3825
      %3829 = vset.pattern.permute.xlu0 0
      %3830 = vperm.xlu0 %3829, %v3812
      %v3831 = vpop.permute.xlu0 %3830
      %v3833 = vmul.f32 %v3816, %v3777
      %v3834 = vmul.f32 %v3816, %v3778
      %v3835 = vmul.f32 %v3816, %v3779
      %v3836 = vmul.f32 %v3816, %v3780
      %v3837 = vmul.f32 %v3821, %v3781
      %v3838 = vmul.f32 %v3821, %v3782
      %v3839 = vmul.f32 %v3821, %v3783
      %v3840 = vmul.f32 %v3821, %v3784
      %v3841 = vmul.f32 %v3826, %v3785
      %v3842 = vmul.f32 %v3826, %v3786
      %v3843 = vmul.f32 %v3826, %v3787
      %v3844 = vmul.f32 %v3826, %v3788
      %v3845 = vmul.f32 %v3831, %v3789
      %v3846 = vmul.f32 %v3831, %v3790
      %v3847 = vmul.f32 %v3831, %v3791
      %v3848 = vmul.f32 %v3831, %v3792
      %v3849 = vsel %vm3793, %v3777, %v3833
      %v3850 = vsel %vm3794, %v3778, %v3834
      %v3851 = vsel %vm3795, %v3779, %v3835
      %v3852 = vsel %vm3796, %v3780, %v3836
      %v3853 = vsel %vm3797, %v3781, %v3837
      %v3854 = vsel %vm3798, %v3782, %v3838
      %v3855 = vsel %vm3799, %v3783, %v3839
      %v3856 = vsel %vm3800, %v3784, %v3840
      %v3857 = vsel %vm3801, %v3785, %v3841
      %v3858 = vsel %vm3802, %v3786, %v3842
      %v3859 = vsel %vm3803, %v3787, %v3843
      %v3860 = vsel %vm3804, %v3788, %v3844
      %v3861 = vsel %vm3805, %v3789, %v3845
      %v3862 = vsel %vm3806, %v3790, %v3846
      %v3863 = vsel %vm3807, %v3791, %v3847
      %v3864 = vsel %vm3808, %v3792, %v3848
      %3865 = vst [vmem:[%s278] sm:$0xff] %v3849
      %3866 = vst [vmem:[%s278 + $0x8] sm:$0xff] %v3850
      %3867 = vst [vmem:[%s278 + $0x10] sm:$0xff] %v3851
      %3868 = vst [vmem:[%s278 + $0x18] sm:$0xff] %v3852
      %3869 = vst [vmem:[%s278 + $0x20] sm:$0xff] %v3853
      %3870 = vst [vmem:[%s278 + $0x28] sm:$0xff] %v3854
      %3871 = vst [vmem:[%s278 + $0x30] sm:$0xff] %v3855
      %3872 = vst [vmem:[%s278 + $0x38] sm:$0xff] %v3856
      %3873 = vst [vmem:[%s278 + $0x40] sm:$0xff] %v3857
      %3874 = vst [vmem:[%s278 + $0x48] sm:$0xff] %v3858
      %3875 = vst [vmem:[%s278 + $0x50] sm:$0xff] %v3859
      %3876 = vst [vmem:[%s278 + $0x58] sm:$0xff] %v3860
      %3877 = vst [vmem:[%s278 + $0x60] sm:$0xff] %v3861
      %3878 = vst [vmem:[%s278 + $0x68] sm:$0xff] %v3862
      %3879 = vst [vmem:[%s278 + $0x70] sm:$0xff] %v3863
      %3880 = vst [vmem:[%s278 + $0x78] sm:$0xff] %v3864
      %p3881 = scmp.lt.s32.totalorder %s18, 1
      %s3882 = scalar_select %p3881, %s18, 1
      %s3883 = smul.addr %s3882, 16
      %s3884 = smul.addr %s3883, 8
      %s3885 = scalar_lea.vmem %s7, %s3884
      // Predicated region
      $region49: #{fcnn_forward.1} parent=47 // pred_check
        %p3886 = pneg %p188
      $region50: #{fcnn_forward.1} parent=47 // pred_check_branch
        %3888 = sbr.rel (%p3886) target = $region52
      $region51: #{fcnn_forward.1} parent=47 // pred_region
        _
      $region52: #{fcnn_forward.1} parent=47 // pred_fallthru
        _
    $region48: #{fcnn_forward.1} parent=5 // pred_fallthru
      _
    %p3889 = scmp.le.s32.totalorder 2, %s13
    // Predicated region
    $region53: #{fcnn_forward.1} parent=5 // pred_check
      %p3890 = pneg %p3889
    $region54: #{fcnn_forward.1} parent=5 // pred_check_branch
      %3892 = sbr.rel (%p3890) target = $region56
    $region55: #{fcnn_forward.1} parent=5 // pred_region
      %s3893 = ssub.s32 %s13, 2
      // Predicated region
      $region57: #{fcnn_forward.1} parent=55 // pred_check
        %p3894 = pneg %p194
      $region58: #{fcnn_forward.1} parent=55 // pred_check_branch
        %3896 = sbr.rel (%p3894) target = $region60
      $region59: #{fcnn_forward.1} parent=55 // pred_region
        %p3897 = scmp.lt.s32.totalorder %s19, 1
        %s3898 = scalar_select %p3897, %s19, 1
        %s3899 = smul.addr %s3898, 16
        %s3900 = smul.addr %s3899, 8
        %s3901 = scalar_lea.vmem %s7, %s3900
      $region60: #{fcnn_forward.1} parent=55 // pred_fallthru
        _
    $region56: #{fcnn_forward.1} parent=5 // pred_fallthru
      _
  $region6: #{fcnn_forward.1} parent=0 // loop_footer
    %s17 = sadd.s32 1, %s13
  $region7: #{fcnn_forward.1} parent=0 // loop_footer_branch
    %12 = sbr.rel target = $region3
  $region8: #{fcnn_forward.1} parent=0 // loop_exit
    _

</llo_original>
